<compile_context>
chip_gen: v7x
topology: tpu7x:2x2x1
jax: 0.10.0
libtpu: 0.0.40
codegen_flags: <defaults>
</compile_context>

<pallas_src>
import jax
import jax.numpy as jnp
import numpy as np
from jax.experimental import pallas as pl
from jax.experimental.pallas import tpu as pltpu


def _conv3x3_bias_relu(pad_ref, v_ref, w_ref, b_ref):
    """SAME 3x3 conv on a 1-px zero-padded bf16 activation + folded-BN bias + ReLU.

    pad_ref: (Hp, Wp, C)     bf16 VMEM scratch (halo zeroed, interior valid)
    v_ref  : (Hp*Wh, 3*C)    bf16 VMEM scratch (lane-packed kx-shifted views)
    w_ref  : (3, 3*C, Cout)  bf16, ky-major; rows of w_ref[ky] ordered (kx, cin)
    b_ref  : (1, Cout)       f32 folded BN bias
    returns: (Hh*Wh, Cout) f32
    """
    Hp, Wp, C = pad_ref.shape
    Hh, Wh = Hp - 2, Wp - 2

    m = pad_ref[...]                                        # (Hp, Wp, C) bf16
    # Pack the 3 kx-shifted, row-flattened views along the lane (channel) axis
    # into one (Hp*Wh, 3C) slab: each ky tap below is then a single aligned
    # sublane slice and every matmul contracts over K = 3C, which fills the
    # 256-wide MXU far better than K = C when C < 256.
    for kx in range(3):
        v_ref[:, kx * C:(kx + 1) * C] = m[:, kx:kx + Wh, :].reshape(Hp * Wh, C)

    # ky = 0 initialises the accumulator directly (no zeros + add).
    acc = jnp.dot(v_ref[0:Hh * Wh, :], w_ref[0],
                  preferred_element_type=jnp.float32)
    for ky in (1, 2):
        acc = acc + jnp.dot(v_ref[ky * Wh:ky * Wh + Hh * Wh, :], w_ref[ky],
                            preferred_element_type=jnp.float32)
    return jnp.maximum(acc + b_ref[...], 0.0)               # fused BN bias + ReLU


def _down_kernel(x_ref, w1_ref, b1_ref, w2_ref, b2_ref, o_ref,
                 pad1, v1, pad2, v2):
    # x_ref : (Nb, Hh, 2, Wh, 2*Cin) bf16   -- 2x2 pooling windows pre-exposed
    # w*_ref: (3, 3*C, Cout) bf16 (BN scale folded);  b*_ref: (1, Cout) f32
    # o_ref : (Nb, Hh*Wh, Cout) bf16
    # pad*  : (Hh+2, Wh+2, C) bf16 scratch;  v*: ((Hh+2)*Wh, 3*C) bf16 scratch
    Nb = x_ref.shape[0]
    Hh = x_ref.shape[1]
    Wh = x_ref.shape[3]
    Cin = x_ref.shape[4] // 2
    Cmid = pad2.shape[2]
    Hp, Wp = Hh + 2, Wh + 2

    # Re-zero only the 1-px halo once per grid step (the interior is fully
    # overwritten per image; safe under "parallel" megacore grid sharding).
    for pad in (pad1, pad2):
        C = pad.shape[2]
        pad[0:1, :, :] = jnp.zeros((1, Wp, C), pad.dtype)
        pad[Hp - 1:Hp, :, :] = jnp.zeros((1, Wp, C), pad.dtype)
        pad[:, 0:1, :] = jnp.zeros((Hp, 1, C), pad.dtype)
        pad[:, Wp - 1:Wp, :] = jnp.zeros((Hp, 1, C), pad.dtype)

    for n in range(Nb):                                     # static, small (<=8)
        # ---- fused MaxPool2d(2): maxima in f32 (v5e VPU has no bf16 ALUs) ----
        xb = x_ref[n].astype(jnp.float32)                   # (Hh, 2, Wh, 2*Cin)
        hmax = jnp.maximum(xb[:, 0], xb[:, 1])              # (Hh, Wh, 2*Cin)
        pooled = jnp.maximum(hmax[..., :Cin], hmax[..., Cin:])   # (Hh, Wh, Cin)

        # ---- conv1 => BN1(folded) => ReLU ----
        pad1[1:Hh + 1, 1:Wh + 1, :] = pooled.astype(pad1.dtype)
        y = _conv3x3_bias_relu(pad1, v1, w1_ref, b1_ref)    # (Hh*Wh, Cmid) f32

        # ---- conv2 => BN2(folded) => ReLU ----
        pad2[1:Hh + 1, 1:Wh + 1, :] = y.reshape(Hh, Wh, Cmid).astype(pad2.dtype)
        z = _conv3x3_bias_relu(pad2, v2, w2_ref, b2_ref)    # (Hh*Wh, Cout) f32

        o_ref[n] = z.astype(o_ref.dtype)                    # bf16 writeback


def _pick_images_per_step(N, Hh, Wh, Cin, Cout, max_images=8, budget=8 << 20):
    """Largest divisor of N whose double-buffered in+out blocks fit the budget."""
    per_img = (Hh * 2 * Wh * 2 * Cin + Hh * Wh * Cout) * 2    # bf16 in + out
    best = 1
    for nb in range(1, min(N, max_images) + 1):
        if N % nb == 0 and 2 * nb * per_img <= budget:
            best = nb
    return best


def _vmem_limit_bytes(Nb, Hh, Wh, Cin, Cmid, Cout):
    """Derive the scoped-VMEM request from actual buffer sizes (cap: v7x 64 MiB)."""
    Hp, Wp = Hh + 2, Wh + 2
    in_blk = Nb * Hh * 2 * Wh * 2 * Cin * 2                   # bf16 input block
    out_blk = Nb * Hh * Wh * Cout * 2                         # bf16 output block
    pads = (Hp * Wp * Cin + Hp * Wp * Cmid) * 2               # bf16 padded slabs
    views = (Hp * Wh * 3 * Cin + Hp * Wh * 3 * Cmid) * 2      # bf16 packed views
    live_f32 = Hh * Wh * (Cmid + max(Cmid, Cout)) * 4         # acc + y
    weights = (9 * Cin * Cmid + 9 * Cmid * Cout) * 2 * 2      # double-buffered
    est = 2 * (in_blk + out_blk) + pads + views + live_f32 + weights
    est = int(est * 1.5) + (2 << 20)                          # margin
    return max(32 << 20, min(est, 64 << 20))


def down_nhwc(x_nhwc, w1_hwio, s1, b1, w2_hwio, s2, b2, images_per_step=None):
    """`Down` forward, channels-last: MaxPool2d(2) then DoubleConv (eval-mode BN folded).

    x_nhwc: (N, H, W, Cin) with even H, W.  Returns (N, H/2, W/2, Cout) bf16.
    s*/b*: per-channel folded BN scale/bias (scale is folded into the weights).
    """
    N, H, W, Cin = x_nhwc.shape
    assert H % 2 == 0 and W % 2 == 0, "MaxPool2d(2) expects even H, W"
    Hh, Wh = H // 2, W // 2
    Cmid = w1_hwio.shape[3]
    Cout = w2_hwio.shape[3]

    # Free reshape exposing the 2x2 pooling windows; bf16 halves the HBM read.
    x = x_nhwc.astype(jnp.bfloat16).reshape(N, Hh, 2, Wh, 2 * Cin)

    # Fold eval-mode BN scale into the conv weights and reshape them so each
    # w[ky] is the (3*C, Cout) matrix matching the lane-packed kx views.
    w1f = (w1_hwio * s1.reshape(1, 1, 1, Cmid)).reshape(3, 3 * Cin, Cmid)
    w1f = w1f.astype(jnp.bfloat16)
    w2f = (w2_hwio * s2.reshape(1, 1, 1, Cout)).reshape(3, 3 * Cmid, Cout)
    w2f = w2f.astype(jnp.bfloat16)
    b1f = b1.reshape(1, Cmid).astype(jnp.float32)
    b2f = b2.reshape(1, Cout).astype(jnp.float32)

    Nb = images_per_step or _pick_images_per_step(N, Hh, Wh, Cin, Cout)
    assert N % Nb == 0

    out = pl.pallas_call(
        _down_kernel,
        out_shape=jax.ShapeDtypeStruct((N, Hh * Wh, Cout), jnp.bfloat16),
        grid_spec=pltpu.PrefetchScalarGridSpec(
            num_scalar_prefetch=0,
            grid=(N // Nb,),
            in_specs=[
                pl.BlockSpec((Nb, Hh, 2, Wh, 2 * Cin),
                             lambda n: (n, 0, 0, 0, 0)),
                pl.BlockSpec((3, 3 * Cin, Cmid), lambda n: (0, 0, 0)),
                pl.BlockSpec((1, Cmid), lambda n: (0, 0)),
                pl.BlockSpec((3, 3 * Cmid, Cout), lambda n: (0, 0, 0)),
                pl.BlockSpec((1, Cout), lambda n: (0, 0)),
            ],
            out_specs=pl.BlockSpec((Nb, Hh * Wh, Cout), lambda n: (n, 0, 0)),
            scratch_shapes=[
                pltpu.VMEM((Hh + 2, Wh + 2, Cin), jnp.bfloat16),
                pltpu.VMEM(((Hh + 2) * Wh, 3 * Cin), jnp.bfloat16),
                pltpu.VMEM((Hh + 2, Wh + 2, Cmid), jnp.bfloat16),
                pltpu.VMEM(((Hh + 2) * Wh, 3 * Cmid), jnp.bfloat16),
            ],
        ),
        compiler_params=pltpu.CompilerParams(
            dimension_semantics=("parallel",),
            vmem_limit_bytes=_vmem_limit_bytes(Nb, Hh, Wh, Cin, Cmid, Cout),
        ),
    )(x, w1f, b1f, w2f, b2f)

    return out.reshape(N, Hh, Wh, Cout)                     # NHWC, bf16


def down_nchw(x_nchw, w1_hwio, s1, b1, w2_hwio, s2, b2, images_per_step=None):
    """NCHW facade matching the PyTorch module interface (returns bf16 NCHW)."""
    x_nhwc = jnp.transpose(x_nchw, (0, 2, 3, 1))
    out = down_nhwc(x_nhwc, w1_hwio, s1, b1, w2_hwio, s2, b2, images_per_step)
    return jnp.transpose(out, (0, 3, 1, 2))


def reference_down_nchw(x_nchw, w1_hwio, g1, be1, m1, v1,
                        w2_hwio, g2, be2, m2, v2, eps=1e-5):
    """Pure-JAX f32 reference matching PyTorch eval-mode Down (maxpool + DoubleConv)."""
    N, C, H, W = x_nchw.shape
    xp = x_nchw.reshape(N, C, H // 2, 2, W // 2, 2).max(axis=(3, 5))  # MaxPool2d(2)
    dn = ('NHWC', 'HWIO', 'NHWC')
    hp = jax.lax.Precision.HIGHEST
    xh = jnp.transpose(xp, (0, 2, 3, 1))
    y = jax.lax.conv_general_dilated(xh, w1_hwio, (1, 1), 'SAME',
                                     dimension_numbers=dn, precision=hp)
    y = (y - m1) / jnp.sqrt(v1 + eps) * g1 + be1
    y = jnp.maximum(y, 0.0)
    z = jax.lax.conv_general_dilated(y, w2_hwio, (1, 1), 'SAME',
                                     dimension_numbers=dn, precision=hp)
    z = (z - m2) / jnp.sqrt(v2 + eps) * g2 + be2
    z = jnp.maximum(z, 0.0)
    return jnp.transpose(z, (0, 3, 1, 2))


if __name__ == "__main__":
    N, Cin, H, W = 2, 4, 16, 16
    Cout = 8
    Cmid = Cout          # DoubleConv default: mid_channels = out_channels
    eps = 1e-5

    key = jax.random.PRNGKey(0)
    ks = jax.random.split(key, 12)

    x = jax.random.normal(ks[0], (N, Cin, H, W), jnp.float32)

    # Conv weights directly in HWIO layout (deterministic).
    w1 = 0.2 * jax.random.normal(ks[1], (3, 3, Cin, Cmid), jnp.float32)
    w2 = 0.2 * jax.random.normal(ks[2], (3, 3, Cmid, Cout), jnp.float32)

    # BatchNorm parameters + running stats (eval-mode semantics).
    g1 = 1.0 + 0.1 * jax.random.normal(ks[3], (Cmid,), jnp.float32)
    be1 = 0.1 * jax.random.normal(ks[4], (Cmid,), jnp.float32)
    m1 = 0.1 * jax.random.normal(ks[5], (Cmid,), jnp.float32)
    v1 = 0.5 + jnp.abs(jax.random.normal(ks[6], (Cmid,), jnp.float32))

    g2 = 1.0 + 0.1 * jax.random.normal(ks[7], (Cout,), jnp.float32)
    be2 = 0.1 * jax.random.normal(ks[8], (Cout,), jnp.float32)
    m2 = 0.1 * jax.random.normal(ks[9], (Cout,), jnp.float32)
    v2 = 0.5 + jnp.abs(jax.random.normal(ks[10], (Cout,), jnp.float32))

    # Fold eval-mode BN into per-channel scale/bias (scale goes into the weights).
    s1 = g1 / jnp.sqrt(v1 + eps)
    b1 = be1 - m1 * s1
    s2 = g2 / jnp.sqrt(v2 + eps)
    b2 = be2 - m2 * s2

    out = down_nchw(x, w1, s1, b1, w2, s2, b2)
    out = jax.block_until_ready(out)

    ref = reference_down_nchw(x, w1, g1, be1, m1, v1, w2, g2, be2, m2, v2, eps)
    ref = jax.block_until_ready(ref)

    assert out.shape == (N, Cout, H // 2, W // 2), out.shape
    # bf16 activations/weights/output vs f32 Precision.HIGHEST reference.
    np.testing.assert_allclose(np.asarray(out.astype(jnp.float32)),
                               np.asarray(ref), rtol=5e-2, atol=5e-2)
    print("KERNEL_OK")
</pallas_src>

<mosaic_0001>
module attributes {stable_mosaic.version = 11 : i64} {
  func.func @_down_kernel(%arg0: i32, %arg1: memref<2x8x2x8x8xbf16, #tpu.memory_space<vmem>>, %arg2: memref<3x12x8xbf16, #tpu.memory_space<vmem>>, %arg3: memref<1x8xf32, #tpu.memory_space<vmem>>, %arg4: memref<3x24x8xbf16, #tpu.memory_space<vmem>>, %arg5: memref<1x8xf32, #tpu.memory_space<vmem>>, %arg6: memref<2x64x8xbf16, #tpu.memory_space<vmem>>, %arg7: memref<10x10x4xbf16, #tpu.memory_space<vmem>>, %arg8: memref<80x12xbf16, #tpu.memory_space<vmem>>, %arg9: memref<10x10x8xbf16, #tpu.memory_space<vmem>>, %arg10: memref<80x24xbf16, #tpu.memory_space<vmem>>) attributes {dimension_semantics = [#tpu.dimension_semantics<parallel>], iteration_bounds = array<i64: 1>, scalar_prefetch = 0 : i64, scratch_operands = 4 : i64, tpu.core_type = #tpu.core_type<tc>, window_params = [{transform_indices = @transform_0, window_bounds = array<i64: 2, 8, 2, 8, 8>}, {pipeline_mode = #tpu.pipeline_mode<synchronous>, transform_indices = @transform_1, window_bounds = array<i64: 3, 12, 8>}, {pipeline_mode = #tpu.pipeline_mode<synchronous>, transform_indices = @transform_2, window_bounds = array<i64: 1, 8>}, {pipeline_mode = #tpu.pipeline_mode<synchronous>, transform_indices = @transform_3, window_bounds = array<i64: 3, 24, 8>}, {pipeline_mode = #tpu.pipeline_mode<synchronous>, transform_indices = @transform_4, window_bounds = array<i64: 1, 8>}, {transform_indices = @transform_5, window_bounds = array<i64: 2, 64, 8>}]} {
    %cst = arith.constant 0.000000e+00 : bf16
    %0 = vector.broadcast %cst : bf16 to vector<1x10x4xbf16>
    %c0 = arith.constant 0 : index
    %c0_0 = arith.constant 0 : index
    %c0_1 = arith.constant 0 : index
    %1 = vector.load %arg7[%c0, %c0_0, %c0_1] : memref<10x10x4xbf16, #tpu.memory_space<vmem>>, vector<1x10x4xbf16>
    tpu.vector_store %arg7[%c0, %c0_0, %c0_1], %0 {strides = array<i32>} : memref<10x10x4xbf16, #tpu.memory_space<vmem>>, vector<1x10x4xbf16>,
    %cst_2 = arith.constant 0.000000e+00 : bf16
    %2 = vector.broadcast %cst_2 : bf16 to vector<1x10x4xbf16>
    %c9 = arith.constant 9 : index
    %c0_3 = arith.constant 0 : index
    %c0_4 = arith.constant 0 : index
    %3 = vector.load %arg7[%c9, %c0_3, %c0_4] : memref<10x10x4xbf16, #tpu.memory_space<vmem>>, vector<1x10x4xbf16>
    tpu.vector_store %arg7[%c9, %c0_3, %c0_4], %2 {strides = array<i32>} : memref<10x10x4xbf16, #tpu.memory_space<vmem>>, vector<1x10x4xbf16>,
    %cst_5 = arith.constant 0.000000e+00 : bf16
    %4 = vector.broadcast %cst_5 : bf16 to vector<10x1x4xbf16>
    %c0_6 = arith.constant 0 : index
    %c0_7 = arith.constant 0 : index
    %c0_8 = arith.constant 0 : index
    %5 = vector.load %arg7[%c0_6, %c0_7, %c0_8] : memref<10x10x4xbf16, #tpu.memory_space<vmem>>, vector<10x1x4xbf16>
    tpu.vector_store %arg7[%c0_6, %c0_7, %c0_8], %4 {strides = array<i32>} : memref<10x10x4xbf16, #tpu.memory_space<vmem>>, vector<10x1x4xbf16>,
    %cst_9 = arith.constant 0.000000e+00 : bf16
    %6 = vector.broadcast %cst_9 : bf16 to vector<10x1x4xbf16>
    %c0_10 = arith.constant 0 : index
    %c9_11 = arith.constant 9 : index
    %c0_12 = arith.constant 0 : index
    %7 = vector.load %arg7[%c0_10, %c9_11, %c0_12] : memref<10x10x4xbf16, #tpu.memory_space<vmem>>, vector<10x1x4xbf16>
    tpu.vector_store %arg7[%c0_10, %c9_11, %c0_12], %6 {strides = array<i32>} : memref<10x10x4xbf16, #tpu.memory_space<vmem>>, vector<10x1x4xbf16>,
    %cst_13 = arith.constant 0.000000e+00 : bf16
    %8 = vector.broadcast %cst_13 : bf16 to vector<1x10x8xbf16>
    %c0_14 = arith.constant 0 : index
    %c0_15 = arith.constant 0 : index
    %c0_16 = arith.constant 0 : index
    %9 = vector.load %arg9[%c0_14, %c0_15, %c0_16] : memref<10x10x8xbf16, #tpu.memory_space<vmem>>, vector<1x10x8xbf16>
    tpu.vector_store %arg9[%c0_14, %c0_15, %c0_16], %8 {strides = array<i32>} : memref<10x10x8xbf16, #tpu.memory_space<vmem>>, vector<1x10x8xbf16>,
    %cst_17 = arith.constant 0.000000e+00 : bf16
    %10 = vector.broadcast %cst_17 : bf16 to vector<1x10x8xbf16>
    %c9_18 = arith.constant 9 : index
    %c0_19 = arith.constant 0 : index
    %c0_20 = arith.constant 0 : index
    %11 = vector.load %arg9[%c9_18, %c0_19, %c0_20] : memref<10x10x8xbf16, #tpu.memory_space<vmem>>, vector<1x10x8xbf16>
    tpu.vector_store %arg9[%c9_18, %c0_19, %c0_20], %10 {strides = array<i32>} : memref<10x10x8xbf16, #tpu.memory_space<vmem>>, vector<1x10x8xbf16>,
    %cst_21 = arith.constant 0.000000e+00 : bf16
    %12 = vector.broadcast %cst_21 : bf16 to vector<10x1x8xbf16>
    %c0_22 = arith.constant 0 : index
    %c0_23 = arith.constant 0 : index
    %c0_24 = arith.constant 0 : index
    %13 = vector.load %arg9[%c0_22, %c0_23, %c0_24] : memref<10x10x8xbf16, #tpu.memory_space<vmem>>, vector<10x1x8xbf16>
    tpu.vector_store %arg9[%c0_22, %c0_23, %c0_24], %12 {strides = array<i32>} : memref<10x10x8xbf16, #tpu.memory_space<vmem>>, vector<10x1x8xbf16>,
    %cst_25 = arith.constant 0.000000e+00 : bf16
    %14 = vector.broadcast %cst_25 : bf16 to vector<10x1x8xbf16>
    %c0_26 = arith.constant 0 : index
    %c9_27 = arith.constant 9 : index
    %c0_28 = arith.constant 0 : index
    %15 = vector.load %arg9[%c0_26, %c9_27, %c0_28] : memref<10x10x8xbf16, #tpu.memory_space<vmem>>, vector<10x1x8xbf16>
    tpu.vector_store %arg9[%c0_26, %c9_27, %c0_28], %14 {strides = array<i32>} : memref<10x10x8xbf16, #tpu.memory_space<vmem>>, vector<10x1x8xbf16>,
    %c0_29 = arith.constant 0 : index
    %c0_30 = arith.constant 0 : index
    %c0_31 = arith.constant 0 : index
    %c0_32 = arith.constant 0 : index
    %c0_33 = arith.constant 0 : index
    %16 = vector.load %arg1[%c0_29, %c0_30, %c0_31, %c0_32, %c0_33] : memref<2x8x2x8x8xbf16, #tpu.memory_space<vmem>>, vector<1x8x2x8x8xbf16>
    %17 = vector.shape_cast %16 : vector<1x8x2x8x8xbf16> to vector<8x2x8x8xbf16>
    %18 = arith.extf %17 : vector<8x2x8x8xbf16> to vector<8x2x8x8xf32>
    %19 = vector.extract_strided_slice %18 {offsets = [0, 0, 0, 0], sizes = [8, 1, 8, 8], strides = [1, 1, 1, 1]} : vector<8x2x8x8xf32> to vector<8x1x8x8xf32>
    %20 = vector.shape_cast %19 : vector<8x1x8x8xf32> to vector<8x8x8xf32>
    %21 = vector.extract_strided_slice %18 {offsets = [0, 1, 0, 0], sizes = [8, 1, 8, 8], strides = [1, 1, 1, 1]} : vector<8x2x8x8xf32> to vector<8x1x8x8xf32>
    %22 = vector.shape_cast %21 : vector<8x1x8x8xf32> to vector<8x8x8xf32>
    %23 = arith.maximumf %20, %22 : vector<8x8x8xf32>
    %24 = vector.extract_strided_slice %23 {offsets = [0, 0, 0], sizes = [8, 8, 4], strides = [1, 1, 1]} : vector<8x8x8xf32> to vector<8x8x4xf32>
    %25 = vector.extract_strided_slice %23 {offsets = [0, 0, 4], sizes = [8, 8, 4], strides = [1, 1, 1]} : vector<8x8x8xf32> to vector<8x8x4xf32>
    %26 = arith.maximumf %24, %25 : vector<8x8x4xf32>
    %27 = arith.truncf %26 : vector<8x8x4xf32> to vector<8x8x4xbf16>
    %c1 = arith.constant 1 : index
    %c1_34 = arith.constant 1 : index
    %c0_35 = arith.constant 0 : index
    %28 = vector.load %arg7[%c1, %c1_34, %c0_35] : memref<10x10x4xbf16, #tpu.memory_space<vmem>>, vector<8x8x4xbf16>
    tpu.vector_store %arg7[%c1, %c1_34, %c0_35], %27 {strides = array<i32>} : memref<10x10x4xbf16, #tpu.memory_space<vmem>>, vector<8x8x4xbf16>,
    %c0_36 = arith.constant 0 : index
    %c0_37 = arith.constant 0 : index
    %c0_38 = arith.constant 0 : index
    %29 = vector.load %arg7[%c0_36, %c0_37, %c0_38] : memref<10x10x4xbf16, #tpu.memory_space<vmem>>, vector<10x10x4xbf16>
    %30 = vector.extract_strided_slice %29 {offsets = [0, 0, 0], sizes = [10, 8, 4], strides = [1, 1, 1]} : vector<10x10x4xbf16> to vector<10x8x4xbf16>
    %31 = vector.shape_cast %30 : vector<10x8x4xbf16> to vector<80x4xbf16>
    %c0_39 = arith.constant 0 : index
    %c0_40 = arith.constant 0 : index
    %32 = vector.load %arg8[%c0_39, %c0_40] : memref<80x12xbf16, #tpu.memory_space<vmem>>, vector<80x4xbf16>
    tpu.vector_store %arg8[%c0_39, %c0_40], %31 {strides = array<i32>} : memref<80x12xbf16, #tpu.memory_space<vmem>>, vector<80x4xbf16>,
    %33 = vector.extract_strided_slice %29 {offsets = [0, 1, 0], sizes = [10, 8, 4], strides = [1, 1, 1]} : vector<10x10x4xbf16> to vector<10x8x4xbf16>
    %34 = vector.shape_cast %33 : vector<10x8x4xbf16> to vector<80x4xbf16>
    %c0_41 = arith.constant 0 : index
    %c4 = arith.constant 4 : index
    %35 = vector.load %arg8[%c0_41, %c4] : memref<80x12xbf16, #tpu.memory_space<vmem>>, vector<80x4xbf16>
    tpu.vector_store %arg8[%c0_41, %c4], %34 {strides = array<i32>} : memref<80x12xbf16, #tpu.memory_space<vmem>>, vector<80x4xbf16>,
    %36 = vector.extract_strided_slice %29 {offsets = [0, 2, 0], sizes = [10, 8, 4], strides = [1, 1, 1]} : vector<10x10x4xbf16> to vector<10x8x4xbf16>
    %37 = vector.shape_cast %36 : vector<10x8x4xbf16> to vector<80x4xbf16>
    %c0_42 = arith.constant 0 : index
    %c8 = arith.constant 8 : index
    %38 = vector.load %arg8[%c0_42, %c8] : memref<80x12xbf16, #tpu.memory_space<vmem>>, vector<80x4xbf16>
    tpu.vector_store %arg8[%c0_42, %c8], %37 {strides = array<i32>} : memref<80x12xbf16, #tpu.memory_space<vmem>>, vector<80x4xbf16>,
    %c0_43 = arith.constant 0 : index
    %c0_44 = arith.constant 0 : index
    %39 = vector.load %arg8[%c0_43, %c0_44] : memref<80x12xbf16, #tpu.memory_space<vmem>>, vector<64x12xbf16>
    %c0_45 = arith.constant 0 : index
    %c0_46 = arith.constant 0 : index
    %c0_47 = arith.constant 0 : index
    %40 = vector.load %arg2[%c0_45, %c0_46, %c0_47] : memref<3x12x8xbf16, #tpu.memory_space<vmem>>, vector<1x12x8xbf16>
    %41 = vector.shape_cast %40 : vector<1x12x8xbf16> to vector<12x8xbf16>
    %cst_48 = arith.constant dense<0.000000e+00> : vector<64x8xf32>
    %42 = tpu.matmul %39, %41, %cst_48 {dimension_numbers = #tpu.dot_dimension_numbers<[1], [0], [0], [1], [0, 0, 1, 1], [], []>} : vector<64x12xbf16>, vector<12x8xbf16>, vector<64x8xf32> -> vector<64x8xf32>
    %c8_49 = arith.constant 8 : index
    %c0_50 = arith.constant 0 : index
    %43 = vector.load %arg8[%c8_49, %c0_50] : memref<80x12xbf16, #tpu.memory_space<vmem>>, vector<64x12xbf16>
    %c1_51 = arith.constant 1 : index
    %c0_52 = arith.constant 0 : index
    %c0_53 = arith.constant 0 : index
    %44 = vector.load %arg2[%c1_51, %c0_52, %c0_53] : memref<3x12x8xbf16, #tpu.memory_space<vmem>>, vector<1x12x8xbf16>
    %45 = vector.shape_cast %44 : vector<1x12x8xbf16> to vector<12x8xbf16>
    %cst_54 = arith.constant dense<0.000000e+00> : vector<64x8xf32>
    %46 = tpu.matmul %43, %45, %cst_54 {dimension_numbers = #tpu.dot_dimension_numbers<[1], [0], [0], [1], [0, 0, 1, 1], [], []>} : vector<64x12xbf16>, vector<12x8xbf16>, vector<64x8xf32> -> vector<64x8xf32>
    %47 = arith.addf %42, %46 : vector<64x8xf32>
    %c16 = arith.constant 16 : index
    %c0_55 = arith.constant 0 : index
    %48 = vector.load %arg8[%c16, %c0_55] : memref<80x12xbf16, #tpu.memory_space<vmem>>, vector<64x12xbf16>
    %c2 = arith.constant 2 : index
    %c0_56 = arith.constant 0 : index
    %c0_57 = arith.constant 0 : index
    %49 = vector.load %arg2[%c2, %c0_56, %c0_57] : memref<3x12x8xbf16, #tpu.memory_space<vmem>>, vector<1x12x8xbf16>
    %50 = vector.shape_cast %49 : vector<1x12x8xbf16> to vector<12x8xbf16>
    %cst_58 = arith.constant dense<0.000000e+00> : vector<64x8xf32>
    %51 = tpu.matmul %48, %50, %cst_58 {dimension_numbers = #tpu.dot_dimension_numbers<[1], [0], [0], [1], [0, 0, 1, 1], [], []>} : vector<64x12xbf16>, vector<12x8xbf16>, vector<64x8xf32> -> vector<64x8xf32>
    %52 = arith.addf %47, %51 : vector<64x8xf32>
    %c0_59 = arith.constant 0 : index
    %c0_60 = arith.constant 0 : index
    %53 = vector.load %arg3[%c0_59, %c0_60] : memref<1x8xf32, #tpu.memory_space<vmem>>, vector<1x8xf32>
    %54 = vector.broadcast %53 : vector<1x8xf32> to vector<64x8xf32>
    %55 = arith.addf %52, %54 : vector<64x8xf32>
    %cst_61 = arith.constant 0.000000e+00 : f32
    %56 = vector.broadcast %cst_61 : f32 to vector<64x8xf32>
    %57 = arith.maximumf %55, %56 : vector<64x8xf32>
    %58 = vector.shape_cast %57 : vector<64x8xf32> to vector<8x8x8xf32>
    %59 = arith.truncf %58 : vector<8x8x8xf32> to vector<8x8x8xbf16>
    %c1_62 = arith.constant 1 : index
    %c1_63 = arith.constant 1 : index
    %c0_64 = arith.constant 0 : index
    %60 = vector.load %arg9[%c1_62, %c1_63, %c0_64] : memref<10x10x8xbf16, #tpu.memory_space<vmem>>, vector<8x8x8xbf16>
    tpu.vector_store %arg9[%c1_62, %c1_63, %c0_64], %59 {strides = array<i32>} : memref<10x10x8xbf16, #tpu.memory_space<vmem>>, vector<8x8x8xbf16>,
    %c0_65 = arith.constant 0 : index
    %c0_66 = arith.constant 0 : index
    %c0_67 = arith.constant 0 : index
    %61 = vector.load %arg9[%c0_65, %c0_66, %c0_67] : memref<10x10x8xbf16, #tpu.memory_space<vmem>>, vector<10x10x8xbf16>
    %62 = vector.extract_strided_slice %61 {offsets = [0, 0, 0], sizes = [10, 8, 8], strides = [1, 1, 1]} : vector<10x10x8xbf16> to vector<10x8x8xbf16>
    %63 = vector.shape_cast %62 : vector<10x8x8xbf16> to vector<80x8xbf16>
    %c0_68 = arith.constant 0 : index
    %c0_69 = arith.constant 0 : index
    %64 = vector.load %arg10[%c0_68, %c0_69] : memref<80x24xbf16, #tpu.memory_space<vmem>>, vector<80x8xbf16>
    tpu.vector_store %arg10[%c0_68, %c0_69], %63 {strides = array<i32>} : memref<80x24xbf16, #tpu.memory_space<vmem>>, vector<80x8xbf16>,
    %65 = vector.extract_strided_slice %61 {offsets = [0, 1, 0], sizes = [10, 8, 8], strides = [1, 1, 1]} : vector<10x10x8xbf16> to vector<10x8x8xbf16>
    %66 = vector.shape_cast %65 : vector<10x8x8xbf16> to vector<80x8xbf16>
    %c0_70 = arith.constant 0 : index
    %c8_71 = arith.constant 8 : index
    %67 = vector.load %arg10[%c0_70, %c8_71] : memref<80x24xbf16, #tpu.memory_space<vmem>>, vector<80x8xbf16>
    tpu.vector_store %arg10[%c0_70, %c8_71], %66 {strides = array<i32>} : memref<80x24xbf16, #tpu.memory_space<vmem>>, vector<80x8xbf16>,
    %68 = vector.extract_strided_slice %61 {offsets = [0, 2, 0], sizes = [10, 8, 8], strides = [1, 1, 1]} : vector<10x10x8xbf16> to vector<10x8x8xbf16>
    %69 = vector.shape_cast %68 : vector<10x8x8xbf16> to vector<80x8xbf16>
    %c0_72 = arith.constant 0 : index
    %c16_73 = arith.constant 16 : index
    %70 = vector.load %arg10[%c0_72, %c16_73] : memref<80x24xbf16, #tpu.memory_space<vmem>>, vector<80x8xbf16>
    tpu.vector_store %arg10[%c0_72, %c16_73], %69 {strides = array<i32>} : memref<80x24xbf16, #tpu.memory_space<vmem>>, vector<80x8xbf16>,
    %c0_74 = arith.constant 0 : index
    %c0_75 = arith.constant 0 : index
    %71 = vector.load %arg10[%c0_74, %c0_75] : memref<80x24xbf16, #tpu.memory_space<vmem>>, vector<64x24xbf16>
    %c0_76 = arith.constant 0 : index
    %c0_77 = arith.constant 0 : index
    %c0_78 = arith.constant 0 : index
    %72 = vector.load %arg4[%c0_76, %c0_77, %c0_78] : memref<3x24x8xbf16, #tpu.memory_space<vmem>>, vector<1x24x8xbf16>
    %73 = vector.shape_cast %72 : vector<1x24x8xbf16> to vector<24x8xbf16>
    %cst_79 = arith.constant dense<0.000000e+00> : vector<64x8xf32>
    %74 = tpu.matmul %71, %73, %cst_79 {dimension_numbers = #tpu.dot_dimension_numbers<[1], [0], [0], [1], [0, 0, 1, 1], [], []>} : vector<64x24xbf16>, vector<24x8xbf16>, vector<64x8xf32> -> vector<64x8xf32>
    %c8_80 = arith.constant 8 : index
    %c0_81 = arith.constant 0 : index
    %75 = vector.load %arg10[%c8_80, %c0_81] : memref<80x24xbf16, #tpu.memory_space<vmem>>, vector<64x24xbf16>
    %c1_82 = arith.constant 1 : index
    %c0_83 = arith.constant 0 : index
    %c0_84 = arith.constant 0 : index
    %76 = vector.load %arg4[%c1_82, %c0_83, %c0_84] : memref<3x24x8xbf16, #tpu.memory_space<vmem>>, vector<1x24x8xbf16>
    %77 = vector.shape_cast %76 : vector<1x24x8xbf16> to vector<24x8xbf16>
    %cst_85 = arith.constant dense<0.000000e+00> : vector<64x8xf32>
    %78 = tpu.matmul %75, %77, %cst_85 {dimension_numbers = #tpu.dot_dimension_numbers<[1], [0], [0], [1], [0, 0, 1, 1], [], []>} : vector<64x24xbf16>, vector<24x8xbf16>, vector<64x8xf32> -> vector<64x8xf32>
    %79 = arith.addf %74, %78 : vector<64x8xf32>
    %c16_86 = arith.constant 16 : index
    %c0_87 = arith.constant 0 : index
    %80 = vector.load %arg10[%c16_86, %c0_87] : memref<80x24xbf16, #tpu.memory_space<vmem>>, vector<64x24xbf16>
    %c2_88 = arith.constant 2 : index
    %c0_89 = arith.constant 0 : index
    %c0_90 = arith.constant 0 : index
    %81 = vector.load %arg4[%c2_88, %c0_89, %c0_90] : memref<3x24x8xbf16, #tpu.memory_space<vmem>>, vector<1x24x8xbf16>
    %82 = vector.shape_cast %81 : vector<1x24x8xbf16> to vector<24x8xbf16>
    %cst_91 = arith.constant dense<0.000000e+00> : vector<64x8xf32>
    %83 = tpu.matmul %80, %82, %cst_91 {dimension_numbers = #tpu.dot_dimension_numbers<[1], [0], [0], [1], [0, 0, 1, 1], [], []>} : vector<64x24xbf16>, vector<24x8xbf16>, vector<64x8xf32> -> vector<64x8xf32>
    %84 = arith.addf %79, %83 : vector<64x8xf32>
    %c0_92 = arith.constant 0 : index
    %c0_93 = arith.constant 0 : index
    %85 = vector.load %arg5[%c0_92, %c0_93] : memref<1x8xf32, #tpu.memory_space<vmem>>, vector<1x8xf32>
    %86 = vector.broadcast %85 : vector<1x8xf32> to vector<64x8xf32>
    %87 = arith.addf %84, %86 : vector<64x8xf32>
    %cst_94 = arith.constant 0.000000e+00 : f32
    %88 = vector.broadcast %cst_94 : f32 to vector<64x8xf32>
    %89 = arith.maximumf %87, %88 : vector<64x8xf32>
    %90 = arith.truncf %89 : vector<64x8xf32> to vector<64x8xbf16>
    %c0_95 = arith.constant 0 : index
    %c0_96 = arith.constant 0 : index
    %c0_97 = arith.constant 0 : index
    %91 = vector.load %arg6[%c0_95, %c0_96, %c0_97] : memref<2x64x8xbf16, #tpu.memory_space<vmem>>, vector<1x64x8xbf16>
    %92 = vector.shape_cast %91 : vector<1x64x8xbf16> to vector<64x8xbf16>
    %93 = vector.shape_cast %90 : vector<64x8xbf16> to vector<1x64x8xbf16>
    tpu.vector_store %arg6[%c0_95, %c0_96, %c0_97], %93 {strides = array<i32>} : memref<2x64x8xbf16, #tpu.memory_space<vmem>>, vector<1x64x8xbf16>,
    %c1_98 = arith.constant 1 : index
    %c0_99 = arith.constant 0 : index
    %c0_100 = arith.constant 0 : index
    %c0_101 = arith.constant 0 : index
    %c0_102 = arith.constant 0 : index
    %94 = vector.load %arg1[%c1_98, %c0_99, %c0_100, %c0_101, %c0_102] : memref<2x8x2x8x8xbf16, #tpu.memory_space<vmem>>, vector<1x8x2x8x8xbf16>
    %95 = vector.shape_cast %94 : vector<1x8x2x8x8xbf16> to vector<8x2x8x8xbf16>
    %96 = arith.extf %95 : vector<8x2x8x8xbf16> to vector<8x2x8x8xf32>
    %97 = vector.extract_strided_slice %96 {offsets = [0, 0, 0, 0], sizes = [8, 1, 8, 8], strides = [1, 1, 1, 1]} : vector<8x2x8x8xf32> to vector<8x1x8x8xf32>
    %98 = vector.shape_cast %97 : vector<8x1x8x8xf32> to vector<8x8x8xf32>
    %99 = vector.extract_strided_slice %96 {offsets = [0, 1, 0, 0], sizes = [8, 1, 8, 8], strides = [1, 1, 1, 1]} : vector<8x2x8x8xf32> to vector<8x1x8x8xf32>
    %100 = vector.shape_cast %99 : vector<8x1x8x8xf32> to vector<8x8x8xf32>
    %101 = arith.maximumf %98, %100 : vector<8x8x8xf32>
    %102 = vector.extract_strided_slice %101 {offsets = [0, 0, 0], sizes = [8, 8, 4], strides = [1, 1, 1]} : vector<8x8x8xf32> to vector<8x8x4xf32>
    %103 = vector.extract_strided_slice %101 {offsets = [0, 0, 4], sizes = [8, 8, 4], strides = [1, 1, 1]} : vector<8x8x8xf32> to vector<8x8x4xf32>
    %104 = arith.maximumf %102, %103 : vector<8x8x4xf32>
    %105 = arith.truncf %104 : vector<8x8x4xf32> to vector<8x8x4xbf16>
    %c1_103 = arith.constant 1 : index
    %c1_104 = arith.constant 1 : index
    %c0_105 = arith.constant 0 : index
    %106 = vector.load %arg7[%c1_103, %c1_104, %c0_105] : memref<10x10x4xbf16, #tpu.memory_space<vmem>>, vector<8x8x4xbf16>
    tpu.vector_store %arg7[%c1_103, %c1_104, %c0_105], %105 {strides = array<i32>} : memref<10x10x4xbf16, #tpu.memory_space<vmem>>, vector<8x8x4xbf16>,
    %c0_106 = arith.constant 0 : index
    %c0_107 = arith.constant 0 : index
    %c0_108 = arith.constant 0 : index
    %107 = vector.load %arg7[%c0_106, %c0_107, %c0_108] : memref<10x10x4xbf16, #tpu.memory_space<vmem>>, vector<10x10x4xbf16>
    %108 = vector.extract_strided_slice %107 {offsets = [0, 0, 0], sizes = [10, 8, 4], strides = [1, 1, 1]} : vector<10x10x4xbf16> to vector<10x8x4xbf16>
    %109 = vector.shape_cast %108 : vector<10x8x4xbf16> to vector<80x4xbf16>
    %c0_109 = arith.constant 0 : index
    %c0_110 = arith.constant 0 : index
    %110 = vector.load %arg8[%c0_109, %c0_110] : memref<80x12xbf16, #tpu.memory_space<vmem>>, vector<80x4xbf16>
    tpu.vector_store %arg8[%c0_109, %c0_110], %109 {strides = array<i32>} : memref<80x12xbf16, #tpu.memory_space<vmem>>, vector<80x4xbf16>,
    %111 = vector.extract_strided_slice %107 {offsets = [0, 1, 0], sizes = [10, 8, 4], strides = [1, 1, 1]} : vector<10x10x4xbf16> to vector<10x8x4xbf16>
    %112 = vector.shape_cast %111 : vector<10x8x4xbf16> to vector<80x4xbf16>
    %c0_111 = arith.constant 0 : index
    %c4_112 = arith.constant 4 : index
    %113 = vector.load %arg8[%c0_111, %c4_112] : memref<80x12xbf16, #tpu.memory_space<vmem>>, vector<80x4xbf16>
    tpu.vector_store %arg8[%c0_111, %c4_112], %112 {strides = array<i32>} : memref<80x12xbf16, #tpu.memory_space<vmem>>, vector<80x4xbf16>,
    %114 = vector.extract_strided_slice %107 {offsets = [0, 2, 0], sizes = [10, 8, 4], strides = [1, 1, 1]} : vector<10x10x4xbf16> to vector<10x8x4xbf16>
    %115 = vector.shape_cast %114 : vector<10x8x4xbf16> to vector<80x4xbf16>
    %c0_113 = arith.constant 0 : index
    %c8_114 = arith.constant 8 : index
    %116 = vector.load %arg8[%c0_113, %c8_114] : memref<80x12xbf16, #tpu.memory_space<vmem>>, vector<80x4xbf16>
    tpu.vector_store %arg8[%c0_113, %c8_114], %115 {strides = array<i32>} : memref<80x12xbf16, #tpu.memory_space<vmem>>, vector<80x4xbf16>,
    %c0_115 = arith.constant 0 : index
    %c0_116 = arith.constant 0 : index
    %117 = vector.load %arg8[%c0_115, %c0_116] : memref<80x12xbf16, #tpu.memory_space<vmem>>, vector<64x12xbf16>
    %c0_117 = arith.constant 0 : index
    %c0_118 = arith.constant 0 : index
    %c0_119 = arith.constant 0 : index
    %118 = vector.load %arg2[%c0_117, %c0_118, %c0_119] : memref<3x12x8xbf16, #tpu.memory_space<vmem>>, vector<1x12x8xbf16>
    %119 = vector.shape_cast %118 : vector<1x12x8xbf16> to vector<12x8xbf16>
    %cst_120 = arith.constant dense<0.000000e+00> : vector<64x8xf32>
    %120 = tpu.matmul %117, %119, %cst_120 {dimension_numbers = #tpu.dot_dimension_numbers<[1], [0], [0], [1], [0, 0, 1, 1], [], []>} : vector<64x12xbf16>, vector<12x8xbf16>, vector<64x8xf32> -> vector<64x8xf32>
    %c8_121 = arith.constant 8 : index
    %c0_122 = arith.constant 0 : index
    %121 = vector.load %arg8[%c8_121, %c0_122] : memref<80x12xbf16, #tpu.memory_space<vmem>>, vector<64x12xbf16>
    %c1_123 = arith.constant 1 : index
    %c0_124 = arith.constant 0 : index
    %c0_125 = arith.constant 0 : index
    %122 = vector.load %arg2[%c1_123, %c0_124, %c0_125] : memref<3x12x8xbf16, #tpu.memory_space<vmem>>, vector<1x12x8xbf16>
    %123 = vector.shape_cast %122 : vector<1x12x8xbf16> to vector<12x8xbf16>
    %cst_126 = arith.constant dense<0.000000e+00> : vector<64x8xf32>
    %124 = tpu.matmul %121, %123, %cst_126 {dimension_numbers = #tpu.dot_dimension_numbers<[1], [0], [0], [1], [0, 0, 1, 1], [], []>} : vector<64x12xbf16>, vector<12x8xbf16>, vector<64x8xf32> -> vector<64x8xf32>
    %125 = arith.addf %120, %124 : vector<64x8xf32>
    %c16_127 = arith.constant 16 : index
    %c0_128 = arith.constant 0 : index
    %126 = vector.load %arg8[%c16_127, %c0_128] : memref<80x12xbf16, #tpu.memory_space<vmem>>, vector<64x12xbf16>
    %c2_129 = arith.constant 2 : index
    %c0_130 = arith.constant 0 : index
    %c0_131 = arith.constant 0 : index
    %127 = vector.load %arg2[%c2_129, %c0_130, %c0_131] : memref<3x12x8xbf16, #tpu.memory_space<vmem>>, vector<1x12x8xbf16>
    %128 = vector.shape_cast %127 : vector<1x12x8xbf16> to vector<12x8xbf16>
    %cst_132 = arith.constant dense<0.000000e+00> : vector<64x8xf32>
    %129 = tpu.matmul %126, %128, %cst_132 {dimension_numbers = #tpu.dot_dimension_numbers<[1], [0], [0], [1], [0, 0, 1, 1], [], []>} : vector<64x12xbf16>, vector<12x8xbf16>, vector<64x8xf32> -> vector<64x8xf32>
    %130 = arith.addf %125, %129 : vector<64x8xf32>
    %c0_133 = arith.constant 0 : index
    %c0_134 = arith.constant 0 : index
    %131 = vector.load %arg3[%c0_133, %c0_134] : memref<1x8xf32, #tpu.memory_space<vmem>>, vector<1x8xf32>
    %132 = vector.broadcast %131 : vector<1x8xf32> to vector<64x8xf32>
    %133 = arith.addf %130, %132 : vector<64x8xf32>
    %cst_135 = arith.constant 0.000000e+00 : f32
    %134 = vector.broadcast %cst_135 : f32 to vector<64x8xf32>
    %135 = arith.maximumf %133, %134 : vector<64x8xf32>
    %136 = vector.shape_cast %135 : vector<64x8xf32> to vector<8x8x8xf32>
    %137 = arith.truncf %136 : vector<8x8x8xf32> to vector<8x8x8xbf16>
    %c1_136 = arith.constant 1 : index
    %c1_137 = arith.constant 1 : index
    %c0_138 = arith.constant 0 : index
    %138 = vector.load %arg9[%c1_136, %c1_137, %c0_138] : memref<10x10x8xbf16, #tpu.memory_space<vmem>>, vector<8x8x8xbf16>
    tpu.vector_store %arg9[%c1_136, %c1_137, %c0_138], %137 {strides = array<i32>} : memref<10x10x8xbf16, #tpu.memory_space<vmem>>, vector<8x8x8xbf16>,
    %c0_139 = arith.constant 0 : index
    %c0_140 = arith.constant 0 : index
    %c0_141 = arith.constant 0 : index
    %139 = vector.load %arg9[%c0_139, %c0_140, %c0_141] : memref<10x10x8xbf16, #tpu.memory_space<vmem>>, vector<10x10x8xbf16>
    %140 = vector.extract_strided_slice %139 {offsets = [0, 0, 0], sizes = [10, 8, 8], strides = [1, 1, 1]} : vector<10x10x8xbf16> to vector<10x8x8xbf16>
    %141 = vector.shape_cast %140 : vector<10x8x8xbf16> to vector<80x8xbf16>
    %c0_142 = arith.constant 0 : index
    %c0_143 = arith.constant 0 : index
    %142 = vector.load %arg10[%c0_142, %c0_143] : memref<80x24xbf16, #tpu.memory_space<vmem>>, vector<80x8xbf16>
    tpu.vector_store %arg10[%c0_142, %c0_143], %141 {strides = array<i32>} : memref<80x24xbf16, #tpu.memory_space<vmem>>, vector<80x8xbf16>,
    %143 = vector.extract_strided_slice %139 {offsets = [0, 1, 0], sizes = [10, 8, 8], strides = [1, 1, 1]} : vector<10x10x8xbf16> to vector<10x8x8xbf16>
    %144 = vector.shape_cast %143 : vector<10x8x8xbf16> to vector<80x8xbf16>
    %c0_144 = arith.constant 0 : index
    %c8_145 = arith.constant 8 : index
    %145 = vector.load %arg10[%c0_144, %c8_145] : memref<80x24xbf16, #tpu.memory_space<vmem>>, vector<80x8xbf16>
    tpu.vector_store %arg10[%c0_144, %c8_145], %144 {strides = array<i32>} : memref<80x24xbf16, #tpu.memory_space<vmem>>, vector<80x8xbf16>,
    %146 = vector.extract_strided_slice %139 {offsets = [0, 2, 0], sizes = [10, 8, 8], strides = [1, 1, 1]} : vector<10x10x8xbf16> to vector<10x8x8xbf16>
    %147 = vector.shape_cast %146 : vector<10x8x8xbf16> to vector<80x8xbf16>
    %c0_146 = arith.constant 0 : index
    %c16_147 = arith.constant 16 : index
    %148 = vector.load %arg10[%c0_146, %c16_147] : memref<80x24xbf16, #tpu.memory_space<vmem>>, vector<80x8xbf16>
    tpu.vector_store %arg10[%c0_146, %c16_147], %147 {strides = array<i32>} : memref<80x24xbf16, #tpu.memory_space<vmem>>, vector<80x8xbf16>,
    %c0_148 = arith.constant 0 : index
    %c0_149 = arith.constant 0 : index
    %149 = vector.load %arg10[%c0_148, %c0_149] : memref<80x24xbf16, #tpu.memory_space<vmem>>, vector<64x24xbf16>
    %c0_150 = arith.constant 0 : index
    %c0_151 = arith.constant 0 : index
    %c0_152 = arith.constant 0 : index
    %150 = vector.load %arg4[%c0_150, %c0_151, %c0_152] : memref<3x24x8xbf16, #tpu.memory_space<vmem>>, vector<1x24x8xbf16>
    %151 = vector.shape_cast %150 : vector<1x24x8xbf16> to vector<24x8xbf16>
    %cst_153 = arith.constant dense<0.000000e+00> : vector<64x8xf32>
    %152 = tpu.matmul %149, %151, %cst_153 {dimension_numbers = #tpu.dot_dimension_numbers<[1], [0], [0], [1], [0, 0, 1, 1], [], []>} : vector<64x24xbf16>, vector<24x8xbf16>, vector<64x8xf32> -> vector<64x8xf32>
    %c8_154 = arith.constant 8 : index
    %c0_155 = arith.constant 0 : index
    %153 = vector.load %arg10[%c8_154, %c0_155] : memref<80x24xbf16, #tpu.memory_space<vmem>>, vector<64x24xbf16>
    %c1_156 = arith.constant 1 : index
    %c0_157 = arith.constant 0 : index
    %c0_158 = arith.constant 0 : index
    %154 = vector.load %arg4[%c1_156, %c0_157, %c0_158] : memref<3x24x8xbf16, #tpu.memory_space<vmem>>, vector<1x24x8xbf16>
    %155 = vector.shape_cast %154 : vector<1x24x8xbf16> to vector<24x8xbf16>
    %cst_159 = arith.constant dense<0.000000e+00> : vector<64x8xf32>
    %156 = tpu.matmul %153, %155, %cst_159 {dimension_numbers = #tpu.dot_dimension_numbers<[1], [0], [0], [1], [0, 0, 1, 1], [], []>} : vector<64x24xbf16>, vector<24x8xbf16>, vector<64x8xf32> -> vector<64x8xf32>
    %157 = arith.addf %152, %156 : vector<64x8xf32>
    %c16_160 = arith.constant 16 : index
    %c0_161 = arith.constant 0 : index
    %158 = vector.load %arg10[%c16_160, %c0_161] : memref<80x24xbf16, #tpu.memory_space<vmem>>, vector<64x24xbf16>
    %c2_162 = arith.constant 2 : index
    %c0_163 = arith.constant 0 : index
    %c0_164 = arith.constant 0 : index
    %159 = vector.load %arg4[%c2_162, %c0_163, %c0_164] : memref<3x24x8xbf16, #tpu.memory_space<vmem>>, vector<1x24x8xbf16>
    %160 = vector.shape_cast %159 : vector<1x24x8xbf16> to vector<24x8xbf16>
    %cst_165 = arith.constant dense<0.000000e+00> : vector<64x8xf32>
    %161 = tpu.matmul %158, %160, %cst_165 {dimension_numbers = #tpu.dot_dimension_numbers<[1], [0], [0], [1], [0, 0, 1, 1], [], []>} : vector<64x24xbf16>, vector<24x8xbf16>, vector<64x8xf32> -> vector<64x8xf32>
    %162 = arith.addf %157, %161 : vector<64x8xf32>
    %c0_166 = arith.constant 0 : index
    %c0_167 = arith.constant 0 : index
    %163 = vector.load %arg5[%c0_166, %c0_167] : memref<1x8xf32, #tpu.memory_space<vmem>>, vector<1x8xf32>
    %164 = vector.broadcast %163 : vector<1x8xf32> to vector<64x8xf32>
    %165 = arith.addf %162, %164 : vector<64x8xf32>
    %cst_168 = arith.constant 0.000000e+00 : f32
    %166 = vector.broadcast %cst_168 : f32 to vector<64x8xf32>
    %167 = arith.maximumf %165, %166 : vector<64x8xf32>
    %168 = arith.truncf %167 : vector<64x8xf32> to vector<64x8xbf16>
    %c1_169 = arith.constant 1 : index
    %c0_170 = arith.constant 0 : index
    %c0_171 = arith.constant 0 : index
    %169 = vector.load %arg6[%c1_169, %c0_170, %c0_171] : memref<2x64x8xbf16, #tpu.memory_space<vmem>>, vector<1x64x8xbf16>
    %170 = vector.shape_cast %169 : vector<1x64x8xbf16> to vector<64x8xbf16>
    %171 = vector.shape_cast %168 : vector<64x8xbf16> to vector<1x64x8xbf16>
    tpu.vector_store %arg6[%c1_169, %c0_170, %c0_171], %171 {strides = array<i32>} : memref<2x64x8xbf16, #tpu.memory_space<vmem>>, vector<1x64x8xbf16>,
    return
  }
  func.func @transform_0(%arg0: i32) -> (i32, i32, i32, i32, i32) {
    %c0_i32 = arith.constant 0 : i32
    %c0_i32_0 = arith.constant 0 : i32
    %c0_i32_1 = arith.constant 0 : i32
    %c0_i32_2 = arith.constant 0 : i32
    %c0_i32_3 = arith.constant 0 : i32
    return %arg0, %c0_i32, %c0_i32_0, %c0_i32_1, %c0_i32_2 : i32, i32, i32, i32, i32
  }
  func.func @transform_1(%arg0: i32) -> (i32, i32, i32) {
    %c0_i32 = arith.constant 0 : i32
    %c0_i32_0 = arith.constant 0 : i32
    %c0_i32_1 = arith.constant 0 : i32
    %c0_i32_2 = arith.constant 0 : i32
    return %c0_i32, %c0_i32_0, %c0_i32_1 : i32, i32, i32
  }
  func.func @transform_2(%arg0: i32) -> (i32, i32) {
    %c0_i32 = arith.constant 0 : i32
    %c0_i32_0 = arith.constant 0 : i32
    %c0_i32_1 = arith.constant 0 : i32
    return %c0_i32, %c0_i32_0 : i32, i32
  }
  func.func @transform_3(%arg0: i32) -> (i32, i32, i32) {
    %c0_i32 = arith.constant 0 : i32
    %c0_i32_0 = arith.constant 0 : i32
    %c0_i32_1 = arith.constant 0 : i32
    %c0_i32_2 = arith.constant 0 : i32
    return %c0_i32, %c0_i32_0, %c0_i32_1 : i32, i32, i32
  }
  func.func @transform_4(%arg0: i32) -> (i32, i32) {
    %c0_i32 = arith.constant 0 : i32
    %c0_i32_0 = arith.constant 0 : i32
    %c0_i32_1 = arith.constant 0 : i32
    return %c0_i32, %c0_i32_0 : i32, i32
  }
  func.func @transform_5(%arg0: i32) -> (i32, i32, i32) {
    %c0_i32 = arith.constant 0 : i32
    %c0_i32_0 = arith.constant 0 : i32
    %c0_i32_1 = arith.constant 0 : i32
    return %arg0, %c0_i32, %c0_i32_0 : i32, i32, i32
  }
}

</mosaic_0001>

<llo_original>
// kernel: tpu_custom_call.1
$region0: #{tpu_custom_call.1}
  #allocation0 [shape = 'u32[]', space=smem, size = 0x4, offset = 0x4, fixed_abs, tag = 'smem constant byte address 0x4 - core index']
  #allocation1 [shape = 'u32[144,128]{1,0:T(1,128)}', space=vmem, size = 0x12000, scoped, tag = 'internal scratch']
  #allocation2 [shape = 'bf16[10,10,4]{2,1,0:T(8,128)(2,1)}', space=vmem, size = 0xa000, scoped, tag = 'scratch operand']
  #allocation3 [shape = 'bf16[80,12]{1,0:T(16,128)(2,1)}', space=vmem, size = 0x5000, scoped, tag = 'scratch operand']
  #allocation4 [shape = 'bf16[10,10,8]{2,1,0:T(8,128)(2,1)}', space=vmem, size = 0xa000, scoped, tag = 'scratch operand']
  #allocation5 [shape = 'bf16[80,24]{1,0:T(16,128)(2,1)}', space=vmem, size = 0x5000, scoped, tag = 'scratch operand']
  %s0 = inlined_call_operand.hbm [shape: bf16[2,8,2,8,8], index: 0, kind: input, shape index: {}]
  %s1 = inlined_call_operand.vmem [shape: bf16[3,12,8], index: 1, kind: input, shape index: {}]
  %s2 = inlined_call_operand.vmem [shape: f32[1,8], index: 2, kind: input, shape index: {}]
  %s3 = inlined_call_operand.vmem [shape: bf16[3,24,8], index: 3, kind: input, shape index: {}]
  %s4 = inlined_call_operand.vmem [shape: f32[1,8], index: 4, kind: input, shape index: {}]
  %s5 = inlined_call_operand.vmem [shape: bf16[2,64,8], index: 5, kind: output, shape index: {}]
  %s6 = sld [smem:[#allocation0]]
  $region34: #{tpu_custom_call.1} parent=0
    _
  %s8 = ssub.s32 1, %s6
  %s9 = scalar_select 0, %s8, %s6
  $region1: #{tpu_custom_call.1} parent=0
    #allocation6 [shape = 'u8[65536]{0}', space=vmem, size = 0x10000, scoped, tag = 'input window, operand 0, single buffered']
    #allocation7 [shape = 's32[1]{0}', space=sflag, size = 0x4, scoped, tag = 'scoped memory for tpu_custom_call.1']
    %10 = vsyncpa [#allocation7], 0
    // Predicated region
    $region2: #{tpu_custom_call.1} parent=1 // pred_check
      _
    $region3: #{tpu_custom_call.1} parent=1 // pred_check_branch
      %12 = sbr.rel (0) target = $region5
    $region4: #{tpu_custom_call.1} parent=1 // pred_region
      %s14 = ssub.s32 2048, 2048
      %15 = vsyncadd [#allocation7], %s14
      %s16 = sshll.u32 [#allocation6], 4
      %s17 = int_to_ptr.vmem [resolvable:$true] %s16
      %22 = dma.hbm_to_vmem [thread:$0]  %s0, 2048, %s17, [#allocation7], 64, 64, 4
    $region5: #{tpu_custom_call.1} parent=1 // pred_fallthru
      _
    // Predicated region
    $region6: #{tpu_custom_call.1} parent=1 // pred_check
      _
    $region7: #{tpu_custom_call.1} parent=1 // pred_check_branch
      %24 = sbr.rel (0) target = $region9
    $region8: #{tpu_custom_call.1} parent=1 // pred_region
      _
    $region9: #{tpu_custom_call.1} parent=1 // pred_fallthru
      _
    // Predicated region
    $region10: #{tpu_custom_call.1} parent=1 // pred_check
      _
    $region11: #{tpu_custom_call.1} parent=1 // pred_check_branch
      %26 = sbr.rel (0) target = $region13
    $region12: #{tpu_custom_call.1} parent=1 // pred_region
      _
    $region13: #{tpu_custom_call.1} parent=1 // pred_fallthru
      _
    // Predicated region
    $region14: #{tpu_custom_call.1} parent=1 // pred_check
      _
    $region15: #{tpu_custom_call.1} parent=1 // pred_check_branch
      %28 = sbr.rel (0) target = $region17
    $region16: #{tpu_custom_call.1} parent=1 // pred_region
      _
    $region17: #{tpu_custom_call.1} parent=1 // pred_fallthru
      _
    // Predicated region
    $region18: #{tpu_custom_call.1} parent=1 // pred_check
      _
    $region19: #{tpu_custom_call.1} parent=1 // pred_check_branch
      %30 = sbr.rel (0) target = $region21
    $region20: #{tpu_custom_call.1} parent=1 // pred_region
      _
    $region21: #{tpu_custom_call.1} parent=1 // pred_fallthru
      _
    // Predicated region
    $region22: #{tpu_custom_call.1} parent=1 // pred_check
      _
    $region23: #{tpu_custom_call.1} parent=1 // pred_check_branch
      %32 = sbr.rel (0) target = $region25
    $region24: #{tpu_custom_call.1} parent=1 // pred_region
      %33 = dma.done [#allocation7], 2048
    $region25: #{tpu_custom_call.1} parent=1 // pred_fallthru
      _
    %vm35 = vcmask 27648
    %36 = vst.msk [vmem:[#allocation2] sm:$0xf] %vm35, 0
    %vm37 = vcmask 24576
    %38 = vst.msk [vmem:[#allocation2 + $0x4] sm:$0x1] %vm37, 0
    %s39 = scalar_lea.vmem [#allocation2], 72
    %40 = vst.msk [vmem:[%s39] sm:$0xf] %vm35, 0
    %41 = vst.msk [vmem:[%s39 + $0x4] sm:$0x1] %vm37, 0
    %vm42 = vcmask 24576
    %vm43 = vsmask.f32 256
    %vm44 = vmand %vm42, %vm43
    %v45 = vld [vmem:[#allocation2] sm:$0x1]
    %v46 = vsel %vm44, 0, %v45
    %47 = vst [vmem:[#allocation2] sm:$0x1] %v46
    %v48 = vld [vmem:[#allocation2 + $0x8] sm:$0x1]
    %v49 = vsel %vm44, 0, %v48
    %50 = vst [vmem:[#allocation2 + $0x8] sm:$0x1] %v49
    %v51 = vld [vmem:[#allocation2 + $0x10] sm:$0x1]
    %v52 = vsel %vm44, 0, %v51
    %53 = vst [vmem:[#allocation2 + $0x10] sm:$0x1] %v52
    %v54 = vld [vmem:[#allocation2 + $0x18] sm:$0x1]
    %v55 = vsel %vm44, 0, %v54
    %56 = vst [vmem:[#allocation2 + $0x18] sm:$0x1] %v55
    %v57 = vld [vmem:[#allocation2 + $0x20] sm:$0x1]
    %v58 = vsel %vm44, 0, %v57
    %59 = vst [vmem:[#allocation2 + $0x20] sm:$0x1] %v58
    %v60 = vld [vmem:[#allocation2 + $0x28] sm:$0x1]
    %v61 = vsel %vm44, 0, %v60
    %62 = vst [vmem:[#allocation2 + $0x28] sm:$0x1] %v61
    %v63 = vld [vmem:[#allocation2 + $0x30] sm:$0x1]
    %v64 = vsel %vm44, 0, %v63
    %65 = vst [vmem:[#allocation2 + $0x30] sm:$0x1] %v64
    %v66 = vld [vmem:[#allocation2 + $0x38] sm:$0x1]
    %v67 = vsel %vm44, 0, %v66
    %68 = vst [vmem:[#allocation2 + $0x38] sm:$0x1] %v67
    %v69 = vld [vmem:[#allocation2 + $0x40] sm:$0x1]
    %v70 = vsel %vm44, 0, %v69
    %71 = vst [vmem:[#allocation2 + $0x40] sm:$0x1] %v70
    %v72 = vld [vmem:[#allocation2 + $0x48] sm:$0x1]
    %v73 = vsel %vm44, 0, %v72
    %74 = vst [vmem:[#allocation2 + $0x48] sm:$0x1] %v73
    %vm75 = vsmask.f32 7938
    %vm76 = vmand %vm42, %vm75
    %v77 = vld [vmem:[#allocation2 + $0x4] sm:$0x1]
    %v78 = vsel %vm76, 0, %v77
    %79 = vst [vmem:[#allocation2 + $0x4] sm:$0x1] %v78
    %v80 = vld [vmem:[#allocation2 + $0xc] sm:$0x1]
    %v81 = vsel %vm76, 0, %v80
    %82 = vst [vmem:[#allocation2 + $0xc] sm:$0x1] %v81
    %v83 = vld [vmem:[#allocation2 + $0x14] sm:$0x1]
    %v84 = vsel %vm76, 0, %v83
    %85 = vst [vmem:[#allocation2 + $0x14] sm:$0x1] %v84
    %v86 = vld [vmem:[#allocation2 + $0x1c] sm:$0x1]
    %v87 = vsel %vm76, 0, %v86
    %88 = vst [vmem:[#allocation2 + $0x1c] sm:$0x1] %v87
    %v89 = vld [vmem:[#allocation2 + $0x24] sm:$0x1]
    %v90 = vsel %vm76, 0, %v89
    %91 = vst [vmem:[#allocation2 + $0x24] sm:$0x1] %v90
    %v92 = vld [vmem:[#allocation2 + $0x2c] sm:$0x1]
    %v93 = vsel %vm76, 0, %v92
    %94 = vst [vmem:[#allocation2 + $0x2c] sm:$0x1] %v93
    %v95 = vld [vmem:[#allocation2 + $0x34] sm:$0x1]
    %v96 = vsel %vm76, 0, %v95
    %97 = vst [vmem:[#allocation2 + $0x34] sm:$0x1] %v96
    %v98 = vld [vmem:[#allocation2 + $0x3c] sm:$0x1]
    %v99 = vsel %vm76, 0, %v98
    %100 = vst [vmem:[#allocation2 + $0x3c] sm:$0x1] %v99
    %v101 = vld [vmem:[#allocation2 + $0x44] sm:$0x1]
    %v102 = vsel %vm76, 0, %v101
    %103 = vst [vmem:[#allocation2 + $0x44] sm:$0x1] %v102
    %v104 = vld [vmem:[#allocation2 + $0x4c] sm:$0x1]
    %v105 = vsel %vm76, 0, %v104
    %106 = vst [vmem:[#allocation2 + $0x4c] sm:$0x1] %v105
    %vm107 = vcmask 60416
    %108 = vst.msk [vmem:[#allocation4] sm:$0xf] %vm107, 0
    %vm109 = vcmask 57344
    %110 = vst.msk [vmem:[#allocation4 + $0x4] sm:$0x1] %vm109, 0
    %s111 = scalar_lea.vmem [#allocation4], 72
    %112 = vst.msk [vmem:[%s111] sm:$0xf] %vm107, 0
    %113 = vst.msk [vmem:[%s111 + $0x4] sm:$0x1] %vm109, 0
    %vm114 = vcmask 57344
    %vm115 = vmand %vm114, %vm43
    %v116 = vld [vmem:[#allocation4] sm:$0x1]
    %v117 = vsel %vm115, 0, %v116
    %118 = vst [vmem:[#allocation4] sm:$0x1] %v117
    %v119 = vld [vmem:[#allocation4 + $0x8] sm:$0x1]
    %v120 = vsel %vm115, 0, %v119
    %121 = vst [vmem:[#allocation4 + $0x8] sm:$0x1] %v120
    %v122 = vld [vmem:[#allocation4 + $0x10] sm:$0x1]
    %v123 = vsel %vm115, 0, %v122
    %124 = vst [vmem:[#allocation4 + $0x10] sm:$0x1] %v123
    %v125 = vld [vmem:[#allocation4 + $0x18] sm:$0x1]
    %v126 = vsel %vm115, 0, %v125
    %127 = vst [vmem:[#allocation4 + $0x18] sm:$0x1] %v126
    %v128 = vld [vmem:[#allocation4 + $0x20] sm:$0x1]
    %v129 = vsel %vm115, 0, %v128
    %130 = vst [vmem:[#allocation4 + $0x20] sm:$0x1] %v129
    %v131 = vld [vmem:[#allocation4 + $0x28] sm:$0x1]
    %v132 = vsel %vm115, 0, %v131
    %133 = vst [vmem:[#allocation4 + $0x28] sm:$0x1] %v132
    %v134 = vld [vmem:[#allocation4 + $0x30] sm:$0x1]
    %v135 = vsel %vm115, 0, %v134
    %136 = vst [vmem:[#allocation4 + $0x30] sm:$0x1] %v135
    %v137 = vld [vmem:[#allocation4 + $0x38] sm:$0x1]
    %v138 = vsel %vm115, 0, %v137
    %139 = vst [vmem:[#allocation4 + $0x38] sm:$0x1] %v138
    %v140 = vld [vmem:[#allocation4 + $0x40] sm:$0x1]
    %v141 = vsel %vm115, 0, %v140
    %142 = vst [vmem:[#allocation4 + $0x40] sm:$0x1] %v141
    %v143 = vld [vmem:[#allocation4 + $0x48] sm:$0x1]
    %v144 = vsel %vm115, 0, %v143
    %145 = vst [vmem:[#allocation4 + $0x48] sm:$0x1] %v144
    %vm146 = vmand %vm114, %vm75
    %v147 = vld [vmem:[#allocation4 + $0x4] sm:$0x1]
    %v148 = vsel %vm146, 0, %v147
    %149 = vst [vmem:[#allocation4 + $0x4] sm:$0x1] %v148
    %v150 = vld [vmem:[#allocation4 + $0xc] sm:$0x1]
    %v151 = vsel %vm146, 0, %v150
    %152 = vst [vmem:[#allocation4 + $0xc] sm:$0x1] %v151
    %v153 = vld [vmem:[#allocation4 + $0x14] sm:$0x1]
    %v154 = vsel %vm146, 0, %v153
    %155 = vst [vmem:[#allocation4 + $0x14] sm:$0x1] %v154
    %v156 = vld [vmem:[#allocation4 + $0x1c] sm:$0x1]
    %v157 = vsel %vm146, 0, %v156
    %158 = vst [vmem:[#allocation4 + $0x1c] sm:$0x1] %v157
    %v159 = vld [vmem:[#allocation4 + $0x24] sm:$0x1]
    %v160 = vsel %vm146, 0, %v159
    %161 = vst [vmem:[#allocation4 + $0x24] sm:$0x1] %v160
    %v162 = vld [vmem:[#allocation4 + $0x2c] sm:$0x1]
    %v163 = vsel %vm146, 0, %v162
    %164 = vst [vmem:[#allocation4 + $0x2c] sm:$0x1] %v163
    %v165 = vld [vmem:[#allocation4 + $0x34] sm:$0x1]
    %v166 = vsel %vm146, 0, %v165
    %167 = vst [vmem:[#allocation4 + $0x34] sm:$0x1] %v166
    %v168 = vld [vmem:[#allocation4 + $0x3c] sm:$0x1]
    %v169 = vsel %vm146, 0, %v168
    %170 = vst [vmem:[#allocation4 + $0x3c] sm:$0x1] %v169
    %v171 = vld [vmem:[#allocation4 + $0x44] sm:$0x1]
    %v172 = vsel %vm146, 0, %v171
    %173 = vst [vmem:[#allocation4 + $0x44] sm:$0x1] %v172
    %v174 = vld [vmem:[#allocation4 + $0x4c] sm:$0x1]
    %v175 = vsel %vm146, 0, %v174
    %176 = vst [vmem:[#allocation4 + $0x4c] sm:$0x1] %v175
    %v177 = vld [vmem:[#allocation6] sm:$0xf]
    %v178 = vld [vmem:[#allocation6 + $0x4] sm:$0xf]
    %v179 = vld [vmem:[#allocation6 + $0x8] sm:$0xf]
    %v180 = vld [vmem:[#allocation6 + $0xc] sm:$0xf]
    %v181 = vld [vmem:[#allocation6 + $0x10] sm:$0xf]
    %v182 = vld [vmem:[#allocation6 + $0x14] sm:$0xf]
    %v183 = vld [vmem:[#allocation6 + $0x18] sm:$0xf]
    %v184 = vld [vmem:[#allocation6 + $0x1c] sm:$0xf]
    %v185 = vld [vmem:[#allocation6 + $0x20] sm:$0xf]
    %v186 = vld [vmem:[#allocation6 + $0x24] sm:$0xf]
    %v187 = vld [vmem:[#allocation6 + $0x28] sm:$0xf]
    %v188 = vld [vmem:[#allocation6 + $0x2c] sm:$0xf]
    %v189 = vld [vmem:[#allocation6 + $0x30] sm:$0xf]
    %v190 = vld [vmem:[#allocation6 + $0x34] sm:$0xf]
    %v191 = vld [vmem:[#allocation6 + $0x38] sm:$0xf]
    %v192 = vld [vmem:[#allocation6 + $0x3c] sm:$0xf]
    %v193 = vunpack.c.l.bf16 %v177
    %v194 = vunpack.c.l.bf16 %v178
    %v195 = vunpack.c.l.bf16 %v179
    %v196 = vunpack.c.l.bf16 %v180
    %v197 = vunpack.c.l.bf16 %v181
    %v198 = vunpack.c.l.bf16 %v182
    %v199 = vunpack.c.l.bf16 %v183
    %v200 = vunpack.c.l.bf16 %v184
    %v201 = vunpack.c.l.bf16 %v185
    %v202 = vunpack.c.l.bf16 %v186
    %v203 = vunpack.c.l.bf16 %v187
    %v204 = vunpack.c.l.bf16 %v188
    %v205 = vunpack.c.l.bf16 %v189
    %v206 = vunpack.c.l.bf16 %v190
    %v207 = vunpack.c.l.bf16 %v191
    %v208 = vunpack.c.l.bf16 %v192
    %v209 = vmax.f32 %v193, %v194
    %v210 = vmax.f32 %v195, %v196
    %v211 = vmax.f32 %v197, %v198
    %v212 = vmax.f32 %v199, %v200
    %v213 = vmax.f32 %v201, %v202
    %v214 = vmax.f32 %v203, %v204
    %v215 = vmax.f32 %v205, %v206
    %v216 = vmax.f32 %v207, %v208
    %225 = vrot.lane.b32.xlu0 %v209, 124
    %v226 = vpop.permute.xlu0 %225
    %227 = vrot.lane.b32.xlu0 %v210, 124
    %v228 = vpop.permute.xlu0 %227
    %229 = vrot.lane.b32.xlu0 %v211, 124
    %v230 = vpop.permute.xlu0 %229
    %231 = vrot.lane.b32.xlu0 %v212, 124
    %v232 = vpop.permute.xlu0 %231
    %233 = vrot.lane.b32.xlu0 %v213, 124
    %v234 = vpop.permute.xlu0 %233
    %235 = vrot.lane.b32.xlu0 %v214, 124
    %v236 = vpop.permute.xlu0 %235
    %237 = vrot.lane.b32.xlu0 %v215, 124
    %v238 = vpop.permute.xlu0 %237
    %239 = vrot.lane.b32.xlu0 %v216, 124
    %v240 = vpop.permute.xlu0 %239
    %v249 = vmax.f32 %v209, %v226
    %v250 = vmax.f32 %v210, %v228
    %v251 = vmax.f32 %v211, %v230
    %v252 = vmax.f32 %v212, %v232
    %v253 = vmax.f32 %v213, %v234
    %v254 = vmax.f32 %v214, %v236
    %v255 = vmax.f32 %v215, %v238
    %v256 = vmax.f32 %v216, %v240
    %v257 = vpack.c.bf16 %v249, %v249
    %v258 = vpack.c.bf16 %v250, %v250
    %v259 = vpack.c.bf16 %v251, %v251
    %v260 = vpack.c.bf16 %v252, %v252
    %v261 = vpack.c.bf16 %v253, %v253
    %v262 = vpack.c.bf16 %v254, %v254
    %v263 = vpack.c.bf16 %v255, %v255
    %v264 = vpack.c.bf16 %v256, %v256
    %v273 = vunpack.c.l.b16 %v257
    %v274 = vunpack.c.l.b16 %v258
    %v275 = vunpack.c.l.b16 %v259
    %v276 = vunpack.c.l.b16 %v260
    %v277 = vunpack.c.l.b16 %v261
    %v278 = vunpack.c.l.b16 %v262
    %v279 = vunpack.c.l.b16 %v263
    %v280 = vunpack.c.l.b16 %v264
    %v281 = vpack.c.b16 %v273, %v273
    %v282 = vpack.c.b16 %v274, %v274
    %v283 = vpack.c.b16 %v275, %v275
    %v284 = vpack.c.b16 %v276, %v276
    %v285 = vpack.c.b16 %v277, %v277
    %v286 = vpack.c.b16 %v278, %v278
    %v287 = vpack.c.b16 %v279, %v279
    %v288 = vpack.c.b16 %v280, %v280
    %v290 = vshrl.u32 %v281, 16
    %v292 = vrot.slane %v290, 7
    %v293 = vshll.u32 %v281, 16
    %v295 = vor.u32 %v292, %v293
    %v296 = vrot.slane %v292, 4
    %v298 = vshrl.u32 %v282, 16
    %v300 = vrot.slane %v298, 7
    %v301 = vshll.u32 %v282, 16
    %v303 = vor.u32 %v300, %v301
    %v304 = vrot.slane %v300, 4
    %v306 = vshrl.u32 %v283, 16
    %v308 = vrot.slane %v306, 7
    %v309 = vshll.u32 %v283, 16
    %v311 = vor.u32 %v308, %v309
    %v312 = vrot.slane %v308, 4
    %v314 = vshrl.u32 %v284, 16
    %v316 = vrot.slane %v314, 7
    %v317 = vshll.u32 %v284, 16
    %v319 = vor.u32 %v316, %v317
    %v320 = vrot.slane %v316, 4
    %v322 = vshrl.u32 %v285, 16
    %v324 = vrot.slane %v322, 7
    %v325 = vshll.u32 %v285, 16
    %v327 = vor.u32 %v324, %v325
    %v328 = vrot.slane %v324, 4
    %v330 = vshrl.u32 %v286, 16
    %v332 = vrot.slane %v330, 7
    %v333 = vshll.u32 %v286, 16
    %v335 = vor.u32 %v332, %v333
    %v336 = vrot.slane %v332, 4
    %v338 = vshrl.u32 %v287, 16
    %v340 = vrot.slane %v338, 7
    %v341 = vshll.u32 %v287, 16
    %v343 = vor.u32 %v340, %v341
    %v344 = vrot.slane %v340, 4
    %v346 = vshrl.u32 %v288, 16
    %v348 = vrot.slane %v346, 7
    %v349 = vshll.u32 %v288, 16
    %v351 = vor.u32 %v348, %v349
    %v352 = vrot.slane %v348, 4
    %s369 = scalar_lea.vmem [#allocation2], 8
    %vm370 = vcmask 27648
    %vm371 = vmand %vm370, %vm75
    %v372 = vld [vmem:[%s369] sm:$0xf]
    %v373 = vsel %vm371, %v295, %v372
    %374 = vst [vmem:[%s369] sm:$0xf] %v373
    %v375 = vld [vmem:[%s369 + $0x4] sm:$0x1]
    %v376 = vsel %vm44, %v296, %v375
    %377 = vst [vmem:[%s369 + $0x4] sm:$0x1] %v376
    %v378 = vld [vmem:[%s369 + $0x8] sm:$0xf]
    %v379 = vsel %vm371, %v303, %v378
    %380 = vst [vmem:[%s369 + $0x8] sm:$0xf] %v379
    %v381 = vld [vmem:[%s369 + $0xc] sm:$0x1]
    %v382 = vsel %vm44, %v304, %v381
    %383 = vst [vmem:[%s369 + $0xc] sm:$0x1] %v382
    %v384 = vld [vmem:[%s369 + $0x10] sm:$0xf]
    %v385 = vsel %vm371, %v311, %v384
    %386 = vst [vmem:[%s369 + $0x10] sm:$0xf] %v385
    %v387 = vld [vmem:[%s369 + $0x14] sm:$0x1]
    %v388 = vsel %vm44, %v312, %v387
    %389 = vst [vmem:[%s369 + $0x14] sm:$0x1] %v388
    %v390 = vld [vmem:[%s369 + $0x18] sm:$0xf]
    %v391 = vsel %vm371, %v319, %v390
    %392 = vst [vmem:[%s369 + $0x18] sm:$0xf] %v391
    %v393 = vld [vmem:[%s369 + $0x1c] sm:$0x1]
    %v394 = vsel %vm44, %v320, %v393
    %395 = vst [vmem:[%s369 + $0x1c] sm:$0x1] %v394
    %v396 = vld [vmem:[%s369 + $0x20] sm:$0xf]
    %v397 = vsel %vm371, %v327, %v396
    %398 = vst [vmem:[%s369 + $0x20] sm:$0xf] %v397
    %v399 = vld [vmem:[%s369 + $0x24] sm:$0x1]
    %v400 = vsel %vm44, %v328, %v399
    %401 = vst [vmem:[%s369 + $0x24] sm:$0x1] %v400
    %v402 = vld [vmem:[%s369 + $0x28] sm:$0xf]
    %v403 = vsel %vm371, %v335, %v402
    %404 = vst [vmem:[%s369 + $0x28] sm:$0xf] %v403
    %v405 = vld [vmem:[%s369 + $0x2c] sm:$0x1]
    %v406 = vsel %vm44, %v336, %v405
    %407 = vst [vmem:[%s369 + $0x2c] sm:$0x1] %v406
    %v408 = vld [vmem:[%s369 + $0x30] sm:$0xf]
    %v409 = vsel %vm371, %v343, %v408
    %410 = vst [vmem:[%s369 + $0x30] sm:$0xf] %v409
    %v411 = vld [vmem:[%s369 + $0x34] sm:$0x1]
    %v412 = vsel %vm44, %v344, %v411
    %413 = vst [vmem:[%s369 + $0x34] sm:$0x1] %v412
    %v414 = vld [vmem:[%s369 + $0x38] sm:$0xf]
    %v415 = vsel %vm371, %v351, %v414
    %416 = vst [vmem:[%s369 + $0x38] sm:$0xf] %v415
    %v417 = vld [vmem:[%s369 + $0x3c] sm:$0x1]
    %v418 = vsel %vm44, %v352, %v417
    %419 = vst [vmem:[%s369 + $0x3c] sm:$0x1] %v418
    %v420 = vld [vmem:[#allocation2] sm:$0xf]
    %v421 = vld [vmem:[#allocation2 + $0x4] sm:$0x1]
    %v422 = vld [vmem:[#allocation2 + $0x8] sm:$0xf]
    %v423 = vld [vmem:[#allocation2 + $0xc] sm:$0x1]
    %v424 = vld [vmem:[#allocation2 + $0x10] sm:$0xf]
    %v425 = vld [vmem:[#allocation2 + $0x14] sm:$0x1]
    %v426 = vld [vmem:[#allocation2 + $0x18] sm:$0xf]
    %v427 = vld [vmem:[#allocation2 + $0x1c] sm:$0x1]
    %v428 = vld [vmem:[#allocation2 + $0x20] sm:$0xf]
    %v429 = vld [vmem:[#allocation2 + $0x24] sm:$0x1]
    %v430 = vld [vmem:[#allocation2 + $0x28] sm:$0xf]
    %v431 = vld [vmem:[#allocation2 + $0x2c] sm:$0x1]
    %v432 = vld [vmem:[#allocation2 + $0x30] sm:$0xf]
    %v433 = vld [vmem:[#allocation2 + $0x34] sm:$0x1]
    %v434 = vld [vmem:[#allocation2 + $0x38] sm:$0xf]
    %v435 = vld [vmem:[#allocation2 + $0x3c] sm:$0x1]
    %v436 = vld [vmem:[#allocation2 + $0x40] sm:$0xf]
    %v437 = vld [vmem:[#allocation2 + $0x44] sm:$0x1]
    %v438 = vld [vmem:[#allocation2 + $0x48] sm:$0xf]
    %v439 = vld [vmem:[#allocation2 + $0x4c] sm:$0x1]
    %v450 = vunpack.c.l.b16 %v420
    %v451 = vunpack.c.l.b16 %v422
    %v452 = vunpack.c.l.b16 %v424
    %v453 = vunpack.c.l.b16 %v426
    %v454 = vunpack.c.l.b16 %v428
    %v455 = vunpack.c.l.b16 %v430
    %v456 = vunpack.c.l.b16 %v432
    %v457 = vunpack.c.l.b16 %v434
    %v458 = vunpack.c.l.b16 %v436
    %v459 = vunpack.c.l.b16 %v438
    %v460 = vpack.c.b16 %v451, %v450
    %v461 = vpack.c.b16 %v453, %v452
    %v462 = vpack.c.b16 %v455, %v454
    %v463 = vpack.c.b16 %v457, %v456
    %v464 = vpack.c.b16 %v459, %v458
    %vm470 = vcmask 31744
    %471 = vst.msk [vmem:[#allocation3] sm:$0xff] %vm470, %v460
    %472 = vst.msk [vmem:[#allocation3 + $0x8] sm:$0xff] %vm470, %v461
    %473 = vst.msk [vmem:[#allocation3 + $0x10] sm:$0xff] %vm470, %v462
    %474 = vst.msk [vmem:[#allocation3 + $0x18] sm:$0xff] %vm470, %v463
    %475 = vst.msk [vmem:[#allocation3 + $0x20] sm:$0xff] %vm470, %v464
    %vm476 = vsmask.f32 3328
    %vm477 = vsmask.f32 7440
    %vm478 = vmor %vm476, %vm477
    %v480 = vshrl.u32 %v420, 16
    %v482 = vrot.slane %v480, 4
    %v483 = vshll.u32 %v420, 16
    %v485 = vrot.slane %v483, 5
    %v486 = vor.u32 %v482, %v485
    %v487 = vrot.slane %v486, 4
    %v489 = vshll.u32 %v421, 16
    %v491 = vrot.slane %v489, 5
    %v492 = vsel %vm478, %v487, %v491
    %v494 = vshrl.u32 %v422, 16
    %v496 = vrot.slane %v494, 4
    %v497 = vshll.u32 %v422, 16
    %v499 = vrot.slane %v497, 5
    %v500 = vor.u32 %v496, %v499
    %v501 = vrot.slane %v500, 4
    %v503 = vshll.u32 %v423, 16
    %v505 = vrot.slane %v503, 5
    %v506 = vsel %vm478, %v501, %v505
    %v508 = vshrl.u32 %v424, 16
    %v510 = vrot.slane %v508, 4
    %v511 = vshll.u32 %v424, 16
    %v513 = vrot.slane %v511, 5
    %v514 = vor.u32 %v510, %v513
    %v515 = vrot.slane %v514, 4
    %v517 = vshll.u32 %v425, 16
    %v519 = vrot.slane %v517, 5
    %v520 = vsel %vm478, %v515, %v519
    %v522 = vshrl.u32 %v426, 16
    %v524 = vrot.slane %v522, 4
    %v525 = vshll.u32 %v426, 16
    %v527 = vrot.slane %v525, 5
    %v528 = vor.u32 %v524, %v527
    %v529 = vrot.slane %v528, 4
    %v531 = vshll.u32 %v427, 16
    %v533 = vrot.slane %v531, 5
    %v534 = vsel %vm478, %v529, %v533
    %v536 = vshrl.u32 %v428, 16
    %v538 = vrot.slane %v536, 4
    %v539 = vshll.u32 %v428, 16
    %v541 = vrot.slane %v539, 5
    %v542 = vor.u32 %v538, %v541
    %v543 = vrot.slane %v542, 4
    %v545 = vshll.u32 %v429, 16
    %v547 = vrot.slane %v545, 5
    %v548 = vsel %vm478, %v543, %v547
    %v550 = vshrl.u32 %v430, 16
    %v552 = vrot.slane %v550, 4
    %v553 = vshll.u32 %v430, 16
    %v555 = vrot.slane %v553, 5
    %v556 = vor.u32 %v552, %v555
    %v557 = vrot.slane %v556, 4
    %v559 = vshll.u32 %v431, 16
    %v561 = vrot.slane %v559, 5
    %v562 = vsel %vm478, %v557, %v561
    %v564 = vshrl.u32 %v432, 16
    %v566 = vrot.slane %v564, 4
    %v567 = vshll.u32 %v432, 16
    %v569 = vrot.slane %v567, 5
    %v570 = vor.u32 %v566, %v569
    %v571 = vrot.slane %v570, 4
    %v573 = vshll.u32 %v433, 16
    %v575 = vrot.slane %v573, 5
    %v576 = vsel %vm478, %v571, %v575
    %v578 = vshrl.u32 %v434, 16
    %v580 = vrot.slane %v578, 4
    %v581 = vshll.u32 %v434, 16
    %v583 = vrot.slane %v581, 5
    %v584 = vor.u32 %v580, %v583
    %v585 = vrot.slane %v584, 4
    %v587 = vshll.u32 %v435, 16
    %v589 = vrot.slane %v587, 5
    %v590 = vsel %vm478, %v585, %v589
    %v592 = vshrl.u32 %v436, 16
    %v594 = vrot.slane %v592, 4
    %v595 = vshll.u32 %v436, 16
    %v597 = vrot.slane %v595, 5
    %v598 = vor.u32 %v594, %v597
    %v599 = vrot.slane %v598, 4
    %v601 = vshll.u32 %v437, 16
    %v603 = vrot.slane %v601, 5
    %v604 = vsel %vm478, %v599, %v603
    %v606 = vshrl.u32 %v438, 16
    %v608 = vrot.slane %v606, 4
    %v609 = vshll.u32 %v438, 16
    %v611 = vrot.slane %v609, 5
    %v612 = vor.u32 %v608, %v611
    %v613 = vrot.slane %v612, 4
    %v615 = vshll.u32 %v439, 16
    %v617 = vrot.slane %v615, 5
    %v618 = vsel %vm478, %v613, %v617
    %v619 = vunpack.c.l.b16 %v492
    %v620 = vunpack.c.l.b16 %v506
    %v621 = vunpack.c.l.b16 %v520
    %v622 = vunpack.c.l.b16 %v534
    %v623 = vunpack.c.l.b16 %v548
    %v624 = vunpack.c.l.b16 %v562
    %v625 = vunpack.c.l.b16 %v576
    %v626 = vunpack.c.l.b16 %v590
    %v627 = vunpack.c.l.b16 %v604
    %v628 = vunpack.c.l.b16 %v618
    %v629 = vpack.c.b16 %v620, %v619
    %v630 = vpack.c.b16 %v622, %v621
    %v631 = vpack.c.b16 %v624, %v623
    %v632 = vpack.c.b16 %v626, %v625
    %v633 = vpack.c.b16 %v628, %v627
    %634 = vrot.lane.b32.xlu0 %v629, 4
    %v635 = vpop.permute.xlu0 %634
    %636 = vrot.lane.b32.xlu0 %v630, 4
    %v637 = vpop.permute.xlu0 %636
    %638 = vrot.lane.b32.xlu0 %v631, 4
    %v639 = vpop.permute.xlu0 %638
    %640 = vrot.lane.b32.xlu0 %v632, 4
    %v641 = vpop.permute.xlu0 %640
    %642 = vrot.lane.b32.xlu0 %v633, 4
    %v643 = vpop.permute.xlu0 %642
    %vm649 = vcmask 64544
    %650 = vst.msk [vmem:[#allocation3] sm:$0xff] %vm649, %v635
    %651 = vst.msk [vmem:[#allocation3 + $0x8] sm:$0xff] %vm649, %v637
    %652 = vst.msk [vmem:[#allocation3 + $0x10] sm:$0xff] %vm649, %v639
    %653 = vst.msk [vmem:[#allocation3 + $0x18] sm:$0xff] %vm649, %v641
    %654 = vst.msk [vmem:[#allocation3 + $0x20] sm:$0xff] %vm649, %v643
    %vm665 = vcmask 1042432
    %vm666 = vcmask 1046532
    %vm667 = vmor %vm665, %vm666
    %v668 = vrot.slane %v420, 5
    %v669 = vrot.slane %v668, 4
    %v670 = vrot.slane %v421, 5
    %v671 = vsel %vm667, %v669, %v670
    %v672 = vrot.slane %v422, 5
    %v673 = vrot.slane %v672, 4
    %v674 = vrot.slane %v423, 5
    %v675 = vsel %vm667, %v673, %v674
    %v676 = vrot.slane %v424, 5
    %v677 = vrot.slane %v676, 4
    %v678 = vrot.slane %v425, 5
    %v679 = vsel %vm667, %v677, %v678
    %v680 = vrot.slane %v426, 5
    %v681 = vrot.slane %v680, 4
    %v682 = vrot.slane %v427, 5
    %v683 = vsel %vm667, %v681, %v682
    %v684 = vrot.slane %v428, 5
    %v685 = vrot.slane %v684, 4
    %v686 = vrot.slane %v429, 5
    %v687 = vsel %vm667, %v685, %v686
    %v688 = vrot.slane %v430, 5
    %v689 = vrot.slane %v688, 4
    %v690 = vrot.slane %v431, 5
    %v691 = vsel %vm667, %v689, %v690
    %v692 = vrot.slane %v432, 5
    %v693 = vrot.slane %v692, 4
    %v694 = vrot.slane %v433, 5
    %v695 = vsel %vm667, %v693, %v694
    %v696 = vrot.slane %v434, 5
    %v697 = vrot.slane %v696, 4
    %v698 = vrot.slane %v435, 5
    %v699 = vsel %vm667, %v697, %v698
    %v700 = vrot.slane %v436, 5
    %v701 = vrot.slane %v700, 4
    %v702 = vrot.slane %v437, 5
    %v703 = vsel %vm667, %v701, %v702
    %v704 = vrot.slane %v438, 5
    %v705 = vrot.slane %v704, 4
    %v706 = vrot.slane %v439, 5
    %v707 = vsel %vm667, %v705, %v706
    %v708 = vunpack.c.l.b16 %v671
    %v709 = vunpack.c.l.b16 %v675
    %v710 = vunpack.c.l.b16 %v679
    %v711 = vunpack.c.l.b16 %v683
    %v712 = vunpack.c.l.b16 %v687
    %v713 = vunpack.c.l.b16 %v691
    %v714 = vunpack.c.l.b16 %v695
    %v715 = vunpack.c.l.b16 %v699
    %v716 = vunpack.c.l.b16 %v703
    %v717 = vunpack.c.l.b16 %v707
    %v718 = vpack.c.b16 %v709, %v708
    %v719 = vpack.c.b16 %v711, %v710
    %v720 = vpack.c.b16 %v713, %v712
    %v721 = vpack.c.b16 %v715, %v714
    %v722 = vpack.c.b16 %v717, %v716
    %723 = vrot.lane.b32.xlu0 %v718, 8
    %v724 = vpop.permute.xlu0 %723
    %725 = vrot.lane.b32.xlu0 %v719, 8
    %v726 = vpop.permute.xlu0 %725
    %727 = vrot.lane.b32.xlu0 %v720, 8
    %v728 = vpop.permute.xlu0 %727
    %729 = vrot.lane.b32.xlu0 %v721, 8
    %v730 = vpop.permute.xlu0 %729
    %731 = vrot.lane.b32.xlu0 %v722, 8
    %v732 = vpop.permute.xlu0 %731
    %vm738 = vcmask 97344
    %739 = vst.msk [vmem:[#allocation3] sm:$0xff] %vm738, %v724
    %740 = vst.msk [vmem:[#allocation3 + $0x8] sm:$0xff] %vm738, %v726
    %741 = vst.msk [vmem:[#allocation3 + $0x10] sm:$0xff] %vm738, %v728
    %742 = vst.msk [vmem:[#allocation3 + $0x18] sm:$0xff] %vm738, %v730
    %743 = vst.msk [vmem:[#allocation3 + $0x20] sm:$0xff] %vm738, %v732
    %v744 = vld [vmem:[#allocation3] sm:$0xff]
    %v745 = vld [vmem:[#allocation3 + $0x8] sm:$0xff]
    %v746 = vld [vmem:[#allocation3 + $0x10] sm:$0xff]
    %v747 = vld [vmem:[#allocation3 + $0x18] sm:$0xff]
    %v748 = vld [vmem:[%s1] sm:$0xf]
    %v749 = vld [vmem:[%s1 + $0x4] sm:$0x3]
    %v750 = vld [vmem:[#allocation3] sm:$0xf0]
    %v751 = vld [vmem:[#allocation3 + $0x20] sm:$0xf]
    %s752 = scalar_lea.vmem %s1, 8
    %v753 = vld [vmem:[%s752] sm:$0xf]
    %v754 = vld [vmem:[%s752 + $0x4] sm:$0x3]
    %vm760 = vcmask 1043456
    %v761 = vrot.slane %v750, 4
    %v762 = vrot.slane %v745, 4
    %v763 = vsel %vm760, %v761, %v762
    %v764 = vrot.slane %v746, 4
    %v765 = vsel %vm760, %v762, %v764
    %v766 = vrot.slane %v747, 4
    %v767 = vsel %vm760, %v764, %v766
    %v768 = vrot.slane %v751, 4
    %v769 = vsel %vm760, %v766, %v768
    %v772 = vunpack.c.l.b16 %v753
    %v773 = vunpack.c.l.b16 %v754
    %v774 = vpack.c.b16 %v773, %v772
    %vm775 = vcmask 97280
    %v777 = vsel %vm775, %v763, 0
    %v780 = vsel %vm775, %v765, 0
    %v783 = vsel %vm775, %v767, 0
    %v786 = vsel %vm775, %v769, 0
    %vm788 = vcmask 1045504
    %v790 = vsel %vm788, %v774, 0
    %792 = vmatprep.subr.bf16.mxu0 0
    %793 = vmatpush1.bf16.msra.mxu0 %v790
    %794 = vmatprep.subr.bf16.mxu0 0
    %795 = vmatpush1.bf16.msra.mxu0 0
    %796 = vmatprep.subr.bf16.mxu0 0
    %797 = vmatpush1.bf16.msra.mxu0 0
    %798 = vmatprep.subr.bf16.mxu0 0
    %799 = vmatpush1.bf16.msra.mxu0 0
    %800 = vmatprep.subr.bf16.mxu0 0
    %801 = vmatpush1.bf16.msra.mxu0 0
    %802 = vmatprep.subr.bf16.mxu0 0
    %803 = vmatpush1.bf16.msra.mxu0 0
    %804 = vmatprep.subr.bf16.mxu0 0
    %805 = vmatpush1.bf16.msra.mxu0 0
    %806 = vmatprep.subr.bf16.mxu0 0
    %807 = vmatpush1.bf16.msra.mxu0 0
    %808 = vmatprep.subr.bf16.mxu0 0
    %809 = vmatpush1.bf16.msra.mxu0 0
    %810 = vmatprep.subr.bf16.mxu0 0
    %811 = vmatpush1.bf16.msra.mxu0 0
    %812 = vmatprep.subr.bf16.mxu0 0
    %813 = vmatpush1.bf16.msra.mxu0 0
    %814 = vmatprep.subr.bf16.mxu0 0
    %815 = vmatpush1.bf16.msra.mxu0 0
    %816 = vmatprep.subr.bf16.mxu0 0
    %817 = vmatpush1.bf16.msra.mxu0 0
    %818 = vmatprep.subr.bf16.mxu0 0
    %819 = vmatpush1.bf16.msra.mxu0 0
    %820 = vmatprep.subr.bf16.mxu0 0
    %821 = vmatpush1.bf16.msra.mxu0 0
    %822 = vmatprep.subr.bf16.mxu0 0
    %823 = vmatpush1.bf16.msra.mxu0 0
    %824 = vmatprep.mubr.bf16.mxu0 0
    %825 = vmatmul.mubr.bf16.gmra.mrb[0].mxu0 %v777
    %v826 = vpop.f32.mrb[0].mxu0
    %v827 = vadd.f32 0.0, %v826
    %v828 = vpop.f32.mrb[0].mxu0
    %v829 = vpop.f32.mrb[0].mxu0
    %v830 = vadd.f32 0.0, %v829
    %v831 = vpop.f32.mrb[0].mxu0
    %832 = vmatprep.mubr.bf16.mxu0 0
    %833 = vmatmul.mubr.bf16.gmra.mrb[0].mxu0 %v780
    %v834 = vpop.f32.mrb[0].mxu0
    %v835 = vadd.f32 0.0, %v834
    %v836 = vpop.f32.mrb[0].mxu0
    %v837 = vpop.f32.mrb[0].mxu0
    %v838 = vadd.f32 0.0, %v837
    %v839 = vpop.f32.mrb[0].mxu0
    %840 = vmatprep.mubr.bf16.mxu0 0
    %841 = vmatmul.mubr.bf16.gmra.mrb[0].mxu0 %v783
    %v842 = vpop.f32.mrb[0].mxu0
    %v843 = vadd.f32 0.0, %v842
    %v844 = vpop.f32.mrb[0].mxu0
    %v845 = vpop.f32.mrb[0].mxu0
    %v846 = vadd.f32 0.0, %v845
    %v847 = vpop.f32.mrb[0].mxu0
    %848 = vmatprep.mubr.bf16.mxu0 0
    %849 = vmatmul.mubr.bf16.gmra.mrb[0].mxu0 %v786
    %v850 = vpop.f32.mrb[0].mxu0
    %v851 = vadd.f32 0.0, %v850
    %v852 = vpop.f32.mrb[0].mxu0
    %v853 = vpop.f32.mrb[0].mxu0
    %v854 = vadd.f32 0.0, %v853
    %v855 = vpop.f32.mrb[0].mxu0
    %856 = vdwg.mxu0
    %v859 = vunpack.c.l.b16 %v748
    %v860 = vunpack.c.l.b16 %v749
    %v861 = vpack.c.b16 %v860, %v859
    %v863 = vsel %vm775, %v744, 0
    %v866 = vsel %vm775, %v745, 0
    %v869 = vsel %vm775, %v746, 0
    %v872 = vsel %vm775, %v747, 0
    %v875 = vsel %vm788, %v861, 0
    %877 = vmatprep.subr.bf16.mxu0 0
    %878 = vmatpush1.bf16.msra.mxu0 %v875
    %879 = vmatprep.subr.bf16.mxu0 0
    %880 = vmatpush1.bf16.msra.mxu0 0
    %881 = vmatprep.subr.bf16.mxu0 0
    %882 = vmatpush1.bf16.msra.mxu0 0
    %883 = vmatprep.subr.bf16.mxu0 0
    %884 = vmatpush1.bf16.msra.mxu0 0
    %885 = vmatprep.subr.bf16.mxu0 0
    %886 = vmatpush1.bf16.msra.mxu0 0
    %887 = vmatprep.subr.bf16.mxu0 0
    %888 = vmatpush1.bf16.msra.mxu0 0
    %889 = vmatprep.subr.bf16.mxu0 0
    %890 = vmatpush1.bf16.msra.mxu0 0
    %891 = vmatprep.subr.bf16.mxu0 0
    %892 = vmatpush1.bf16.msra.mxu0 0
    %893 = vmatprep.subr.bf16.mxu0 0
    %894 = vmatpush1.bf16.msra.mxu0 0
    %895 = vmatprep.subr.bf16.mxu0 0
    %896 = vmatpush1.bf16.msra.mxu0 0
    %897 = vmatprep.subr.bf16.mxu0 0
    %898 = vmatpush1.bf16.msra.mxu0 0
    %899 = vmatprep.subr.bf16.mxu0 0
    %900 = vmatpush1.bf16.msra.mxu0 0
    %901 = vmatprep.subr.bf16.mxu0 0
    %902 = vmatpush1.bf16.msra.mxu0 0
    %903 = vmatprep.subr.bf16.mxu0 0
    %904 = vmatpush1.bf16.msra.mxu0 0
    %905 = vmatprep.subr.bf16.mxu0 0
    %906 = vmatpush1.bf16.msra.mxu0 0
    %907 = vmatprep.subr.bf16.mxu0 0
    %908 = vmatpush1.bf16.msra.mxu0 0
    %909 = vmatprep.mubr.bf16.mxu0 0
    %910 = vmatmul.mubr.bf16.gmra.mrb[0].mxu0 %v863
    %v911 = vpop.f32.mrb[0].mxu0
    %v912 = vadd.f32 %v827, %v911
    %v913 = vpop.f32.mrb[0].mxu0
    %v914 = vpop.f32.mrb[0].mxu0
    %v915 = vadd.f32 %v830, %v914
    %v916 = vpop.f32.mrb[0].mxu0
    %917 = vmatprep.mubr.bf16.mxu0 0
    %918 = vmatmul.mubr.bf16.gmra.mrb[0].mxu0 %v866
    %v919 = vpop.f32.mrb[0].mxu0
    %v920 = vadd.f32 %v835, %v919
    %v921 = vpop.f32.mrb[0].mxu0
    %v922 = vpop.f32.mrb[0].mxu0
    %v923 = vadd.f32 %v838, %v922
    %v924 = vpop.f32.mrb[0].mxu0
    %925 = vmatprep.mubr.bf16.mxu0 0
    %926 = vmatmul.mubr.bf16.gmra.mrb[0].mxu0 %v869
    %v927 = vpop.f32.mrb[0].mxu0
    %v928 = vadd.f32 %v843, %v927
    %v929 = vpop.f32.mrb[0].mxu0
    %v930 = vpop.f32.mrb[0].mxu0
    %v931 = vadd.f32 %v846, %v930
    %v932 = vpop.f32.mrb[0].mxu0
    %933 = vmatprep.mubr.bf16.mxu0 0
    %934 = vmatmul.mubr.bf16.gmra.mrb[0].mxu0 %v872
    %v935 = vpop.f32.mrb[0].mxu0
    %v936 = vadd.f32 %v851, %v935
    %v937 = vpop.f32.mrb[0].mxu0
    %v938 = vpop.f32.mrb[0].mxu0
    %v939 = vadd.f32 %v854, %v938
    %v940 = vpop.f32.mrb[0].mxu0
    %941 = vdwg.mxu0
    %v942 = vld [vmem:[#allocation3 + $0x20] sm:$0xff]
    %s943 = scalar_lea.vmem %s1, 16
    %v944 = vld [vmem:[%s943] sm:$0xf]
    %v945 = vld [vmem:[%s943 + $0x4] sm:$0x3]
    %v948 = vunpack.c.l.b16 %v944
    %v949 = vunpack.c.l.b16 %v945
    %v950 = vpack.c.b16 %v949, %v948
    %v952 = vsel %vm775, %v942, 0
    %v955 = vsel %vm788, %v950, 0
    %957 = vmatprep.subr.bf16.mxu0 0
    %958 = vmatpush1.bf16.msra.mxu0 %v955
    %959 = vmatprep.subr.bf16.mxu0 0
    %960 = vmatpush1.bf16.msra.mxu0 0
    %961 = vmatprep.subr.bf16.mxu0 0
    %962 = vmatpush1.bf16.msra.mxu0 0
    %963 = vmatprep.subr.bf16.mxu0 0
    %964 = vmatpush1.bf16.msra.mxu0 0
    %965 = vmatprep.subr.bf16.mxu0 0
    %966 = vmatpush1.bf16.msra.mxu0 0
    %967 = vmatprep.subr.bf16.mxu0 0
    %968 = vmatpush1.bf16.msra.mxu0 0
    %969 = vmatprep.subr.bf16.mxu0 0
    %970 = vmatpush1.bf16.msra.mxu0 0
    %971 = vmatprep.subr.bf16.mxu0 0
    %972 = vmatpush1.bf16.msra.mxu0 0
    %973 = vmatprep.subr.bf16.mxu0 0
    %974 = vmatpush1.bf16.msra.mxu0 0
    %975 = vmatprep.subr.bf16.mxu0 0
    %976 = vmatpush1.bf16.msra.mxu0 0
    %977 = vmatprep.subr.bf16.mxu0 0
    %978 = vmatpush1.bf16.msra.mxu0 0
    %979 = vmatprep.subr.bf16.mxu0 0
    %980 = vmatpush1.bf16.msra.mxu0 0
    %981 = vmatprep.subr.bf16.mxu0 0
    %982 = vmatpush1.bf16.msra.mxu0 0
    %983 = vmatprep.subr.bf16.mxu0 0
    %984 = vmatpush1.bf16.msra.mxu0 0
    %985 = vmatprep.subr.bf16.mxu0 0
    %986 = vmatpush1.bf16.msra.mxu0 0
    %987 = vmatprep.subr.bf16.mxu0 0
    %988 = vmatpush1.bf16.msra.mxu0 0
    %989 = vmatprep.mubr.bf16.mxu0 0
    %990 = vmatmul.mubr.bf16.gmra.mrb[0].mxu0 %v866
    %v991 = vpop.f32.mrb[0].mxu0
    %v992 = vadd.f32 0.0, %v991
    %v993 = vpop.f32.mrb[0].mxu0
    %v994 = vpop.f32.mrb[0].mxu0
    %v995 = vadd.f32 0.0, %v994
    %v996 = vpop.f32.mrb[0].mxu0
    %997 = vmatprep.mubr.bf16.mxu0 0
    %998 = vmatmul.mubr.bf16.gmra.mrb[0].mxu0 %v869
    %v999 = vpop.f32.mrb[0].mxu0
    %v1000 = vadd.f32 0.0, %v999
    %v1001 = vpop.f32.mrb[0].mxu0
    %v1002 = vpop.f32.mrb[0].mxu0
    %v1003 = vadd.f32 0.0, %v1002
    %v1004 = vpop.f32.mrb[0].mxu0
    %1005 = vmatprep.mubr.bf16.mxu0 0
    %1006 = vmatmul.mubr.bf16.gmra.mrb[0].mxu0 %v872
    %v1007 = vpop.f32.mrb[0].mxu0
    %v1008 = vadd.f32 0.0, %v1007
    %v1009 = vpop.f32.mrb[0].mxu0
    %v1010 = vpop.f32.mrb[0].mxu0
    %v1011 = vadd.f32 0.0, %v1010
    %v1012 = vpop.f32.mrb[0].mxu0
    %1013 = vmatprep.mubr.bf16.mxu0 0
    %1014 = vmatmul.mubr.bf16.gmra.mrb[0].mxu0 %v952
    %v1015 = vpop.f32.mrb[0].mxu0
    %v1016 = vadd.f32 0.0, %v1015
    %v1017 = vpop.f32.mrb[0].mxu0
    %v1018 = vpop.f32.mrb[0].mxu0
    %v1019 = vadd.f32 0.0, %v1018
    %v1020 = vpop.f32.mrb[0].mxu0
    %1021 = vdwg.mxu0
    %v1022 = vadd.f32 %v912, %v992
    %v1023 = vadd.f32 %v915, %v995
    %v1024 = vadd.f32 %v920, %v1000
    %v1025 = vadd.f32 %v923, %v1003
    %v1026 = vadd.f32 %v928, %v1008
    %v1027 = vadd.f32 %v931, %v1011
    %v1028 = vadd.f32 %v936, %v1016
    %v1029 = vadd.f32 %v939, %v1019
    %v1030 = vld [vmem:[%s2] sm:$0x1]
    %v1032 = vlaneseq
    %v1033 = vshrl.u32 %v1032, 7
    %v1034 = vsub.s32 0, %v1033
    %v1035 = vrot.slane %v1030, %v1034
    %v1037 = vadd.f32 %v1022, %v1035
    %v1038 = vadd.f32 %v1023, %v1035
    %v1039 = vadd.f32 %v1024, %v1035
    %v1040 = vadd.f32 %v1025, %v1035
    %v1041 = vadd.f32 %v1026, %v1035
    %v1042 = vadd.f32 %v1027, %v1035
    %v1043 = vadd.f32 %v1028, %v1035
    %v1044 = vadd.f32 %v1029, %v1035
    %v1045 = vmax.f32 %v1037, 0.0
    %v1046 = vmax.f32 %v1038, 0.0
    %v1047 = vmax.f32 %v1039, 0.0
    %v1048 = vmax.f32 %v1040, 0.0
    %v1049 = vmax.f32 %v1041, 0.0
    %v1050 = vmax.f32 %v1042, 0.0
    %v1051 = vmax.f32 %v1043, 0.0
    %v1052 = vmax.f32 %v1044, 0.0
    %v1053 = vpack.c.bf16 %v1045, %v1045
    %v1054 = vpack.c.bf16 %v1046, %v1046
    %v1055 = vpack.c.bf16 %v1047, %v1047
    %v1056 = vpack.c.bf16 %v1048, %v1048
    %v1057 = vpack.c.bf16 %v1049, %v1049
    %v1058 = vpack.c.bf16 %v1050, %v1050
    %v1059 = vpack.c.bf16 %v1051, %v1051
    %v1060 = vpack.c.bf16 %v1052, %v1052
    %v1069 = vunpack.c.l.b16 %v1053
    %v1070 = vunpack.c.l.b16 %v1054
    %v1071 = vunpack.c.l.b16 %v1055
    %v1072 = vunpack.c.l.b16 %v1056
    %v1073 = vunpack.c.l.b16 %v1057
    %v1074 = vunpack.c.l.b16 %v1058
    %v1075 = vunpack.c.l.b16 %v1059
    %v1076 = vunpack.c.l.b16 %v1060
    %v1077 = vpack.c.b16 %v1069, %v1069
    %v1078 = vpack.c.b16 %v1070, %v1070
    %v1079 = vpack.c.b16 %v1071, %v1071
    %v1080 = vpack.c.b16 %v1072, %v1072
    %v1081 = vpack.c.b16 %v1073, %v1073
    %v1082 = vpack.c.b16 %v1074, %v1074
    %v1083 = vpack.c.b16 %v1075, %v1075
    %v1084 = vpack.c.b16 %v1076, %v1076
    %v1086 = vshrl.u32 %v1077, 16
    %v1088 = vrot.slane %v1086, 7
    %v1089 = vshll.u32 %v1077, 16
    %v1091 = vor.u32 %v1088, %v1089
    %v1092 = vrot.slane %v1088, 4
    %v1094 = vshrl.u32 %v1078, 16
    %v1096 = vrot.slane %v1094, 7
    %v1097 = vshll.u32 %v1078, 16
    %v1099 = vor.u32 %v1096, %v1097
    %v1100 = vrot.slane %v1096, 4
    %v1102 = vshrl.u32 %v1079, 16
    %v1104 = vrot.slane %v1102, 7
    %v1105 = vshll.u32 %v1079, 16
    %v1107 = vor.u32 %v1104, %v1105
    %v1108 = vrot.slane %v1104, 4
    %v1110 = vshrl.u32 %v1080, 16
    %v1112 = vrot.slane %v1110, 7
    %v1113 = vshll.u32 %v1080, 16
    %v1115 = vor.u32 %v1112, %v1113
    %v1116 = vrot.slane %v1112, 4
    %v1118 = vshrl.u32 %v1081, 16
    %v1120 = vrot.slane %v1118, 7
    %v1121 = vshll.u32 %v1081, 16
    %v1123 = vor.u32 %v1120, %v1121
    %v1124 = vrot.slane %v1120, 4
    %v1126 = vshrl.u32 %v1082, 16
    %v1128 = vrot.slane %v1126, 7
    %v1129 = vshll.u32 %v1082, 16
    %v1131 = vor.u32 %v1128, %v1129
    %v1132 = vrot.slane %v1128, 4
    %v1134 = vshrl.u32 %v1083, 16
    %v1136 = vrot.slane %v1134, 7
    %v1137 = vshll.u32 %v1083, 16
    %v1139 = vor.u32 %v1136, %v1137
    %v1140 = vrot.slane %v1136, 4
    %v1142 = vshrl.u32 %v1084, 16
    %v1144 = vrot.slane %v1142, 7
    %v1145 = vshll.u32 %v1084, 16
    %v1147 = vor.u32 %v1144, %v1145
    %v1148 = vrot.slane %v1144, 4
    %s1165 = scalar_lea.vmem [#allocation4], 8
    %vm1166 = vcmask 60416
    %vm1167 = vmand %vm1166, %vm75
    %v1168 = vld [vmem:[%s1165] sm:$0xf]
    %v1169 = vsel %vm1167, %v1091, %v1168
    %1170 = vst [vmem:[%s1165] sm:$0xf] %v1169
    %v1171 = vld [vmem:[%s1165 + $0x4] sm:$0x1]
    %v1172 = vsel %vm115, %v1092, %v1171
    %1173 = vst [vmem:[%s1165 + $0x4] sm:$0x1] %v1172
    %v1174 = vld [vmem:[%s1165 + $0x8] sm:$0xf]
    %v1175 = vsel %vm1167, %v1099, %v1174
    %1176 = vst [vmem:[%s1165 + $0x8] sm:$0xf] %v1175
    %v1177 = vld [vmem:[%s1165 + $0xc] sm:$0x1]
    %v1178 = vsel %vm115, %v1100, %v1177
    %1179 = vst [vmem:[%s1165 + $0xc] sm:$0x1] %v1178
    %v1180 = vld [vmem:[%s1165 + $0x10] sm:$0xf]
    %v1181 = vsel %vm1167, %v1107, %v1180
    %1182 = vst [vmem:[%s1165 + $0x10] sm:$0xf] %v1181
    %v1183 = vld [vmem:[%s1165 + $0x14] sm:$0x1]
    %v1184 = vsel %vm115, %v1108, %v1183
    %1185 = vst [vmem:[%s1165 + $0x14] sm:$0x1] %v1184
    %v1186 = vld [vmem:[%s1165 + $0x18] sm:$0xf]
    %v1187 = vsel %vm1167, %v1115, %v1186
    %1188 = vst [vmem:[%s1165 + $0x18] sm:$0xf] %v1187
    %v1189 = vld [vmem:[%s1165 + $0x1c] sm:$0x1]
    %v1190 = vsel %vm115, %v1116, %v1189
    %1191 = vst [vmem:[%s1165 + $0x1c] sm:$0x1] %v1190
    %v1192 = vld [vmem:[%s1165 + $0x20] sm:$0xf]
    %v1193 = vsel %vm1167, %v1123, %v1192
    %1194 = vst [vmem:[%s1165 + $0x20] sm:$0xf] %v1193
    %v1195 = vld [vmem:[%s1165 + $0x24] sm:$0x1]
    %v1196 = vsel %vm115, %v1124, %v1195
    %1197 = vst [vmem:[%s1165 + $0x24] sm:$0x1] %v1196
    %v1198 = vld [vmem:[%s1165 + $0x28] sm:$0xf]
    %v1199 = vsel %vm1167, %v1131, %v1198
    %1200 = vst [vmem:[%s1165 + $0x28] sm:$0xf] %v1199
    %v1201 = vld [vmem:[%s1165 + $0x2c] sm:$0x1]
    %v1202 = vsel %vm115, %v1132, %v1201
    %1203 = vst [vmem:[%s1165 + $0x2c] sm:$0x1] %v1202
    %v1204 = vld [vmem:[%s1165 + $0x30] sm:$0xf]
    %v1205 = vsel %vm1167, %v1139, %v1204
    %1206 = vst [vmem:[%s1165 + $0x30] sm:$0xf] %v1205
    %v1207 = vld [vmem:[%s1165 + $0x34] sm:$0x1]
    %v1208 = vsel %vm115, %v1140, %v1207
    %1209 = vst [vmem:[%s1165 + $0x34] sm:$0x1] %v1208
    %v1210 = vld [vmem:[%s1165 + $0x38] sm:$0xf]
    %v1211 = vsel %vm1167, %v1147, %v1210
    %1212 = vst [vmem:[%s1165 + $0x38] sm:$0xf] %v1211
    %v1213 = vld [vmem:[%s1165 + $0x3c] sm:$0x1]
    %v1214 = vsel %vm115, %v1148, %v1213
    %1215 = vst [vmem:[%s1165 + $0x3c] sm:$0x1] %v1214
    %v1216 = vld [vmem:[#allocation4] sm:$0xf]
    %v1217 = vld [vmem:[#allocation4 + $0x4] sm:$0x1]
    %v1218 = vld [vmem:[#allocation4 + $0x8] sm:$0xf]
    %v1219 = vld [vmem:[#allocation4 + $0xc] sm:$0x1]
    %v1220 = vld [vmem:[#allocation4 + $0x10] sm:$0xf]
    %v1221 = vld [vmem:[#allocation4 + $0x14] sm:$0x1]
    %v1222 = vld [vmem:[#allocation4 + $0x18] sm:$0xf]
    %v1223 = vld [vmem:[#allocation4 + $0x1c] sm:$0x1]
    %v1224 = vld [vmem:[#allocation4 + $0x20] sm:$0xf]
    %v1225 = vld [vmem:[#allocation4 + $0x24] sm:$0x1]
    %v1226 = vld [vmem:[#allocation4 + $0x28] sm:$0xf]
    %v1227 = vld [vmem:[#allocation4 + $0x2c] sm:$0x1]
    %v1228 = vld [vmem:[#allocation4 + $0x30] sm:$0xf]
    %v1229 = vld [vmem:[#allocation4 + $0x34] sm:$0x1]
    %v1230 = vld [vmem:[#allocation4 + $0x38] sm:$0xf]
    %v1231 = vld [vmem:[#allocation4 + $0x3c] sm:$0x1]
    %v1232 = vld [vmem:[#allocation4 + $0x40] sm:$0xf]
    %v1233 = vld [vmem:[#allocation4 + $0x44] sm:$0x1]
    %v1234 = vld [vmem:[#allocation4 + $0x48] sm:$0xf]
    %v1235 = vld [vmem:[#allocation4 + $0x4c] sm:$0x1]
    %v1246 = vunpack.c.l.b16 %v1216
    %v1247 = vunpack.c.l.b16 %v1218
    %v1248 = vunpack.c.l.b16 %v1220
    %v1249 = vunpack.c.l.b16 %v1222
    %v1250 = vunpack.c.l.b16 %v1224
    %v1251 = vunpack.c.l.b16 %v1226
    %v1252 = vunpack.c.l.b16 %v1228
    %v1253 = vunpack.c.l.b16 %v1230
    %v1254 = vunpack.c.l.b16 %v1232
    %v1255 = vunpack.c.l.b16 %v1234
    %v1256 = vpack.c.b16 %v1247, %v1246
    %v1257 = vpack.c.b16 %v1249, %v1248
    %v1258 = vpack.c.b16 %v1251, %v1250
    %v1259 = vpack.c.b16 %v1253, %v1252
    %v1260 = vpack.c.b16 %v1255, %v1254
    %vm1266 = vcmask 64512
    %1267 = vst.msk [vmem:[#allocation5] sm:$0xff] %vm1266, %v1256
    %1268 = vst.msk [vmem:[#allocation5 + $0x8] sm:$0xff] %vm1266, %v1257
    %1269 = vst.msk [vmem:[#allocation5 + $0x10] sm:$0xff] %vm1266, %v1258
    %1270 = vst.msk [vmem:[#allocation5 + $0x18] sm:$0xff] %vm1266, %v1259
    %1271 = vst.msk [vmem:[#allocation5 + $0x20] sm:$0xff] %vm1266, %v1260
    %v1273 = vshrl.u32 %v1216, 16
    %v1275 = vrot.slane %v1273, 4
    %v1276 = vshll.u32 %v1216, 16
    %v1278 = vrot.slane %v1276, 5
    %v1279 = vor.u32 %v1275, %v1278
    %v1280 = vrot.slane %v1279, 4
    %v1282 = vshll.u32 %v1217, 16
    %v1284 = vrot.slane %v1282, 5
    %v1285 = vsel %vm478, %v1280, %v1284
    %v1287 = vshrl.u32 %v1218, 16
    %v1289 = vrot.slane %v1287, 4
    %v1290 = vshll.u32 %v1218, 16
    %v1292 = vrot.slane %v1290, 5
    %v1293 = vor.u32 %v1289, %v1292
    %v1294 = vrot.slane %v1293, 4
    %v1296 = vshll.u32 %v1219, 16
    %v1298 = vrot.slane %v1296, 5
    %v1299 = vsel %vm478, %v1294, %v1298
    %v1301 = vshrl.u32 %v1220, 16
    %v1303 = vrot.slane %v1301, 4
    %v1304 = vshll.u32 %v1220, 16
    %v1306 = vrot.slane %v1304, 5
    %v1307 = vor.u32 %v1303, %v1306
    %v1308 = vrot.slane %v1307, 4
    %v1310 = vshll.u32 %v1221, 16
    %v1312 = vrot.slane %v1310, 5
    %v1313 = vsel %vm478, %v1308, %v1312
    %v1315 = vshrl.u32 %v1222, 16
    %v1317 = vrot.slane %v1315, 4
    %v1318 = vshll.u32 %v1222, 16
    %v1320 = vrot.slane %v1318, 5
    %v1321 = vor.u32 %v1317, %v1320
    %v1322 = vrot.slane %v1321, 4
    %v1324 = vshll.u32 %v1223, 16
    %v1326 = vrot.slane %v1324, 5
    %v1327 = vsel %vm478, %v1322, %v1326
    %v1329 = vshrl.u32 %v1224, 16
    %v1331 = vrot.slane %v1329, 4
    %v1332 = vshll.u32 %v1224, 16
    %v1334 = vrot.slane %v1332, 5
    %v1335 = vor.u32 %v1331, %v1334
    %v1336 = vrot.slane %v1335, 4
    %v1338 = vshll.u32 %v1225, 16
    %v1340 = vrot.slane %v1338, 5
    %v1341 = vsel %vm478, %v1336, %v1340
    %v1343 = vshrl.u32 %v1226, 16
    %v1345 = vrot.slane %v1343, 4
    %v1346 = vshll.u32 %v1226, 16
    %v1348 = vrot.slane %v1346, 5
    %v1349 = vor.u32 %v1345, %v1348
    %v1350 = vrot.slane %v1349, 4
    %v1352 = vshll.u32 %v1227, 16
    %v1354 = vrot.slane %v1352, 5
    %v1355 = vsel %vm478, %v1350, %v1354
    %v1357 = vshrl.u32 %v1228, 16
    %v1359 = vrot.slane %v1357, 4
    %v1360 = vshll.u32 %v1228, 16
    %v1362 = vrot.slane %v1360, 5
    %v1363 = vor.u32 %v1359, %v1362
    %v1364 = vrot.slane %v1363, 4
    %v1366 = vshll.u32 %v1229, 16
    %v1368 = vrot.slane %v1366, 5
    %v1369 = vsel %vm478, %v1364, %v1368
    %v1371 = vshrl.u32 %v1230, 16
    %v1373 = vrot.slane %v1371, 4
    %v1374 = vshll.u32 %v1230, 16
    %v1376 = vrot.slane %v1374, 5
    %v1377 = vor.u32 %v1373, %v1376
    %v1378 = vrot.slane %v1377, 4
    %v1380 = vshll.u32 %v1231, 16
    %v1382 = vrot.slane %v1380, 5
    %v1383 = vsel %vm478, %v1378, %v1382
    %v1385 = vshrl.u32 %v1232, 16
    %v1387 = vrot.slane %v1385, 4
    %v1388 = vshll.u32 %v1232, 16
    %v1390 = vrot.slane %v1388, 5
    %v1391 = vor.u32 %v1387, %v1390
    %v1392 = vrot.slane %v1391, 4
    %v1394 = vshll.u32 %v1233, 16
    %v1396 = vrot.slane %v1394, 5
    %v1397 = vsel %vm478, %v1392, %v1396
    %v1399 = vshrl.u32 %v1234, 16
    %v1401 = vrot.slane %v1399, 4
    %v1402 = vshll.u32 %v1234, 16
    %v1404 = vrot.slane %v1402, 5
    %v1405 = vor.u32 %v1401, %v1404
    %v1406 = vrot.slane %v1405, 4
    %v1408 = vshll.u32 %v1235, 16
    %v1410 = vrot.slane %v1408, 5
    %v1411 = vsel %vm478, %v1406, %v1410
    %v1412 = vunpack.c.l.b16 %v1285
    %v1413 = vunpack.c.l.b16 %v1299
    %v1414 = vunpack.c.l.b16 %v1313
    %v1415 = vunpack.c.l.b16 %v1327
    %v1416 = vunpack.c.l.b16 %v1341
    %v1417 = vunpack.c.l.b16 %v1355
    %v1418 = vunpack.c.l.b16 %v1369
    %v1419 = vunpack.c.l.b16 %v1383
    %v1420 = vunpack.c.l.b16 %v1397
    %v1421 = vunpack.c.l.b16 %v1411
    %v1422 = vpack.c.b16 %v1413, %v1412
    %v1423 = vpack.c.b16 %v1415, %v1414
    %v1424 = vpack.c.b16 %v1417, %v1416
    %v1425 = vpack.c.b16 %v1419, %v1418
    %v1426 = vpack.c.b16 %v1421, %v1420
    %1427 = vrot.lane.b32.xlu0 %v1422, 8
    %v1428 = vpop.permute.xlu0 %1427
    %1429 = vrot.lane.b32.xlu0 %v1423, 8
    %v1430 = vpop.permute.xlu0 %1429
    %1431 = vrot.lane.b32.xlu0 %v1424, 8
    %v1432 = vpop.permute.xlu0 %1431
    %1433 = vrot.lane.b32.xlu0 %v1425, 8
    %v1434 = vpop.permute.xlu0 %1433
    %1435 = vrot.lane.b32.xlu0 %v1426, 8
    %v1436 = vpop.permute.xlu0 %1435
    %vm1442 = vcmask 130112
    %1443 = vst.msk [vmem:[#allocation5] sm:$0xff] %vm1442, %v1428
    %1444 = vst.msk [vmem:[#allocation5 + $0x8] sm:$0xff] %vm1442, %v1430
    %1445 = vst.msk [vmem:[#allocation5 + $0x10] sm:$0xff] %vm1442, %v1432
    %1446 = vst.msk [vmem:[#allocation5 + $0x18] sm:$0xff] %vm1442, %v1434
    %1447 = vst.msk [vmem:[#allocation5 + $0x20] sm:$0xff] %vm1442, %v1436
    %v1458 = vrot.slane %v1216, 5
    %v1459 = vrot.slane %v1458, 4
    %v1460 = vrot.slane %v1217, 5
    %v1461 = vsel %vm667, %v1459, %v1460
    %v1462 = vrot.slane %v1218, 5
    %v1463 = vrot.slane %v1462, 4
    %v1464 = vrot.slane %v1219, 5
    %v1465 = vsel %vm667, %v1463, %v1464
    %v1466 = vrot.slane %v1220, 5
    %v1467 = vrot.slane %v1466, 4
    %v1468 = vrot.slane %v1221, 5
    %v1469 = vsel %vm667, %v1467, %v1468
    %v1470 = vrot.slane %v1222, 5
    %v1471 = vrot.slane %v1470, 4
    %v1472 = vrot.slane %v1223, 5
    %v1473 = vsel %vm667, %v1471, %v1472
    %v1474 = vrot.slane %v1224, 5
    %v1475 = vrot.slane %v1474, 4
    %v1476 = vrot.slane %v1225, 5
    %v1477 = vsel %vm667, %v1475, %v1476
    %v1478 = vrot.slane %v1226, 5
    %v1479 = vrot.slane %v1478, 4
    %v1480 = vrot.slane %v1227, 5
    %v1481 = vsel %vm667, %v1479, %v1480
    %v1482 = vrot.slane %v1228, 5
    %v1483 = vrot.slane %v1482, 4
    %v1484 = vrot.slane %v1229, 5
    %v1485 = vsel %vm667, %v1483, %v1484
    %v1486 = vrot.slane %v1230, 5
    %v1487 = vrot.slane %v1486, 4
    %v1488 = vrot.slane %v1231, 5
    %v1489 = vsel %vm667, %v1487, %v1488
    %v1490 = vrot.slane %v1232, 5
    %v1491 = vrot.slane %v1490, 4
    %v1492 = vrot.slane %v1233, 5
    %v1493 = vsel %vm667, %v1491, %v1492
    %v1494 = vrot.slane %v1234, 5
    %v1495 = vrot.slane %v1494, 4
    %v1496 = vrot.slane %v1235, 5
    %v1497 = vsel %vm667, %v1495, %v1496
    %v1498 = vunpack.c.l.b16 %v1461
    %v1499 = vunpack.c.l.b16 %v1465
    %v1500 = vunpack.c.l.b16 %v1469
    %v1501 = vunpack.c.l.b16 %v1473
    %v1502 = vunpack.c.l.b16 %v1477
    %v1503 = vunpack.c.l.b16 %v1481
    %v1504 = vunpack.c.l.b16 %v1485
    %v1505 = vunpack.c.l.b16 %v1489
    %v1506 = vunpack.c.l.b16 %v1493
    %v1507 = vunpack.c.l.b16 %v1497
    %v1508 = vpack.c.b16 %v1499, %v1498
    %v1509 = vpack.c.b16 %v1501, %v1500
    %v1510 = vpack.c.b16 %v1503, %v1502
    %v1511 = vpack.c.b16 %v1505, %v1504
    %v1512 = vpack.c.b16 %v1507, %v1506
    %1513 = vrot.lane.b32.xlu0 %v1508, 16
    %v1514 = vpop.permute.xlu0 %1513
    %1515 = vrot.lane.b32.xlu0 %v1509, 16
    %v1516 = vpop.permute.xlu0 %1515
    %1517 = vrot.lane.b32.xlu0 %v1510, 16
    %v1518 = vpop.permute.xlu0 %1517
    %1519 = vrot.lane.b32.xlu0 %v1511, 16
    %v1520 = vpop.permute.xlu0 %1519
    %1521 = vrot.lane.b32.xlu0 %v1512, 16
    %v1522 = vpop.permute.xlu0 %1521
    %vm1528 = vcmask 195712
    %1529 = vst.msk [vmem:[#allocation5] sm:$0xff] %vm1528, %v1514
    %1530 = vst.msk [vmem:[#allocation5 + $0x8] sm:$0xff] %vm1528, %v1516
    %1531 = vst.msk [vmem:[#allocation5 + $0x10] sm:$0xff] %vm1528, %v1518
    %1532 = vst.msk [vmem:[#allocation5 + $0x18] sm:$0xff] %vm1528, %v1520
    %1533 = vst.msk [vmem:[#allocation5 + $0x20] sm:$0xff] %vm1528, %v1522
    %v1534 = vld [vmem:[#allocation5] sm:$0xff]
    %v1535 = vld [vmem:[#allocation5 + $0x8] sm:$0xff]
    %v1536 = vld [vmem:[#allocation5 + $0x10] sm:$0xff]
    %v1537 = vld [vmem:[#allocation5 + $0x18] sm:$0xff]
    %v1538 = vld [vmem:[%s3] sm:$0xf]
    %v1539 = vld [vmem:[%s3 + $0x4] sm:$0xf]
    %v1540 = vld [vmem:[%s3 + $0x8] sm:$0xf]
    %v1541 = vld [vmem:[#allocation5] sm:$0xf0]
    %v1542 = vld [vmem:[#allocation5 + $0x20] sm:$0xf]
    %s1543 = scalar_lea.vmem %s3, 12
    %v1544 = vld [vmem:[%s1543] sm:$0xf]
    %v1545 = vld [vmem:[%s1543 + $0x4] sm:$0xf]
    %v1546 = vld [vmem:[%s1543 + $0x8] sm:$0xf]
    %v1552 = vrot.slane %v1541, 4
    %v1553 = vrot.slane %v1535, 4
    %v1554 = vsel %vm760, %v1552, %v1553
    %v1555 = vrot.slane %v1536, 4
    %v1556 = vsel %vm760, %v1553, %v1555
    %v1557 = vrot.slane %v1537, 4
    %v1558 = vsel %vm760, %v1555, %v1557
    %v1559 = vrot.slane %v1542, 4
    %v1560 = vsel %vm760, %v1557, %v1559
    %v1564 = vunpack.c.l.b16 %v1544
    %v1565 = vunpack.c.l.b16 %v1545
    %v1566 = vunpack.c.l.b16 %v1546
    %v1567 = vpack.c.b16 %v1565, %v1564
    %v1568 = vpack.c.b16 %v1566, %v1566
    %vm1570 = vcmask 195584
    %v1572 = vsel %vm1570, %v1554, 0
    %v1575 = vsel %vm1570, %v1556, 0
    %v1578 = vsel %vm1570, %v1558, 0
    %v1581 = vsel %vm1570, %v1560, 0
    %vm1583 = vcmask 1043456
    %v1585 = vsel %vm1583, %v1568, 0
    %1587 = vmatprep.subr.bf16.mxu0 0
    %1588 = vmatpush1.bf16.msra.mxu0 %v1567
    %1589 = vmatprep.subr.bf16.mxu0 0
    %1590 = vmatpush1.bf16.msra.mxu0 %v1585
    %1591 = vmatprep.subr.bf16.mxu0 0
    %1592 = vmatpush1.bf16.msra.mxu0 0
    %1593 = vmatprep.subr.bf16.mxu0 0
    %1594 = vmatpush1.bf16.msra.mxu0 0
    %1595 = vmatprep.subr.bf16.mxu0 0
    %1596 = vmatpush1.bf16.msra.mxu0 0
    %1597 = vmatprep.subr.bf16.mxu0 0
    %1598 = vmatpush1.bf16.msra.mxu0 0
    %1599 = vmatprep.subr.bf16.mxu0 0
    %1600 = vmatpush1.bf16.msra.mxu0 0
    %1601 = vmatprep.subr.bf16.mxu0 0
    %1602 = vmatpush1.bf16.msra.mxu0 0
    %1603 = vmatprep.subr.bf16.mxu0 0
    %1604 = vmatpush1.bf16.msra.mxu0 0
    %1605 = vmatprep.subr.bf16.mxu0 0
    %1606 = vmatpush1.bf16.msra.mxu0 0
    %1607 = vmatprep.subr.bf16.mxu0 0
    %1608 = vmatpush1.bf16.msra.mxu0 0
    %1609 = vmatprep.subr.bf16.mxu0 0
    %1610 = vmatpush1.bf16.msra.mxu0 0
    %1611 = vmatprep.subr.bf16.mxu0 0
    %1612 = vmatpush1.bf16.msra.mxu0 0
    %1613 = vmatprep.subr.bf16.mxu0 0
    %1614 = vmatpush1.bf16.msra.mxu0 0
    %1615 = vmatprep.subr.bf16.mxu0 0
    %1616 = vmatpush1.bf16.msra.mxu0 0
    %1617 = vmatprep.subr.bf16.mxu0 0
    %1618 = vmatpush1.bf16.msra.mxu0 0
    %1619 = vmatprep.mubr.bf16.mxu0 0
    %1620 = vmatmul.mubr.bf16.gmra.mrb[0].mxu0 %v1572
    %v1621 = vpop.f32.mrb[0].mxu0
    %v1622 = vadd.f32 0.0, %v1621
    %v1623 = vpop.f32.mrb[0].mxu0
    %v1624 = vpop.f32.mrb[0].mxu0
    %v1625 = vadd.f32 0.0, %v1624
    %v1626 = vpop.f32.mrb[0].mxu0
    %1627 = vmatprep.mubr.bf16.mxu0 0
    %1628 = vmatmul.mubr.bf16.gmra.mrb[0].mxu0 %v1575
    %v1629 = vpop.f32.mrb[0].mxu0
    %v1630 = vadd.f32 0.0, %v1629
    %v1631 = vpop.f32.mrb[0].mxu0
    %v1632 = vpop.f32.mrb[0].mxu0
    %v1633 = vadd.f32 0.0, %v1632
    %v1634 = vpop.f32.mrb[0].mxu0
    %1635 = vmatprep.mubr.bf16.mxu0 0
    %1636 = vmatmul.mubr.bf16.gmra.mrb[0].mxu0 %v1578
    %v1637 = vpop.f32.mrb[0].mxu0
    %v1638 = vadd.f32 0.0, %v1637
    %v1639 = vpop.f32.mrb[0].mxu0
    %v1640 = vpop.f32.mrb[0].mxu0
    %v1641 = vadd.f32 0.0, %v1640
    %v1642 = vpop.f32.mrb[0].mxu0
    %1643 = vmatprep.mubr.bf16.mxu0 0
    %1644 = vmatmul.mubr.bf16.gmra.mrb[0].mxu0 %v1581
    %v1645 = vpop.f32.mrb[0].mxu0
    %v1646 = vadd.f32 0.0, %v1645
    %v1647 = vpop.f32.mrb[0].mxu0
    %v1648 = vpop.f32.mrb[0].mxu0
    %v1649 = vadd.f32 0.0, %v1648
    %v1650 = vpop.f32.mrb[0].mxu0
    %1651 = vdwg.mxu0
    %v1655 = vunpack.c.l.b16 %v1538
    %v1656 = vunpack.c.l.b16 %v1539
    %v1657 = vunpack.c.l.b16 %v1540
    %v1658 = vpack.c.b16 %v1656, %v1655
    %v1659 = vpack.c.b16 %v1657, %v1657
    %v1662 = vsel %vm1570, %v1534, 0
    %v1665 = vsel %vm1570, %v1535, 0
    %v1668 = vsel %vm1570, %v1536, 0
    %v1671 = vsel %vm1570, %v1537, 0
    %v1674 = vsel %vm1583, %v1659, 0
    %1676 = vmatprep.subr.bf16.mxu0 0
    %1677 = vmatpush1.bf16.msra.mxu0 %v1658
    %1678 = vmatprep.subr.bf16.mxu0 0
    %1679 = vmatpush1.bf16.msra.mxu0 %v1674
    %1680 = vmatprep.subr.bf16.mxu0 0
    %1681 = vmatpush1.bf16.msra.mxu0 0
    %1682 = vmatprep.subr.bf16.mxu0 0
    %1683 = vmatpush1.bf16.msra.mxu0 0
    %1684 = vmatprep.subr.bf16.mxu0 0
    %1685 = vmatpush1.bf16.msra.mxu0 0
    %1686 = vmatprep.subr.bf16.mxu0 0
    %1687 = vmatpush1.bf16.msra.mxu0 0
    %1688 = vmatprep.subr.bf16.mxu0 0
    %1689 = vmatpush1.bf16.msra.mxu0 0
    %1690 = vmatprep.subr.bf16.mxu0 0
    %1691 = vmatpush1.bf16.msra.mxu0 0
    %1692 = vmatprep.subr.bf16.mxu0 0
    %1693 = vmatpush1.bf16.msra.mxu0 0
    %1694 = vmatprep.subr.bf16.mxu0 0
    %1695 = vmatpush1.bf16.msra.mxu0 0
    %1696 = vmatprep.subr.bf16.mxu0 0
    %1697 = vmatpush1.bf16.msra.mxu0 0
    %1698 = vmatprep.subr.bf16.mxu0 0
    %1699 = vmatpush1.bf16.msra.mxu0 0
    %1700 = vmatprep.subr.bf16.mxu0 0
    %1701 = vmatpush1.bf16.msra.mxu0 0
    %1702 = vmatprep.subr.bf16.mxu0 0
    %1703 = vmatpush1.bf16.msra.mxu0 0
    %1704 = vmatprep.subr.bf16.mxu0 0
    %1705 = vmatpush1.bf16.msra.mxu0 0
    %1706 = vmatprep.subr.bf16.mxu0 0
    %1707 = vmatpush1.bf16.msra.mxu0 0
    %1708 = vmatprep.mubr.bf16.mxu0 0
    %1709 = vmatmul.mubr.bf16.gmra.mrb[0].mxu0 %v1662
    %v1710 = vpop.f32.mrb[0].mxu0
    %v1711 = vadd.f32 %v1622, %v1710
    %v1712 = vpop.f32.mrb[0].mxu0
    %v1713 = vpop.f32.mrb[0].mxu0
    %v1714 = vadd.f32 %v1625, %v1713
    %v1715 = vpop.f32.mrb[0].mxu0
    %1716 = vmatprep.mubr.bf16.mxu0 0
    %1717 = vmatmul.mubr.bf16.gmra.mrb[0].mxu0 %v1665
    %v1718 = vpop.f32.mrb[0].mxu0
    %v1719 = vadd.f32 %v1630, %v1718
    %v1720 = vpop.f32.mrb[0].mxu0
    %v1721 = vpop.f32.mrb[0].mxu0
    %v1722 = vadd.f32 %v1633, %v1721
    %v1723 = vpop.f32.mrb[0].mxu0
    %1724 = vmatprep.mubr.bf16.mxu0 0
    %1725 = vmatmul.mubr.bf16.gmra.mrb[0].mxu0 %v1668
    %v1726 = vpop.f32.mrb[0].mxu0
    %v1727 = vadd.f32 %v1638, %v1726
    %v1728 = vpop.f32.mrb[0].mxu0
    %v1729 = vpop.f32.mrb[0].mxu0
    %v1730 = vadd.f32 %v1641, %v1729
    %v1731 = vpop.f32.mrb[0].mxu0
    %1732 = vmatprep.mubr.bf16.mxu0 0
    %1733 = vmatmul.mubr.bf16.gmra.mrb[0].mxu0 %v1671
    %v1734 = vpop.f32.mrb[0].mxu0
    %v1735 = vadd.f32 %v1646, %v1734
    %v1736 = vpop.f32.mrb[0].mxu0
    %v1737 = vpop.f32.mrb[0].mxu0
    %v1738 = vadd.f32 %v1649, %v1737
    %v1739 = vpop.f32.mrb[0].mxu0
    %1740 = vdwg.mxu0
    %v1741 = vld [vmem:[#allocation5 + $0x20] sm:$0xff]
    %s1742 = scalar_lea.vmem %s3, 24
    %v1743 = vld [vmem:[%s1742] sm:$0xf]
    %v1744 = vld [vmem:[%s1742 + $0x4] sm:$0xf]
    %v1745 = vld [vmem:[%s1742 + $0x8] sm:$0xf]
    %v1749 = vunpack.c.l.b16 %v1743
    %v1750 = vunpack.c.l.b16 %v1744
    %v1751 = vunpack.c.l.b16 %v1745
    %v1752 = vpack.c.b16 %v1750, %v1749
    %v1753 = vpack.c.b16 %v1751, %v1751
    %v1756 = vsel %vm1570, %v1741, 0
    %v1759 = vsel %vm1583, %v1753, 0
    %1761 = vmatprep.subr.bf16.mxu0 0
    %1762 = vmatpush1.bf16.msra.mxu0 %v1752
    %1763 = vmatprep.subr.bf16.mxu0 0
    %1764 = vmatpush1.bf16.msra.mxu0 %v1759
    %1765 = vmatprep.subr.bf16.mxu0 0
    %1766 = vmatpush1.bf16.msra.mxu0 0
    %1767 = vmatprep.subr.bf16.mxu0 0
    %1768 = vmatpush1.bf16.msra.mxu0 0
    %1769 = vmatprep.subr.bf16.mxu0 0
    %1770 = vmatpush1.bf16.msra.mxu0 0
    %1771 = vmatprep.subr.bf16.mxu0 0
    %1772 = vmatpush1.bf16.msra.mxu0 0
    %1773 = vmatprep.subr.bf16.mxu0 0
    %1774 = vmatpush1.bf16.msra.mxu0 0
    %1775 = vmatprep.subr.bf16.mxu0 0
    %1776 = vmatpush1.bf16.msra.mxu0 0
    %1777 = vmatprep.subr.bf16.mxu0 0
    %1778 = vmatpush1.bf16.msra.mxu0 0
    %1779 = vmatprep.subr.bf16.mxu0 0
    %1780 = vmatpush1.bf16.msra.mxu0 0
    %1781 = vmatprep.subr.bf16.mxu0 0
    %1782 = vmatpush1.bf16.msra.mxu0 0
    %1783 = vmatprep.subr.bf16.mxu0 0
    %1784 = vmatpush1.bf16.msra.mxu0 0
    %1785 = vmatprep.subr.bf16.mxu0 0
    %1786 = vmatpush1.bf16.msra.mxu0 0
    %1787 = vmatprep.subr.bf16.mxu0 0
    %1788 = vmatpush1.bf16.msra.mxu0 0
    %1789 = vmatprep.subr.bf16.mxu0 0
    %1790 = vmatpush1.bf16.msra.mxu0 0
    %1791 = vmatprep.subr.bf16.mxu0 0
    %1792 = vmatpush1.bf16.msra.mxu0 0
    %1793 = vmatprep.mubr.bf16.mxu0 0
    %1794 = vmatmul.mubr.bf16.gmra.mrb[0].mxu0 %v1665
    %v1795 = vpop.f32.mrb[0].mxu0
    %v1796 = vadd.f32 0.0, %v1795
    %v1797 = vpop.f32.mrb[0].mxu0
    %v1798 = vpop.f32.mrb[0].mxu0
    %v1799 = vadd.f32 0.0, %v1798
    %v1800 = vpop.f32.mrb[0].mxu0
    %1801 = vmatprep.mubr.bf16.mxu0 0
    %1802 = vmatmul.mubr.bf16.gmra.mrb[0].mxu0 %v1668
    %v1803 = vpop.f32.mrb[0].mxu0
    %v1804 = vadd.f32 0.0, %v1803
    %v1805 = vpop.f32.mrb[0].mxu0
    %v1806 = vpop.f32.mrb[0].mxu0
    %v1807 = vadd.f32 0.0, %v1806
    %v1808 = vpop.f32.mrb[0].mxu0
    %1809 = vmatprep.mubr.bf16.mxu0 0
    %1810 = vmatmul.mubr.bf16.gmra.mrb[0].mxu0 %v1671
    %v1811 = vpop.f32.mrb[0].mxu0
    %v1812 = vadd.f32 0.0, %v1811
    %v1813 = vpop.f32.mrb[0].mxu0
    %v1814 = vpop.f32.mrb[0].mxu0
    %v1815 = vadd.f32 0.0, %v1814
    %v1816 = vpop.f32.mrb[0].mxu0
    %1817 = vmatprep.mubr.bf16.mxu0 0
    %1818 = vmatmul.mubr.bf16.gmra.mrb[0].mxu0 %v1756
    %v1819 = vpop.f32.mrb[0].mxu0
    %v1820 = vadd.f32 0.0, %v1819
    %v1821 = vpop.f32.mrb[0].mxu0
    %v1822 = vpop.f32.mrb[0].mxu0
    %v1823 = vadd.f32 0.0, %v1822
    %v1824 = vpop.f32.mrb[0].mxu0
    %1825 = vdwg.mxu0
    %v1826 = vadd.f32 %v1711, %v1796
    %v1827 = vadd.f32 %v1714, %v1799
    %v1828 = vadd.f32 %v1719, %v1804
    %v1829 = vadd.f32 %v1722, %v1807
    %v1830 = vadd.f32 %v1727, %v1812
    %v1831 = vadd.f32 %v1730, %v1815
    %v1832 = vadd.f32 %v1735, %v1820
    %v1833 = vadd.f32 %v1738, %v1823
    %v1834 = vld [vmem:[%s4] sm:$0x1]
    %v1836 = vlaneseq
    %v1837 = vshrl.u32 %v1836, 7
    %v1838 = vsub.s32 0, %v1837
    %v1839 = vrot.slane %v1834, %v1838
    %v1841 = vadd.f32 %v1826, %v1839
    %v1842 = vadd.f32 %v1827, %v1839
    %v1843 = vadd.f32 %v1828, %v1839
    %v1844 = vadd.f32 %v1829, %v1839
    %v1845 = vadd.f32 %v1830, %v1839
    %v1846 = vadd.f32 %v1831, %v1839
    %v1847 = vadd.f32 %v1832, %v1839
    %v1848 = vadd.f32 %v1833, %v1839
    %v1849 = vmax.f32 %v1841, 0.0
    %v1850 = vmax.f32 %v1842, 0.0
    %v1851 = vmax.f32 %v1843, 0.0
    %v1852 = vmax.f32 %v1844, 0.0
    %v1853 = vmax.f32 %v1845, 0.0
    %v1854 = vmax.f32 %v1846, 0.0
    %v1855 = vmax.f32 %v1847, 0.0
    %v1856 = vmax.f32 %v1848, 0.0
    %v1857 = vpack.c.bf16 %v1850, %v1849
    %v1858 = vpack.c.bf16 %v1852, %v1851
    %v1859 = vpack.c.bf16 %v1854, %v1853
    %v1860 = vpack.c.bf16 %v1856, %v1855
    %v1865 = vunpack.c.l.b16 %v1857
    %v1866 = vunpack.c.h.b16 %v1857
    %v1867 = vunpack.c.l.b16 %v1858
    %v1868 = vunpack.c.h.b16 %v1858
    %v1869 = vunpack.c.l.b16 %v1859
    %v1870 = vunpack.c.h.b16 %v1859
    %v1871 = vunpack.c.l.b16 %v1860
    %v1872 = vunpack.c.h.b16 %v1860
    %v1873 = vpack.c.b16 %v1865, %v1865
    %v1874 = vpack.c.b16 %v1866, %v1866
    %v1875 = vpack.c.b16 %v1867, %v1867
    %v1876 = vpack.c.b16 %v1868, %v1868
    %v1877 = vpack.c.b16 %v1869, %v1869
    %v1878 = vpack.c.b16 %v1870, %v1870
    %v1879 = vpack.c.b16 %v1871, %v1871
    %v1880 = vpack.c.b16 %v1872, %v1872
    %1889 = vst.msk [vmem:[%s5] sm:$0xf] %vm107, %v1873
    %1890 = vst.msk [vmem:[%s5 + $0x4] sm:$0xf] %vm107, %v1874
    %1891 = vst.msk [vmem:[%s5 + $0x8] sm:$0xf] %vm107, %v1875
    %1892 = vst.msk [vmem:[%s5 + $0xc] sm:$0xf] %vm107, %v1876
    %1893 = vst.msk [vmem:[%s5 + $0x10] sm:$0xf] %vm107, %v1877
    %1894 = vst.msk [vmem:[%s5 + $0x14] sm:$0xf] %vm107, %v1878
    %1895 = vst.msk [vmem:[%s5 + $0x18] sm:$0xf] %vm107, %v1879
    %1896 = vst.msk [vmem:[%s5 + $0x1c] sm:$0xf] %vm107, %v1880
    %s1897 = scalar_lea.vmem [#allocation6], 64
    %v1898 = vld [vmem:[%s1897] sm:$0xf]
    %v1899 = vld [vmem:[%s1897 + $0x4] sm:$0xf]
    %v1900 = vld [vmem:[%s1897 + $0x8] sm:$0xf]
    %v1901 = vld [vmem:[%s1897 + $0xc] sm:$0xf]
    %v1902 = vld [vmem:[%s1897 + $0x10] sm:$0xf]
    %v1903 = vld [vmem:[%s1897 + $0x14] sm:$0xf]
    %v1904 = vld [vmem:[%s1897 + $0x18] sm:$0xf]
    %v1905 = vld [vmem:[%s1897 + $0x1c] sm:$0xf]
    %v1906 = vld [vmem:[%s1897 + $0x20] sm:$0xf]
    %v1907 = vld [vmem:[%s1897 + $0x24] sm:$0xf]
    %v1908 = vld [vmem:[%s1897 + $0x28] sm:$0xf]
    %v1909 = vld [vmem:[%s1897 + $0x2c] sm:$0xf]
    %v1910 = vld [vmem:[%s1897 + $0x30] sm:$0xf]
    %v1911 = vld [vmem:[%s1897 + $0x34] sm:$0xf]
    %v1912 = vld [vmem:[%s1897 + $0x38] sm:$0xf]
    %v1913 = vld [vmem:[%s1897 + $0x3c] sm:$0xf]
    %v1914 = vunpack.c.l.bf16 %v1898
    %v1915 = vunpack.c.l.bf16 %v1899
    %v1916 = vunpack.c.l.bf16 %v1900
    %v1917 = vunpack.c.l.bf16 %v1901
    %v1918 = vunpack.c.l.bf16 %v1902
    %v1919 = vunpack.c.l.bf16 %v1903
    %v1920 = vunpack.c.l.bf16 %v1904
    %v1921 = vunpack.c.l.bf16 %v1905
    %v1922 = vunpack.c.l.bf16 %v1906
    %v1923 = vunpack.c.l.bf16 %v1907
    %v1924 = vunpack.c.l.bf16 %v1908
    %v1925 = vunpack.c.l.bf16 %v1909
    %v1926 = vunpack.c.l.bf16 %v1910
    %v1927 = vunpack.c.l.bf16 %v1911
    %v1928 = vunpack.c.l.bf16 %v1912
    %v1929 = vunpack.c.l.bf16 %v1913
    %v1930 = vmax.f32 %v1914, %v1915
    %v1931 = vmax.f32 %v1916, %v1917
    %v1932 = vmax.f32 %v1918, %v1919
    %v1933 = vmax.f32 %v1920, %v1921
    %v1934 = vmax.f32 %v1922, %v1923
    %v1935 = vmax.f32 %v1924, %v1925
    %v1936 = vmax.f32 %v1926, %v1927
    %v1937 = vmax.f32 %v1928, %v1929
    %1946 = vrot.lane.b32.xlu0 %v1930, 124
    %v1947 = vpop.permute.xlu0 %1946
    %1948 = vrot.lane.b32.xlu0 %v1931, 124
    %v1949 = vpop.permute.xlu0 %1948
    %1950 = vrot.lane.b32.xlu0 %v1932, 124
    %v1951 = vpop.permute.xlu0 %1950
    %1952 = vrot.lane.b32.xlu0 %v1933, 124
    %v1953 = vpop.permute.xlu0 %1952
    %1954 = vrot.lane.b32.xlu0 %v1934, 124
    %v1955 = vpop.permute.xlu0 %1954
    %1956 = vrot.lane.b32.xlu0 %v1935, 124
    %v1957 = vpop.permute.xlu0 %1956
    %1958 = vrot.lane.b32.xlu0 %v1936, 124
    %v1959 = vpop.permute.xlu0 %1958
    %1960 = vrot.lane.b32.xlu0 %v1937, 124
    %v1961 = vpop.permute.xlu0 %1960
    %v1970 = vmax.f32 %v1930, %v1947
    %v1971 = vmax.f32 %v1931, %v1949
    %v1972 = vmax.f32 %v1932, %v1951
    %v1973 = vmax.f32 %v1933, %v1953
    %v1974 = vmax.f32 %v1934, %v1955
    %v1975 = vmax.f32 %v1935, %v1957
    %v1976 = vmax.f32 %v1936, %v1959
    %v1977 = vmax.f32 %v1937, %v1961
    %v1978 = vpack.c.bf16 %v1970, %v1970
    %v1979 = vpack.c.bf16 %v1971, %v1971
    %v1980 = vpack.c.bf16 %v1972, %v1972
    %v1981 = vpack.c.bf16 %v1973, %v1973
    %v1982 = vpack.c.bf16 %v1974, %v1974
    %v1983 = vpack.c.bf16 %v1975, %v1975
    %v1984 = vpack.c.bf16 %v1976, %v1976
    %v1985 = vpack.c.bf16 %v1977, %v1977
    %v1994 = vunpack.c.l.b16 %v1978
    %v1995 = vunpack.c.l.b16 %v1979
    %v1996 = vunpack.c.l.b16 %v1980
    %v1997 = vunpack.c.l.b16 %v1981
    %v1998 = vunpack.c.l.b16 %v1982
    %v1999 = vunpack.c.l.b16 %v1983
    %v2000 = vunpack.c.l.b16 %v1984
    %v2001 = vunpack.c.l.b16 %v1985
    %v2002 = vpack.c.b16 %v1994, %v1994
    %v2003 = vpack.c.b16 %v1995, %v1995
    %v2004 = vpack.c.b16 %v1996, %v1996
    %v2005 = vpack.c.b16 %v1997, %v1997
    %v2006 = vpack.c.b16 %v1998, %v1998
    %v2007 = vpack.c.b16 %v1999, %v1999
    %v2008 = vpack.c.b16 %v2000, %v2000
    %v2009 = vpack.c.b16 %v2001, %v2001
    %v2011 = vshrl.u32 %v2002, 16
    %v2013 = vrot.slane %v2011, 7
    %v2014 = vshll.u32 %v2002, 16
    %v2016 = vor.u32 %v2013, %v2014
    %v2017 = vrot.slane %v2013, 4
    %v2019 = vshrl.u32 %v2003, 16
    %v2021 = vrot.slane %v2019, 7
    %v2022 = vshll.u32 %v2003, 16
    %v2024 = vor.u32 %v2021, %v2022
    %v2025 = vrot.slane %v2021, 4
    %v2027 = vshrl.u32 %v2004, 16
    %v2029 = vrot.slane %v2027, 7
    %v2030 = vshll.u32 %v2004, 16
    %v2032 = vor.u32 %v2029, %v2030
    %v2033 = vrot.slane %v2029, 4
    %v2035 = vshrl.u32 %v2005, 16
    %v2037 = vrot.slane %v2035, 7
    %v2038 = vshll.u32 %v2005, 16
    %v2040 = vor.u32 %v2037, %v2038
    %v2041 = vrot.slane %v2037, 4
    %v2043 = vshrl.u32 %v2006, 16
    %v2045 = vrot.slane %v2043, 7
    %v2046 = vshll.u32 %v2006, 16
    %v2048 = vor.u32 %v2045, %v2046
    %v2049 = vrot.slane %v2045, 4
    %v2051 = vshrl.u32 %v2007, 16
    %v2053 = vrot.slane %v2051, 7
    %v2054 = vshll.u32 %v2007, 16
    %v2056 = vor.u32 %v2053, %v2054
    %v2057 = vrot.slane %v2053, 4
    %v2059 = vshrl.u32 %v2008, 16
    %v2061 = vrot.slane %v2059, 7
    %v2062 = vshll.u32 %v2008, 16
    %v2064 = vor.u32 %v2061, %v2062
    %v2065 = vrot.slane %v2061, 4
    %v2067 = vshrl.u32 %v2009, 16
    %v2069 = vrot.slane %v2067, 7
    %v2070 = vshll.u32 %v2009, 16
    %v2072 = vor.u32 %v2069, %v2070
    %v2073 = vrot.slane %v2069, 4
    %v2090 = vld [vmem:[%s369] sm:$0xf]
    %v2091 = vsel %vm371, %v2016, %v2090
    %2092 = vst [vmem:[%s369] sm:$0xf] %v2091
    %v2093 = vld [vmem:[%s369 + $0x4] sm:$0x1]
    %v2094 = vsel %vm44, %v2017, %v2093
    %2095 = vst [vmem:[%s369 + $0x4] sm:$0x1] %v2094
    %v2096 = vld [vmem:[%s369 + $0x8] sm:$0xf]
    %v2097 = vsel %vm371, %v2024, %v2096
    %2098 = vst [vmem:[%s369 + $0x8] sm:$0xf] %v2097
    %v2099 = vld [vmem:[%s369 + $0xc] sm:$0x1]
    %v2100 = vsel %vm44, %v2025, %v2099
    %2101 = vst [vmem:[%s369 + $0xc] sm:$0x1] %v2100
    %v2102 = vld [vmem:[%s369 + $0x10] sm:$0xf]
    %v2103 = vsel %vm371, %v2032, %v2102
    %2104 = vst [vmem:[%s369 + $0x10] sm:$0xf] %v2103
    %v2105 = vld [vmem:[%s369 + $0x14] sm:$0x1]
    %v2106 = vsel %vm44, %v2033, %v2105
    %2107 = vst [vmem:[%s369 + $0x14] sm:$0x1] %v2106
    %v2108 = vld [vmem:[%s369 + $0x18] sm:$0xf]
    %v2109 = vsel %vm371, %v2040, %v2108
    %2110 = vst [vmem:[%s369 + $0x18] sm:$0xf] %v2109
    %v2111 = vld [vmem:[%s369 + $0x1c] sm:$0x1]
    %v2112 = vsel %vm44, %v2041, %v2111
    %2113 = vst [vmem:[%s369 + $0x1c] sm:$0x1] %v2112
    %v2114 = vld [vmem:[%s369 + $0x20] sm:$0xf]
    %v2115 = vsel %vm371, %v2048, %v2114
    %2116 = vst [vmem:[%s369 + $0x20] sm:$0xf] %v2115
    %v2117 = vld [vmem:[%s369 + $0x24] sm:$0x1]
    %v2118 = vsel %vm44, %v2049, %v2117
    %2119 = vst [vmem:[%s369 + $0x24] sm:$0x1] %v2118
    %v2120 = vld [vmem:[%s369 + $0x28] sm:$0xf]
    %v2121 = vsel %vm371, %v2056, %v2120
    %2122 = vst [vmem:[%s369 + $0x28] sm:$0xf] %v2121
    %v2123 = vld [vmem:[%s369 + $0x2c] sm:$0x1]
    %v2124 = vsel %vm44, %v2057, %v2123
    %2125 = vst [vmem:[%s369 + $0x2c] sm:$0x1] %v2124
    %v2126 = vld [vmem:[%s369 + $0x30] sm:$0xf]
    %v2127 = vsel %vm371, %v2064, %v2126
    %2128 = vst [vmem:[%s369 + $0x30] sm:$0xf] %v2127
    %v2129 = vld [vmem:[%s369 + $0x34] sm:$0x1]
    %v2130 = vsel %vm44, %v2065, %v2129
    %2131 = vst [vmem:[%s369 + $0x34] sm:$0x1] %v2130
    %v2132 = vld [vmem:[%s369 + $0x38] sm:$0xf]
    %v2133 = vsel %vm371, %v2072, %v2132
    %2134 = vst [vmem:[%s369 + $0x38] sm:$0xf] %v2133
    %v2135 = vld [vmem:[%s369 + $0x3c] sm:$0x1]
    %v2136 = vsel %vm44, %v2073, %v2135
    %2137 = vst [vmem:[%s369 + $0x3c] sm:$0x1] %v2136
    %v2138 = vld [vmem:[#allocation2] sm:$0xf]
    %v2139 = vld [vmem:[#allocation2 + $0x4] sm:$0x1]
    %v2140 = vld [vmem:[#allocation2 + $0x8] sm:$0xf]
    %v2141 = vld [vmem:[#allocation2 + $0xc] sm:$0x1]
    %v2142 = vld [vmem:[#allocation2 + $0x10] sm:$0xf]
    %v2143 = vld [vmem:[#allocation2 + $0x14] sm:$0x1]
    %v2144 = vld [vmem:[#allocation2 + $0x18] sm:$0xf]
    %v2145 = vld [vmem:[#allocation2 + $0x1c] sm:$0x1]
    %v2146 = vld [vmem:[#allocation2 + $0x20] sm:$0xf]
    %v2147 = vld [vmem:[#allocation2 + $0x24] sm:$0x1]
    %v2148 = vld [vmem:[#allocation2 + $0x28] sm:$0xf]
    %v2149 = vld [vmem:[#allocation2 + $0x2c] sm:$0x1]
    %v2150 = vld [vmem:[#allocation2 + $0x30] sm:$0xf]
    %v2151 = vld [vmem:[#allocation2 + $0x34] sm:$0x1]
    %v2152 = vld [vmem:[#allocation2 + $0x38] sm:$0xf]
    %v2153 = vld [vmem:[#allocation2 + $0x3c] sm:$0x1]
    %v2154 = vld [vmem:[#allocation2 + $0x40] sm:$0xf]
    %v2155 = vld [vmem:[#allocation2 + $0x44] sm:$0x1]
    %v2156 = vld [vmem:[#allocation2 + $0x48] sm:$0xf]
    %v2157 = vld [vmem:[#allocation2 + $0x4c] sm:$0x1]
    %v2168 = vunpack.c.l.b16 %v2138
    %v2169 = vunpack.c.l.b16 %v2140
    %v2170 = vunpack.c.l.b16 %v2142
    %v2171 = vunpack.c.l.b16 %v2144
    %v2172 = vunpack.c.l.b16 %v2146
    %v2173 = vunpack.c.l.b16 %v2148
    %v2174 = vunpack.c.l.b16 %v2150
    %v2175 = vunpack.c.l.b16 %v2152
    %v2176 = vunpack.c.l.b16 %v2154
    %v2177 = vunpack.c.l.b16 %v2156
    %v2178 = vpack.c.b16 %v2169, %v2168
    %v2179 = vpack.c.b16 %v2171, %v2170
    %v2180 = vpack.c.b16 %v2173, %v2172
    %v2181 = vpack.c.b16 %v2175, %v2174
    %v2182 = vpack.c.b16 %v2177, %v2176
    %2188 = vst.msk [vmem:[#allocation3] sm:$0xff] %vm470, %v2178
    %2189 = vst.msk [vmem:[#allocation3 + $0x8] sm:$0xff] %vm470, %v2179
    %2190 = vst.msk [vmem:[#allocation3 + $0x10] sm:$0xff] %vm470, %v2180
    %2191 = vst.msk [vmem:[#allocation3 + $0x18] sm:$0xff] %vm470, %v2181
    %2192 = vst.msk [vmem:[#allocation3 + $0x20] sm:$0xff] %vm470, %v2182
    %v2194 = vshrl.u32 %v2138, 16
    %v2196 = vrot.slane %v2194, 4
    %v2197 = vshll.u32 %v2138, 16
    %v2199 = vrot.slane %v2197, 5
    %v2200 = vor.u32 %v2196, %v2199
    %v2201 = vrot.slane %v2200, 4
    %v2203 = vshll.u32 %v2139, 16
    %v2205 = vrot.slane %v2203, 5
    %v2206 = vsel %vm478, %v2201, %v2205
    %v2208 = vshrl.u32 %v2140, 16
    %v2210 = vrot.slane %v2208, 4
    %v2211 = vshll.u32 %v2140, 16
    %v2213 = vrot.slane %v2211, 5
    %v2214 = vor.u32 %v2210, %v2213
    %v2215 = vrot.slane %v2214, 4
    %v2217 = vshll.u32 %v2141, 16
    %v2219 = vrot.slane %v2217, 5
    %v2220 = vsel %vm478, %v2215, %v2219
    %v2222 = vshrl.u32 %v2142, 16
    %v2224 = vrot.slane %v2222, 4
    %v2225 = vshll.u32 %v2142, 16
    %v2227 = vrot.slane %v2225, 5
    %v2228 = vor.u32 %v2224, %v2227
    %v2229 = vrot.slane %v2228, 4
    %v2231 = vshll.u32 %v2143, 16
    %v2233 = vrot.slane %v2231, 5
    %v2234 = vsel %vm478, %v2229, %v2233
    %v2236 = vshrl.u32 %v2144, 16
    %v2238 = vrot.slane %v2236, 4
    %v2239 = vshll.u32 %v2144, 16
    %v2241 = vrot.slane %v2239, 5
    %v2242 = vor.u32 %v2238, %v2241
    %v2243 = vrot.slane %v2242, 4
    %v2245 = vshll.u32 %v2145, 16
    %v2247 = vrot.slane %v2245, 5
    %v2248 = vsel %vm478, %v2243, %v2247
    %v2250 = vshrl.u32 %v2146, 16
    %v2252 = vrot.slane %v2250, 4
    %v2253 = vshll.u32 %v2146, 16
    %v2255 = vrot.slane %v2253, 5
    %v2256 = vor.u32 %v2252, %v2255
    %v2257 = vrot.slane %v2256, 4
    %v2259 = vshll.u32 %v2147, 16
    %v2261 = vrot.slane %v2259, 5
    %v2262 = vsel %vm478, %v2257, %v2261
    %v2264 = vshrl.u32 %v2148, 16
    %v2266 = vrot.slane %v2264, 4
    %v2267 = vshll.u32 %v2148, 16
    %v2269 = vrot.slane %v2267, 5
    %v2270 = vor.u32 %v2266, %v2269
    %v2271 = vrot.slane %v2270, 4
    %v2273 = vshll.u32 %v2149, 16
    %v2275 = vrot.slane %v2273, 5
    %v2276 = vsel %vm478, %v2271, %v2275
    %v2278 = vshrl.u32 %v2150, 16
    %v2280 = vrot.slane %v2278, 4
    %v2281 = vshll.u32 %v2150, 16
    %v2283 = vrot.slane %v2281, 5
    %v2284 = vor.u32 %v2280, %v2283
    %v2285 = vrot.slane %v2284, 4
    %v2287 = vshll.u32 %v2151, 16
    %v2289 = vrot.slane %v2287, 5
    %v2290 = vsel %vm478, %v2285, %v2289
    %v2292 = vshrl.u32 %v2152, 16
    %v2294 = vrot.slane %v2292, 4
    %v2295 = vshll.u32 %v2152, 16
    %v2297 = vrot.slane %v2295, 5
    %v2298 = vor.u32 %v2294, %v2297
    %v2299 = vrot.slane %v2298, 4
    %v2301 = vshll.u32 %v2153, 16
    %v2303 = vrot.slane %v2301, 5
    %v2304 = vsel %vm478, %v2299, %v2303
    %v2306 = vshrl.u32 %v2154, 16
    %v2308 = vrot.slane %v2306, 4
    %v2309 = vshll.u32 %v2154, 16
    %v2311 = vrot.slane %v2309, 5
    %v2312 = vor.u32 %v2308, %v2311
    %v2313 = vrot.slane %v2312, 4
    %v2315 = vshll.u32 %v2155, 16
    %v2317 = vrot.slane %v2315, 5
    %v2318 = vsel %vm478, %v2313, %v2317
    %v2320 = vshrl.u32 %v2156, 16
    %v2322 = vrot.slane %v2320, 4
    %v2323 = vshll.u32 %v2156, 16
    %v2325 = vrot.slane %v2323, 5
    %v2326 = vor.u32 %v2322, %v2325
    %v2327 = vrot.slane %v2326, 4
    %v2329 = vshll.u32 %v2157, 16
    %v2331 = vrot.slane %v2329, 5
    %v2332 = vsel %vm478, %v2327, %v2331
    %v2333 = vunpack.c.l.b16 %v2206
    %v2334 = vunpack.c.l.b16 %v2220
    %v2335 = vunpack.c.l.b16 %v2234
    %v2336 = vunpack.c.l.b16 %v2248
    %v2337 = vunpack.c.l.b16 %v2262
    %v2338 = vunpack.c.l.b16 %v2276
    %v2339 = vunpack.c.l.b16 %v2290
    %v2340 = vunpack.c.l.b16 %v2304
    %v2341 = vunpack.c.l.b16 %v2318
    %v2342 = vunpack.c.l.b16 %v2332
    %v2343 = vpack.c.b16 %v2334, %v2333
    %v2344 = vpack.c.b16 %v2336, %v2335
    %v2345 = vpack.c.b16 %v2338, %v2337
    %v2346 = vpack.c.b16 %v2340, %v2339
    %v2347 = vpack.c.b16 %v2342, %v2341
    %2348 = vrot.lane.b32.xlu0 %v2343, 4
    %v2349 = vpop.permute.xlu0 %2348
    %2350 = vrot.lane.b32.xlu0 %v2344, 4
    %v2351 = vpop.permute.xlu0 %2350
    %2352 = vrot.lane.b32.xlu0 %v2345, 4
    %v2353 = vpop.permute.xlu0 %2352
    %2354 = vrot.lane.b32.xlu0 %v2346, 4
    %v2355 = vpop.permute.xlu0 %2354
    %2356 = vrot.lane.b32.xlu0 %v2347, 4
    %v2357 = vpop.permute.xlu0 %2356
    %2363 = vst.msk [vmem:[#allocation3] sm:$0xff] %vm649, %v2349
    %2364 = vst.msk [vmem:[#allocation3 + $0x8] sm:$0xff] %vm649, %v2351
    %2365 = vst.msk [vmem:[#allocation3 + $0x10] sm:$0xff] %vm649, %v2353
    %2366 = vst.msk [vmem:[#allocation3 + $0x18] sm:$0xff] %vm649, %v2355
    %2367 = vst.msk [vmem:[#allocation3 + $0x20] sm:$0xff] %vm649, %v2357
    %v2378 = vrot.slane %v2138, 5
    %v2379 = vrot.slane %v2378, 4
    %v2380 = vrot.slane %v2139, 5
    %v2381 = vsel %vm667, %v2379, %v2380
    %v2382 = vrot.slane %v2140, 5
    %v2383 = vrot.slane %v2382, 4
    %v2384 = vrot.slane %v2141, 5
    %v2385 = vsel %vm667, %v2383, %v2384
    %v2386 = vrot.slane %v2142, 5
    %v2387 = vrot.slane %v2386, 4
    %v2388 = vrot.slane %v2143, 5
    %v2389 = vsel %vm667, %v2387, %v2388
    %v2390 = vrot.slane %v2144, 5
    %v2391 = vrot.slane %v2390, 4
    %v2392 = vrot.slane %v2145, 5
    %v2393 = vsel %vm667, %v2391, %v2392
    %v2394 = vrot.slane %v2146, 5
    %v2395 = vrot.slane %v2394, 4
    %v2396 = vrot.slane %v2147, 5
    %v2397 = vsel %vm667, %v2395, %v2396
    %v2398 = vrot.slane %v2148, 5
    %v2399 = vrot.slane %v2398, 4
    %v2400 = vrot.slane %v2149, 5
    %v2401 = vsel %vm667, %v2399, %v2400
    %v2402 = vrot.slane %v2150, 5
    %v2403 = vrot.slane %v2402, 4
    %v2404 = vrot.slane %v2151, 5
    %v2405 = vsel %vm667, %v2403, %v2404
    %v2406 = vrot.slane %v2152, 5
    %v2407 = vrot.slane %v2406, 4
    %v2408 = vrot.slane %v2153, 5
    %v2409 = vsel %vm667, %v2407, %v2408
    %v2410 = vrot.slane %v2154, 5
    %v2411 = vrot.slane %v2410, 4
    %v2412 = vrot.slane %v2155, 5
    %v2413 = vsel %vm667, %v2411, %v2412
    %v2414 = vrot.slane %v2156, 5
    %v2415 = vrot.slane %v2414, 4
    %v2416 = vrot.slane %v2157, 5
    %v2417 = vsel %vm667, %v2415, %v2416
    %v2418 = vunpack.c.l.b16 %v2381
    %v2419 = vunpack.c.l.b16 %v2385
    %v2420 = vunpack.c.l.b16 %v2389
    %v2421 = vunpack.c.l.b16 %v2393
    %v2422 = vunpack.c.l.b16 %v2397
    %v2423 = vunpack.c.l.b16 %v2401
    %v2424 = vunpack.c.l.b16 %v2405
    %v2425 = vunpack.c.l.b16 %v2409
    %v2426 = vunpack.c.l.b16 %v2413
    %v2427 = vunpack.c.l.b16 %v2417
    %v2428 = vpack.c.b16 %v2419, %v2418
    %v2429 = vpack.c.b16 %v2421, %v2420
    %v2430 = vpack.c.b16 %v2423, %v2422
    %v2431 = vpack.c.b16 %v2425, %v2424
    %v2432 = vpack.c.b16 %v2427, %v2426
    %2433 = vrot.lane.b32.xlu0 %v2428, 8
    %v2434 = vpop.permute.xlu0 %2433
    %2435 = vrot.lane.b32.xlu0 %v2429, 8
    %v2436 = vpop.permute.xlu0 %2435
    %2437 = vrot.lane.b32.xlu0 %v2430, 8
    %v2438 = vpop.permute.xlu0 %2437
    %2439 = vrot.lane.b32.xlu0 %v2431, 8
    %v2440 = vpop.permute.xlu0 %2439
    %2441 = vrot.lane.b32.xlu0 %v2432, 8
    %v2442 = vpop.permute.xlu0 %2441
    %2448 = vst.msk [vmem:[#allocation3] sm:$0xff] %vm738, %v2434
    %2449 = vst.msk [vmem:[#allocation3 + $0x8] sm:$0xff] %vm738, %v2436
    %2450 = vst.msk [vmem:[#allocation3 + $0x10] sm:$0xff] %vm738, %v2438
    %2451 = vst.msk [vmem:[#allocation3 + $0x18] sm:$0xff] %vm738, %v2440
    %2452 = vst.msk [vmem:[#allocation3 + $0x20] sm:$0xff] %vm738, %v2442
    %v2453 = vld [vmem:[#allocation3] sm:$0xff]
    %v2454 = vld [vmem:[#allocation3 + $0x8] sm:$0xff]
    %v2455 = vld [vmem:[#allocation3 + $0x10] sm:$0xff]
    %v2456 = vld [vmem:[#allocation3 + $0x18] sm:$0xff]
    %v2457 = vld [vmem:[%s1] sm:$0xf]
    %v2458 = vld [vmem:[%s1 + $0x4] sm:$0x3]
    %v2459 = vld [vmem:[#allocation3] sm:$0xf0]
    %v2460 = vld [vmem:[#allocation3 + $0x20] sm:$0xf]
    %v2461 = vld [vmem:[%s752] sm:$0xf]
    %v2462 = vld [vmem:[%s752 + $0x4] sm:$0x3]
    %v2468 = vrot.slane %v2459, 4
    %v2469 = vrot.slane %v2454, 4
    %v2470 = vsel %vm760, %v2468, %v2469
    %v2471 = vrot.slane %v2455, 4
    %v2472 = vsel %vm760, %v2469, %v2471
    %v2473 = vrot.slane %v2456, 4
    %v2474 = vsel %vm760, %v2471, %v2473
    %v2475 = vrot.slane %v2460, 4
    %v2476 = vsel %vm760, %v2473, %v2475
    %v2479 = vunpack.c.l.b16 %v2461
    %v2480 = vunpack.c.l.b16 %v2462
    %v2481 = vpack.c.b16 %v2480, %v2479
    %v2483 = vsel %vm775, %v2470, 0
    %v2486 = vsel %vm775, %v2472, 0
    %v2489 = vsel %vm775, %v2474, 0
    %v2492 = vsel %vm775, %v2476, 0
    %v2495 = vsel %vm788, %v2481, 0
    %2497 = vmatprep.subr.bf16.mxu0 0
    %2498 = vmatpush1.bf16.msra.mxu0 %v2495
    %2499 = vmatprep.subr.bf16.mxu0 0
    %2500 = vmatpush1.bf16.msra.mxu0 0
    %2501 = vmatprep.subr.bf16.mxu0 0
    %2502 = vmatpush1.bf16.msra.mxu0 0
    %2503 = vmatprep.subr.bf16.mxu0 0
    %2504 = vmatpush1.bf16.msra.mxu0 0
    %2505 = vmatprep.subr.bf16.mxu0 0
    %2506 = vmatpush1.bf16.msra.mxu0 0
    %2507 = vmatprep.subr.bf16.mxu0 0
    %2508 = vmatpush1.bf16.msra.mxu0 0
    %2509 = vmatprep.subr.bf16.mxu0 0
    %2510 = vmatpush1.bf16.msra.mxu0 0
    %2511 = vmatprep.subr.bf16.mxu0 0
    %2512 = vmatpush1.bf16.msra.mxu0 0
    %2513 = vmatprep.subr.bf16.mxu0 0
    %2514 = vmatpush1.bf16.msra.mxu0 0
    %2515 = vmatprep.subr.bf16.mxu0 0
    %2516 = vmatpush1.bf16.msra.mxu0 0
    %2517 = vmatprep.subr.bf16.mxu0 0
    %2518 = vmatpush1.bf16.msra.mxu0 0
    %2519 = vmatprep.subr.bf16.mxu0 0
    %2520 = vmatpush1.bf16.msra.mxu0 0
    %2521 = vmatprep.subr.bf16.mxu0 0
    %2522 = vmatpush1.bf16.msra.mxu0 0
    %2523 = vmatprep.subr.bf16.mxu0 0
    %2524 = vmatpush1.bf16.msra.mxu0 0
    %2525 = vmatprep.subr.bf16.mxu0 0
    %2526 = vmatpush1.bf16.msra.mxu0 0
    %2527 = vmatprep.subr.bf16.mxu0 0
    %2528 = vmatpush1.bf16.msra.mxu0 0
    %2529 = vmatprep.mubr.bf16.mxu0 0
    %2530 = vmatmul.mubr.bf16.gmra.mrb[0].mxu0 %v2483
    %v2531 = vpop.f32.mrb[0].mxu0
    %v2532 = vadd.f32 0.0, %v2531
    %v2533 = vpop.f32.mrb[0].mxu0
    %v2534 = vpop.f32.mrb[0].mxu0
    %v2535 = vadd.f32 0.0, %v2534
    %v2536 = vpop.f32.mrb[0].mxu0
    %2537 = vmatprep.mubr.bf16.mxu0 0
    %2538 = vmatmul.mubr.bf16.gmra.mrb[0].mxu0 %v2486
    %v2539 = vpop.f32.mrb[0].mxu0
    %v2540 = vadd.f32 0.0, %v2539
    %v2541 = vpop.f32.mrb[0].mxu0
    %v2542 = vpop.f32.mrb[0].mxu0
    %v2543 = vadd.f32 0.0, %v2542
    %v2544 = vpop.f32.mrb[0].mxu0
    %2545 = vmatprep.mubr.bf16.mxu0 0
    %2546 = vmatmul.mubr.bf16.gmra.mrb[0].mxu0 %v2489
    %v2547 = vpop.f32.mrb[0].mxu0
    %v2548 = vadd.f32 0.0, %v2547
    %v2549 = vpop.f32.mrb[0].mxu0
    %v2550 = vpop.f32.mrb[0].mxu0
    %v2551 = vadd.f32 0.0, %v2550
    %v2552 = vpop.f32.mrb[0].mxu0
    %2553 = vmatprep.mubr.bf16.mxu0 0
    %2554 = vmatmul.mubr.bf16.gmra.mrb[0].mxu0 %v2492
    %v2555 = vpop.f32.mrb[0].mxu0
    %v2556 = vadd.f32 0.0, %v2555
    %v2557 = vpop.f32.mrb[0].mxu0
    %v2558 = vpop.f32.mrb[0].mxu0
    %v2559 = vadd.f32 0.0, %v2558
    %v2560 = vpop.f32.mrb[0].mxu0
    %2561 = vdwg.mxu0
    %v2564 = vunpack.c.l.b16 %v2457
    %v2565 = vunpack.c.l.b16 %v2458
    %v2566 = vpack.c.b16 %v2565, %v2564
    %v2568 = vsel %vm775, %v2453, 0
    %v2571 = vsel %vm775, %v2454, 0
    %v2574 = vsel %vm775, %v2455, 0
    %v2577 = vsel %vm775, %v2456, 0
    %v2580 = vsel %vm788, %v2566, 0
    %2582 = vmatprep.subr.bf16.mxu0 0
    %2583 = vmatpush1.bf16.msra.mxu0 %v2580
    %2584 = vmatprep.subr.bf16.mxu0 0
    %2585 = vmatpush1.bf16.msra.mxu0 0
    %2586 = vmatprep.subr.bf16.mxu0 0
    %2587 = vmatpush1.bf16.msra.mxu0 0
    %2588 = vmatprep.subr.bf16.mxu0 0
    %2589 = vmatpush1.bf16.msra.mxu0 0
    %2590 = vmatprep.subr.bf16.mxu0 0
    %2591 = vmatpush1.bf16.msra.mxu0 0
    %2592 = vmatprep.subr.bf16.mxu0 0
    %2593 = vmatpush1.bf16.msra.mxu0 0
    %2594 = vmatprep.subr.bf16.mxu0 0
    %2595 = vmatpush1.bf16.msra.mxu0 0
    %2596 = vmatprep.subr.bf16.mxu0 0
    %2597 = vmatpush1.bf16.msra.mxu0 0
    %2598 = vmatprep.subr.bf16.mxu0 0
    %2599 = vmatpush1.bf16.msra.mxu0 0
    %2600 = vmatprep.subr.bf16.mxu0 0
    %2601 = vmatpush1.bf16.msra.mxu0 0
    %2602 = vmatprep.subr.bf16.mxu0 0
    %2603 = vmatpush1.bf16.msra.mxu0 0
    %2604 = vmatprep.subr.bf16.mxu0 0
    %2605 = vmatpush1.bf16.msra.mxu0 0
    %2606 = vmatprep.subr.bf16.mxu0 0
    %2607 = vmatpush1.bf16.msra.mxu0 0
    %2608 = vmatprep.subr.bf16.mxu0 0
    %2609 = vmatpush1.bf16.msra.mxu0 0
    %2610 = vmatprep.subr.bf16.mxu0 0
    %2611 = vmatpush1.bf16.msra.mxu0 0
    %2612 = vmatprep.subr.bf16.mxu0 0
    %2613 = vmatpush1.bf16.msra.mxu0 0
    %2614 = vmatprep.mubr.bf16.mxu0 0
    %2615 = vmatmul.mubr.bf16.gmra.mrb[0].mxu0 %v2568
    %v2616 = vpop.f32.mrb[0].mxu0
    %v2617 = vadd.f32 %v2532, %v2616
    %v2618 = vpop.f32.mrb[0].mxu0
    %v2619 = vpop.f32.mrb[0].mxu0
    %v2620 = vadd.f32 %v2535, %v2619
    %v2621 = vpop.f32.mrb[0].mxu0
    %2622 = vmatprep.mubr.bf16.mxu0 0
    %2623 = vmatmul.mubr.bf16.gmra.mrb[0].mxu0 %v2571
    %v2624 = vpop.f32.mrb[0].mxu0
    %v2625 = vadd.f32 %v2540, %v2624
    %v2626 = vpop.f32.mrb[0].mxu0
    %v2627 = vpop.f32.mrb[0].mxu0
    %v2628 = vadd.f32 %v2543, %v2627
    %v2629 = vpop.f32.mrb[0].mxu0
    %2630 = vmatprep.mubr.bf16.mxu0 0
    %2631 = vmatmul.mubr.bf16.gmra.mrb[0].mxu0 %v2574
    %v2632 = vpop.f32.mrb[0].mxu0
    %v2633 = vadd.f32 %v2548, %v2632
    %v2634 = vpop.f32.mrb[0].mxu0
    %v2635 = vpop.f32.mrb[0].mxu0
    %v2636 = vadd.f32 %v2551, %v2635
    %v2637 = vpop.f32.mrb[0].mxu0
    %2638 = vmatprep.mubr.bf16.mxu0 0
    %2639 = vmatmul.mubr.bf16.gmra.mrb[0].mxu0 %v2577
    %v2640 = vpop.f32.mrb[0].mxu0
    %v2641 = vadd.f32 %v2556, %v2640
    %v2642 = vpop.f32.mrb[0].mxu0
    %v2643 = vpop.f32.mrb[0].mxu0
    %v2644 = vadd.f32 %v2559, %v2643
    %v2645 = vpop.f32.mrb[0].mxu0
    %2646 = vdwg.mxu0
    %v2647 = vld [vmem:[#allocation3 + $0x20] sm:$0xff]
    %v2648 = vld [vmem:[%s943] sm:$0xf]
    %v2649 = vld [vmem:[%s943 + $0x4] sm:$0x3]
    %v2652 = vunpack.c.l.b16 %v2648
    %v2653 = vunpack.c.l.b16 %v2649
    %v2654 = vpack.c.b16 %v2653, %v2652
    %v2656 = vsel %vm775, %v2647, 0
    %v2659 = vsel %vm788, %v2654, 0
    %2661 = vmatprep.subr.bf16.mxu0 0
    %2662 = vmatpush1.bf16.msra.mxu0 %v2659
    %2663 = vmatprep.subr.bf16.mxu0 0
    %2664 = vmatpush1.bf16.msra.mxu0 0
    %2665 = vmatprep.subr.bf16.mxu0 0
    %2666 = vmatpush1.bf16.msra.mxu0 0
    %2667 = vmatprep.subr.bf16.mxu0 0
    %2668 = vmatpush1.bf16.msra.mxu0 0
    %2669 = vmatprep.subr.bf16.mxu0 0
    %2670 = vmatpush1.bf16.msra.mxu0 0
    %2671 = vmatprep.subr.bf16.mxu0 0
    %2672 = vmatpush1.bf16.msra.mxu0 0
    %2673 = vmatprep.subr.bf16.mxu0 0
    %2674 = vmatpush1.bf16.msra.mxu0 0
    %2675 = vmatprep.subr.bf16.mxu0 0
    %2676 = vmatpush1.bf16.msra.mxu0 0
    %2677 = vmatprep.subr.bf16.mxu0 0
    %2678 = vmatpush1.bf16.msra.mxu0 0
    %2679 = vmatprep.subr.bf16.mxu0 0
    %2680 = vmatpush1.bf16.msra.mxu0 0
    %2681 = vmatprep.subr.bf16.mxu0 0
    %2682 = vmatpush1.bf16.msra.mxu0 0
    %2683 = vmatprep.subr.bf16.mxu0 0
    %2684 = vmatpush1.bf16.msra.mxu0 0
    %2685 = vmatprep.subr.bf16.mxu0 0
    %2686 = vmatpush1.bf16.msra.mxu0 0
    %2687 = vmatprep.subr.bf16.mxu0 0
    %2688 = vmatpush1.bf16.msra.mxu0 0
    %2689 = vmatprep.subr.bf16.mxu0 0
    %2690 = vmatpush1.bf16.msra.mxu0 0
    %2691 = vmatprep.subr.bf16.mxu0 0
    %2692 = vmatpush1.bf16.msra.mxu0 0
    %2693 = vmatprep.mubr.bf16.mxu0 0
    %2694 = vmatmul.mubr.bf16.gmra.mrb[0].mxu0 %v2571
    %v2695 = vpop.f32.mrb[0].mxu0
    %v2696 = vadd.f32 0.0, %v2695
    %v2697 = vpop.f32.mrb[0].mxu0
    %v2698 = vpop.f32.mrb[0].mxu0
    %v2699 = vadd.f32 0.0, %v2698
    %v2700 = vpop.f32.mrb[0].mxu0
    %2701 = vmatprep.mubr.bf16.mxu0 0
    %2702 = vmatmul.mubr.bf16.gmra.mrb[0].mxu0 %v2574
    %v2703 = vpop.f32.mrb[0].mxu0
    %v2704 = vadd.f32 0.0, %v2703
    %v2705 = vpop.f32.mrb[0].mxu0
    %v2706 = vpop.f32.mrb[0].mxu0
    %v2707 = vadd.f32 0.0, %v2706
    %v2708 = vpop.f32.mrb[0].mxu0
    %2709 = vmatprep.mubr.bf16.mxu0 0
    %2710 = vmatmul.mubr.bf16.gmra.mrb[0].mxu0 %v2577
    %v2711 = vpop.f32.mrb[0].mxu0
    %v2712 = vadd.f32 0.0, %v2711
    %v2713 = vpop.f32.mrb[0].mxu0
    %v2714 = vpop.f32.mrb[0].mxu0
    %v2715 = vadd.f32 0.0, %v2714
    %v2716 = vpop.f32.mrb[0].mxu0
    %2717 = vmatprep.mubr.bf16.mxu0 0
    %2718 = vmatmul.mubr.bf16.gmra.mrb[0].mxu0 %v2656
    %v2719 = vpop.f32.mrb[0].mxu0
    %v2720 = vadd.f32 0.0, %v2719
    %v2721 = vpop.f32.mrb[0].mxu0
    %v2722 = vpop.f32.mrb[0].mxu0
    %v2723 = vadd.f32 0.0, %v2722
    %v2724 = vpop.f32.mrb[0].mxu0
    %2725 = vdwg.mxu0
    %v2726 = vadd.f32 %v2617, %v2696
    %v2727 = vadd.f32 %v2620, %v2699
    %v2728 = vadd.f32 %v2625, %v2704
    %v2729 = vadd.f32 %v2628, %v2707
    %v2730 = vadd.f32 %v2633, %v2712
    %v2731 = vadd.f32 %v2636, %v2715
    %v2732 = vadd.f32 %v2641, %v2720
    %v2733 = vadd.f32 %v2644, %v2723
    %v2734 = vld [vmem:[%s2] sm:$0x1]
    %v2736 = vlaneseq
    %v2737 = vshrl.u32 %v2736, 7
    %v2738 = vsub.s32 0, %v2737
    %v2739 = vrot.slane %v2734, %v2738
    %v2741 = vadd.f32 %v2726, %v2739
    %v2742 = vadd.f32 %v2727, %v2739
    %v2743 = vadd.f32 %v2728, %v2739
    %v2744 = vadd.f32 %v2729, %v2739
    %v2745 = vadd.f32 %v2730, %v2739
    %v2746 = vadd.f32 %v2731, %v2739
    %v2747 = vadd.f32 %v2732, %v2739
    %v2748 = vadd.f32 %v2733, %v2739
    %v2749 = vmax.f32 %v2741, 0.0
    %v2750 = vmax.f32 %v2742, 0.0
    %v2751 = vmax.f32 %v2743, 0.0
    %v2752 = vmax.f32 %v2744, 0.0
    %v2753 = vmax.f32 %v2745, 0.0
    %v2754 = vmax.f32 %v2746, 0.0
    %v2755 = vmax.f32 %v2747, 0.0
    %v2756 = vmax.f32 %v2748, 0.0
    %v2757 = vpack.c.bf16 %v2749, %v2749
    %v2758 = vpack.c.bf16 %v2750, %v2750
    %v2759 = vpack.c.bf16 %v2751, %v2751
    %v2760 = vpack.c.bf16 %v2752, %v2752
    %v2761 = vpack.c.bf16 %v2753, %v2753
    %v2762 = vpack.c.bf16 %v2754, %v2754
    %v2763 = vpack.c.bf16 %v2755, %v2755
    %v2764 = vpack.c.bf16 %v2756, %v2756
    %v2773 = vunpack.c.l.b16 %v2757
    %v2774 = vunpack.c.l.b16 %v2758
    %v2775 = vunpack.c.l.b16 %v2759
    %v2776 = vunpack.c.l.b16 %v2760
    %v2777 = vunpack.c.l.b16 %v2761
    %v2778 = vunpack.c.l.b16 %v2762
    %v2779 = vunpack.c.l.b16 %v2763
    %v2780 = vunpack.c.l.b16 %v2764
    %v2781 = vpack.c.b16 %v2773, %v2773
    %v2782 = vpack.c.b16 %v2774, %v2774
    %v2783 = vpack.c.b16 %v2775, %v2775
    %v2784 = vpack.c.b16 %v2776, %v2776
    %v2785 = vpack.c.b16 %v2777, %v2777
    %v2786 = vpack.c.b16 %v2778, %v2778
    %v2787 = vpack.c.b16 %v2779, %v2779
    %v2788 = vpack.c.b16 %v2780, %v2780
    %v2790 = vshrl.u32 %v2781, 16
    %v2792 = vrot.slane %v2790, 7
    %v2793 = vshll.u32 %v2781, 16
    %v2795 = vor.u32 %v2792, %v2793
    %v2796 = vrot.slane %v2792, 4
    %v2798 = vshrl.u32 %v2782, 16
    %v2800 = vrot.slane %v2798, 7
    %v2801 = vshll.u32 %v2782, 16
    %v2803 = vor.u32 %v2800, %v2801
    %v2804 = vrot.slane %v2800, 4
    %v2806 = vshrl.u32 %v2783, 16
    %v2808 = vrot.slane %v2806, 7
    %v2809 = vshll.u32 %v2783, 16
    %v2811 = vor.u32 %v2808, %v2809
    %v2812 = vrot.slane %v2808, 4
    %v2814 = vshrl.u32 %v2784, 16
    %v2816 = vrot.slane %v2814, 7
    %v2817 = vshll.u32 %v2784, 16
    %v2819 = vor.u32 %v2816, %v2817
    %v2820 = vrot.slane %v2816, 4
    %v2822 = vshrl.u32 %v2785, 16
    %v2824 = vrot.slane %v2822, 7
    %v2825 = vshll.u32 %v2785, 16
    %v2827 = vor.u32 %v2824, %v2825
    %v2828 = vrot.slane %v2824, 4
    %v2830 = vshrl.u32 %v2786, 16
    %v2832 = vrot.slane %v2830, 7
    %v2833 = vshll.u32 %v2786, 16
    %v2835 = vor.u32 %v2832, %v2833
    %v2836 = vrot.slane %v2832, 4
    %v2838 = vshrl.u32 %v2787, 16
    %v2840 = vrot.slane %v2838, 7
    %v2841 = vshll.u32 %v2787, 16
    %v2843 = vor.u32 %v2840, %v2841
    %v2844 = vrot.slane %v2840, 4
    %v2846 = vshrl.u32 %v2788, 16
    %v2848 = vrot.slane %v2846, 7
    %v2849 = vshll.u32 %v2788, 16
    %v2851 = vor.u32 %v2848, %v2849
    %v2852 = vrot.slane %v2848, 4
    %v2869 = vld [vmem:[%s1165] sm:$0xf]
    %v2870 = vsel %vm1167, %v2795, %v2869
    %2871 = vst [vmem:[%s1165] sm:$0xf] %v2870
    %v2872 = vld [vmem:[%s1165 + $0x4] sm:$0x1]
    %v2873 = vsel %vm115, %v2796, %v2872
    %2874 = vst [vmem:[%s1165 + $0x4] sm:$0x1] %v2873
    %v2875 = vld [vmem:[%s1165 + $0x8] sm:$0xf]
    %v2876 = vsel %vm1167, %v2803, %v2875
    %2877 = vst [vmem:[%s1165 + $0x8] sm:$0xf] %v2876
    %v2878 = vld [vmem:[%s1165 + $0xc] sm:$0x1]
    %v2879 = vsel %vm115, %v2804, %v2878
    %2880 = vst [vmem:[%s1165 + $0xc] sm:$0x1] %v2879
    %v2881 = vld [vmem:[%s1165 + $0x10] sm:$0xf]
    %v2882 = vsel %vm1167, %v2811, %v2881
    %2883 = vst [vmem:[%s1165 + $0x10] sm:$0xf] %v2882
    %v2884 = vld [vmem:[%s1165 + $0x14] sm:$0x1]
    %v2885 = vsel %vm115, %v2812, %v2884
    %2886 = vst [vmem:[%s1165 + $0x14] sm:$0x1] %v2885
    %v2887 = vld [vmem:[%s1165 + $0x18] sm:$0xf]
    %v2888 = vsel %vm1167, %v2819, %v2887
    %2889 = vst [vmem:[%s1165 + $0x18] sm:$0xf] %v2888
    %v2890 = vld [vmem:[%s1165 + $0x1c] sm:$0x1]
    %v2891 = vsel %vm115, %v2820, %v2890
    %2892 = vst [vmem:[%s1165 + $0x1c] sm:$0x1] %v2891
    %v2893 = vld [vmem:[%s1165 + $0x20] sm:$0xf]
    %v2894 = vsel %vm1167, %v2827, %v2893
    %2895 = vst [vmem:[%s1165 + $0x20] sm:$0xf] %v2894
    %v2896 = vld [vmem:[%s1165 + $0x24] sm:$0x1]
    %v2897 = vsel %vm115, %v2828, %v2896
    %2898 = vst [vmem:[%s1165 + $0x24] sm:$0x1] %v2897
    %v2899 = vld [vmem:[%s1165 + $0x28] sm:$0xf]
    %v2900 = vsel %vm1167, %v2835, %v2899
    %2901 = vst [vmem:[%s1165 + $0x28] sm:$0xf] %v2900
    %v2902 = vld [vmem:[%s1165 + $0x2c] sm:$0x1]
    %v2903 = vsel %vm115, %v2836, %v2902
    %2904 = vst [vmem:[%s1165 + $0x2c] sm:$0x1] %v2903
    %v2905 = vld [vmem:[%s1165 + $0x30] sm:$0xf]
    %v2906 = vsel %vm1167, %v2843, %v2905
    %2907 = vst [vmem:[%s1165 + $0x30] sm:$0xf] %v2906
    %v2908 = vld [vmem:[%s1165 + $0x34] sm:$0x1]
    %v2909 = vsel %vm115, %v2844, %v2908
    %2910 = vst [vmem:[%s1165 + $0x34] sm:$0x1] %v2909
    %v2911 = vld [vmem:[%s1165 + $0x38] sm:$0xf]
    %v2912 = vsel %vm1167, %v2851, %v2911
    %2913 = vst [vmem:[%s1165 + $0x38] sm:$0xf] %v2912
    %v2914 = vld [vmem:[%s1165 + $0x3c] sm:$0x1]
    %v2915 = vsel %vm115, %v2852, %v2914
    %2916 = vst [vmem:[%s1165 + $0x3c] sm:$0x1] %v2915
    %v2917 = vld [vmem:[#allocation4] sm:$0xf]
    %v2918 = vld [vmem:[#allocation4 + $0x4] sm:$0x1]
    %v2919 = vld [vmem:[#allocation4 + $0x8] sm:$0xf]
    %v2920 = vld [vmem:[#allocation4 + $0xc] sm:$0x1]
    %v2921 = vld [vmem:[#allocation4 + $0x10] sm:$0xf]
    %v2922 = vld [vmem:[#allocation4 + $0x14] sm:$0x1]
    %v2923 = vld [vmem:[#allocation4 + $0x18] sm:$0xf]
    %v2924 = vld [vmem:[#allocation4 + $0x1c] sm:$0x1]
    %v2925 = vld [vmem:[#allocation4 + $0x20] sm:$0xf]
    %v2926 = vld [vmem:[#allocation4 + $0x24] sm:$0x1]
    %v2927 = vld [vmem:[#allocation4 + $0x28] sm:$0xf]
    %v2928 = vld [vmem:[#allocation4 + $0x2c] sm:$0x1]
    %v2929 = vld [vmem:[#allocation4 + $0x30] sm:$0xf]
    %v2930 = vld [vmem:[#allocation4 + $0x34] sm:$0x1]
    %v2931 = vld [vmem:[#allocation4 + $0x38] sm:$0xf]
    %v2932 = vld [vmem:[#allocation4 + $0x3c] sm:$0x1]
    %v2933 = vld [vmem:[#allocation4 + $0x40] sm:$0xf]
    %v2934 = vld [vmem:[#allocation4 + $0x44] sm:$0x1]
    %v2935 = vld [vmem:[#allocation4 + $0x48] sm:$0xf]
    %v2936 = vld [vmem:[#allocation4 + $0x4c] sm:$0x1]
    %v2947 = vunpack.c.l.b16 %v2917
    %v2948 = vunpack.c.l.b16 %v2919
    %v2949 = vunpack.c.l.b16 %v2921
    %v2950 = vunpack.c.l.b16 %v2923
    %v2951 = vunpack.c.l.b16 %v2925
    %v2952 = vunpack.c.l.b16 %v2927
    %v2953 = vunpack.c.l.b16 %v2929
    %v2954 = vunpack.c.l.b16 %v2931
    %v2955 = vunpack.c.l.b16 %v2933
    %v2956 = vunpack.c.l.b16 %v2935
    %v2957 = vpack.c.b16 %v2948, %v2947
    %v2958 = vpack.c.b16 %v2950, %v2949
    %v2959 = vpack.c.b16 %v2952, %v2951
    %v2960 = vpack.c.b16 %v2954, %v2953
    %v2961 = vpack.c.b16 %v2956, %v2955
    %2967 = vst.msk [vmem:[#allocation5] sm:$0xff] %vm1266, %v2957
    %2968 = vst.msk [vmem:[#allocation5 + $0x8] sm:$0xff] %vm1266, %v2958
    %2969 = vst.msk [vmem:[#allocation5 + $0x10] sm:$0xff] %vm1266, %v2959
    %2970 = vst.msk [vmem:[#allocation5 + $0x18] sm:$0xff] %vm1266, %v2960
    %2971 = vst.msk [vmem:[#allocation5 + $0x20] sm:$0xff] %vm1266, %v2961
    %v2973 = vshrl.u32 %v2917, 16
    %v2975 = vrot.slane %v2973, 4
    %v2976 = vshll.u32 %v2917, 16
    %v2978 = vrot.slane %v2976, 5
    %v2979 = vor.u32 %v2975, %v2978
    %v2980 = vrot.slane %v2979, 4
    %v2982 = vshll.u32 %v2918, 16
    %v2984 = vrot.slane %v2982, 5
    %v2985 = vsel %vm478, %v2980, %v2984
    %v2987 = vshrl.u32 %v2919, 16
    %v2989 = vrot.slane %v2987, 4
    %v2990 = vshll.u32 %v2919, 16
    %v2992 = vrot.slane %v2990, 5
    %v2993 = vor.u32 %v2989, %v2992
    %v2994 = vrot.slane %v2993, 4
    %v2996 = vshll.u32 %v2920, 16
    %v2998 = vrot.slane %v2996, 5
    %v2999 = vsel %vm478, %v2994, %v2998
    %v3001 = vshrl.u32 %v2921, 16
    %v3003 = vrot.slane %v3001, 4
    %v3004 = vshll.u32 %v2921, 16
    %v3006 = vrot.slane %v3004, 5
    %v3007 = vor.u32 %v3003, %v3006
    %v3008 = vrot.slane %v3007, 4
    %v3010 = vshll.u32 %v2922, 16
    %v3012 = vrot.slane %v3010, 5
    %v3013 = vsel %vm478, %v3008, %v3012
    %v3015 = vshrl.u32 %v2923, 16
    %v3017 = vrot.slane %v3015, 4
    %v3018 = vshll.u32 %v2923, 16
    %v3020 = vrot.slane %v3018, 5
    %v3021 = vor.u32 %v3017, %v3020
    %v3022 = vrot.slane %v3021, 4
    %v3024 = vshll.u32 %v2924, 16
    %v3026 = vrot.slane %v3024, 5
    %v3027 = vsel %vm478, %v3022, %v3026
    %v3029 = vshrl.u32 %v2925, 16
    %v3031 = vrot.slane %v3029, 4
    %v3032 = vshll.u32 %v2925, 16
    %v3034 = vrot.slane %v3032, 5
    %v3035 = vor.u32 %v3031, %v3034
    %v3036 = vrot.slane %v3035, 4
    %v3038 = vshll.u32 %v2926, 16
    %v3040 = vrot.slane %v3038, 5
    %v3041 = vsel %vm478, %v3036, %v3040
    %v3043 = vshrl.u32 %v2927, 16
    %v3045 = vrot.slane %v3043, 4
    %v3046 = vshll.u32 %v2927, 16
    %v3048 = vrot.slane %v3046, 5
    %v3049 = vor.u32 %v3045, %v3048
    %v3050 = vrot.slane %v3049, 4
    %v3052 = vshll.u32 %v2928, 16
    %v3054 = vrot.slane %v3052, 5
    %v3055 = vsel %vm478, %v3050, %v3054
    %v3057 = vshrl.u32 %v2929, 16
    %v3059 = vrot.slane %v3057, 4
    %v3060 = vshll.u32 %v2929, 16
    %v3062 = vrot.slane %v3060, 5
    %v3063 = vor.u32 %v3059, %v3062
    %v3064 = vrot.slane %v3063, 4
    %v3066 = vshll.u32 %v2930, 16
    %v3068 = vrot.slane %v3066, 5
    %v3069 = vsel %vm478, %v3064, %v3068
    %v3071 = vshrl.u32 %v2931, 16
    %v3073 = vrot.slane %v3071, 4
    %v3074 = vshll.u32 %v2931, 16
    %v3076 = vrot.slane %v3074, 5
    %v3077 = vor.u32 %v3073, %v3076
    %v3078 = vrot.slane %v3077, 4
    %v3080 = vshll.u32 %v2932, 16
    %v3082 = vrot.slane %v3080, 5
    %v3083 = vsel %vm478, %v3078, %v3082
    %v3085 = vshrl.u32 %v2933, 16
    %v3087 = vrot.slane %v3085, 4
    %v3088 = vshll.u32 %v2933, 16
    %v3090 = vrot.slane %v3088, 5
    %v3091 = vor.u32 %v3087, %v3090
    %v3092 = vrot.slane %v3091, 4
    %v3094 = vshll.u32 %v2934, 16
    %v3096 = vrot.slane %v3094, 5
    %v3097 = vsel %vm478, %v3092, %v3096
    %v3099 = vshrl.u32 %v2935, 16
    %v3101 = vrot.slane %v3099, 4
    %v3102 = vshll.u32 %v2935, 16
    %v3104 = vrot.slane %v3102, 5
    %v3105 = vor.u32 %v3101, %v3104
    %v3106 = vrot.slane %v3105, 4
    %v3108 = vshll.u32 %v2936, 16
    %v3110 = vrot.slane %v3108, 5
    %v3111 = vsel %vm478, %v3106, %v3110
    %v3112 = vunpack.c.l.b16 %v2985
    %v3113 = vunpack.c.l.b16 %v2999
    %v3114 = vunpack.c.l.b16 %v3013
    %v3115 = vunpack.c.l.b16 %v3027
    %v3116 = vunpack.c.l.b16 %v3041
    %v3117 = vunpack.c.l.b16 %v3055
    %v3118 = vunpack.c.l.b16 %v3069
    %v3119 = vunpack.c.l.b16 %v3083
    %v3120 = vunpack.c.l.b16 %v3097
    %v3121 = vunpack.c.l.b16 %v3111
    %v3122 = vpack.c.b16 %v3113, %v3112
    %v3123 = vpack.c.b16 %v3115, %v3114
    %v3124 = vpack.c.b16 %v3117, %v3116
    %v3125 = vpack.c.b16 %v3119, %v3118
    %v3126 = vpack.c.b16 %v3121, %v3120
    %3127 = vrot.lane.b32.xlu0 %v3122, 8
    %v3128 = vpop.permute.xlu0 %3127
    %3129 = vrot.lane.b32.xlu0 %v3123, 8
    %v3130 = vpop.permute.xlu0 %3129
    %3131 = vrot.lane.b32.xlu0 %v3124, 8
    %v3132 = vpop.permute.xlu0 %3131
    %3133 = vrot.lane.b32.xlu0 %v3125, 8
    %v3134 = vpop.permute.xlu0 %3133
    %3135 = vrot.lane.b32.xlu0 %v3126, 8
    %v3136 = vpop.permute.xlu0 %3135
    %3142 = vst.msk [vmem:[#allocation5] sm:$0xff] %vm1442, %v3128
    %3143 = vst.msk [vmem:[#allocation5 + $0x8] sm:$0xff] %vm1442, %v3130
    %3144 = vst.msk [vmem:[#allocation5 + $0x10] sm:$0xff] %vm1442, %v3132
    %3145 = vst.msk [vmem:[#allocation5 + $0x18] sm:$0xff] %vm1442, %v3134
    %3146 = vst.msk [vmem:[#allocation5 + $0x20] sm:$0xff] %vm1442, %v3136
    %v3157 = vrot.slane %v2917, 5
    %v3158 = vrot.slane %v3157, 4
    %v3159 = vrot.slane %v2918, 5
    %v3160 = vsel %vm667, %v3158, %v3159
    %v3161 = vrot.slane %v2919, 5
    %v3162 = vrot.slane %v3161, 4
    %v3163 = vrot.slane %v2920, 5
    %v3164 = vsel %vm667, %v3162, %v3163
    %v3165 = vrot.slane %v2921, 5
    %v3166 = vrot.slane %v3165, 4
    %v3167 = vrot.slane %v2922, 5
    %v3168 = vsel %vm667, %v3166, %v3167
    %v3169 = vrot.slane %v2923, 5
    %v3170 = vrot.slane %v3169, 4
    %v3171 = vrot.slane %v2924, 5
    %v3172 = vsel %vm667, %v3170, %v3171
    %v3173 = vrot.slane %v2925, 5
    %v3174 = vrot.slane %v3173, 4
    %v3175 = vrot.slane %v2926, 5
    %v3176 = vsel %vm667, %v3174, %v3175
    %v3177 = vrot.slane %v2927, 5
    %v3178 = vrot.slane %v3177, 4
    %v3179 = vrot.slane %v2928, 5
    %v3180 = vsel %vm667, %v3178, %v3179
    %v3181 = vrot.slane %v2929, 5
    %v3182 = vrot.slane %v3181, 4
    %v3183 = vrot.slane %v2930, 5
    %v3184 = vsel %vm667, %v3182, %v3183
    %v3185 = vrot.slane %v2931, 5
    %v3186 = vrot.slane %v3185, 4
    %v3187 = vrot.slane %v2932, 5
    %v3188 = vsel %vm667, %v3186, %v3187
    %v3189 = vrot.slane %v2933, 5
    %v3190 = vrot.slane %v3189, 4
    %v3191 = vrot.slane %v2934, 5
    %v3192 = vsel %vm667, %v3190, %v3191
    %v3193 = vrot.slane %v2935, 5
    %v3194 = vrot.slane %v3193, 4
    %v3195 = vrot.slane %v2936, 5
    %v3196 = vsel %vm667, %v3194, %v3195
    %v3197 = vunpack.c.l.b16 %v3160
    %v3198 = vunpack.c.l.b16 %v3164
    %v3199 = vunpack.c.l.b16 %v3168
    %v3200 = vunpack.c.l.b16 %v3172
    %v3201 = vunpack.c.l.b16 %v3176
    %v3202 = vunpack.c.l.b16 %v3180
    %v3203 = vunpack.c.l.b16 %v3184
    %v3204 = vunpack.c.l.b16 %v3188
    %v3205 = vunpack.c.l.b16 %v3192
    %v3206 = vunpack.c.l.b16 %v3196
    %v3207 = vpack.c.b16 %v3198, %v3197
    %v3208 = vpack.c.b16 %v3200, %v3199
    %v3209 = vpack.c.b16 %v3202, %v3201
    %v3210 = vpack.c.b16 %v3204, %v3203
    %v3211 = vpack.c.b16 %v3206, %v3205
    %3212 = vrot.lane.b32.xlu0 %v3207, 16
    %v3213 = vpop.permute.xlu0 %3212
    %3214 = vrot.lane.b32.xlu0 %v3208, 16
    %v3215 = vpop.permute.xlu0 %3214
    %3216 = vrot.lane.b32.xlu0 %v3209, 16
    %v3217 = vpop.permute.xlu0 %3216
    %3218 = vrot.lane.b32.xlu0 %v3210, 16
    %v3219 = vpop.permute.xlu0 %3218
    %3220 = vrot.lane.b32.xlu0 %v3211, 16
    %v3221 = vpop.permute.xlu0 %3220
    %3227 = vst.msk [vmem:[#allocation5] sm:$0xff] %vm1528, %v3213
    %3228 = vst.msk [vmem:[#allocation5 + $0x8] sm:$0xff] %vm1528, %v3215
    %3229 = vst.msk [vmem:[#allocation5 + $0x10] sm:$0xff] %vm1528, %v3217
    %3230 = vst.msk [vmem:[#allocation5 + $0x18] sm:$0xff] %vm1528, %v3219
    %3231 = vst.msk [vmem:[#allocation5 + $0x20] sm:$0xff] %vm1528, %v3221
    %v3232 = vld [vmem:[#allocation5] sm:$0xff]
    %v3233 = vld [vmem:[#allocation5 + $0x8] sm:$0xff]
    %v3234 = vld [vmem:[#allocation5 + $0x10] sm:$0xff]
    %v3235 = vld [vmem:[#allocation5 + $0x18] sm:$0xff]
    %v3236 = vld [vmem:[%s3] sm:$0xf]
    %v3237 = vld [vmem:[%s3 + $0x4] sm:$0xf]
    %v3238 = vld [vmem:[%s3 + $0x8] sm:$0xf]
    %v3239 = vld [vmem:[#allocation5] sm:$0xf0]
    %v3240 = vld [vmem:[#allocation5 + $0x20] sm:$0xf]
    %v3241 = vld [vmem:[%s1543] sm:$0xf]
    %v3242 = vld [vmem:[%s1543 + $0x4] sm:$0xf]
    %v3243 = vld [vmem:[%s1543 + $0x8] sm:$0xf]
    %v3249 = vrot.slane %v3239, 4
    %v3250 = vrot.slane %v3233, 4
    %v3251 = vsel %vm760, %v3249, %v3250
    %v3252 = vrot.slane %v3234, 4
    %v3253 = vsel %vm760, %v3250, %v3252
    %v3254 = vrot.slane %v3235, 4
    %v3255 = vsel %vm760, %v3252, %v3254
    %v3256 = vrot.slane %v3240, 4
    %v3257 = vsel %vm760, %v3254, %v3256
    %v3261 = vunpack.c.l.b16 %v3241
    %v3262 = vunpack.c.l.b16 %v3242
    %v3263 = vunpack.c.l.b16 %v3243
    %v3264 = vpack.c.b16 %v3262, %v3261
    %v3265 = vpack.c.b16 %v3263, %v3263
    %v3268 = vsel %vm1570, %v3251, 0
    %v3271 = vsel %vm1570, %v3253, 0
    %v3274 = vsel %vm1570, %v3255, 0
    %v3277 = vsel %vm1570, %v3257, 0
    %v3280 = vsel %vm1583, %v3265, 0
    %3282 = vmatprep.subr.bf16.mxu0 0
    %3283 = vmatpush1.bf16.msra.mxu0 %v3264
    %3284 = vmatprep.subr.bf16.mxu0 0
    %3285 = vmatpush1.bf16.msra.mxu0 %v3280
    %3286 = vmatprep.subr.bf16.mxu0 0
    %3287 = vmatpush1.bf16.msra.mxu0 0
    %3288 = vmatprep.subr.bf16.mxu0 0
    %3289 = vmatpush1.bf16.msra.mxu0 0
    %3290 = vmatprep.subr.bf16.mxu0 0
    %3291 = vmatpush1.bf16.msra.mxu0 0
    %3292 = vmatprep.subr.bf16.mxu0 0
    %3293 = vmatpush1.bf16.msra.mxu0 0
    %3294 = vmatprep.subr.bf16.mxu0 0
    %3295 = vmatpush1.bf16.msra.mxu0 0
    %3296 = vmatprep.subr.bf16.mxu0 0
    %3297 = vmatpush1.bf16.msra.mxu0 0
    %3298 = vmatprep.subr.bf16.mxu0 0
    %3299 = vmatpush1.bf16.msra.mxu0 0
    %3300 = vmatprep.subr.bf16.mxu0 0
    %3301 = vmatpush1.bf16.msra.mxu0 0
    %3302 = vmatprep.subr.bf16.mxu0 0
    %3303 = vmatpush1.bf16.msra.mxu0 0
    %3304 = vmatprep.subr.bf16.mxu0 0
    %3305 = vmatpush1.bf16.msra.mxu0 0
    %3306 = vmatprep.subr.bf16.mxu0 0
    %3307 = vmatpush1.bf16.msra.mxu0 0
    %3308 = vmatprep.subr.bf16.mxu0 0
    %3309 = vmatpush1.bf16.msra.mxu0 0
    %3310 = vmatprep.subr.bf16.mxu0 0
    %3311 = vmatpush1.bf16.msra.mxu0 0
    %3312 = vmatprep.subr.bf16.mxu0 0
    %3313 = vmatpush1.bf16.msra.mxu0 0
    %3314 = vmatprep.mubr.bf16.mxu0 0
    %3315 = vmatmul.mubr.bf16.gmra.mrb[0].mxu0 %v3268
    %v3316 = vpop.f32.mrb[0].mxu0
    %v3317 = vadd.f32 0.0, %v3316
    %v3318 = vpop.f32.mrb[0].mxu0
    %v3319 = vpop.f32.mrb[0].mxu0
    %v3320 = vadd.f32 0.0, %v3319
    %v3321 = vpop.f32.mrb[0].mxu0
    %3322 = vmatprep.mubr.bf16.mxu0 0
    %3323 = vmatmul.mubr.bf16.gmra.mrb[0].mxu0 %v3271
    %v3324 = vpop.f32.mrb[0].mxu0
    %v3325 = vadd.f32 0.0, %v3324
    %v3326 = vpop.f32.mrb[0].mxu0
    %v3327 = vpop.f32.mrb[0].mxu0
    %v3328 = vadd.f32 0.0, %v3327
    %v3329 = vpop.f32.mrb[0].mxu0
    %3330 = vmatprep.mubr.bf16.mxu0 0
    %3331 = vmatmul.mubr.bf16.gmra.mrb[0].mxu0 %v3274
    %v3332 = vpop.f32.mrb[0].mxu0
    %v3333 = vadd.f32 0.0, %v3332
    %v3334 = vpop.f32.mrb[0].mxu0
    %v3335 = vpop.f32.mrb[0].mxu0
    %v3336 = vadd.f32 0.0, %v3335
    %v3337 = vpop.f32.mrb[0].mxu0
    %3338 = vmatprep.mubr.bf16.mxu0 0
    %3339 = vmatmul.mubr.bf16.gmra.mrb[0].mxu0 %v3277
    %v3340 = vpop.f32.mrb[0].mxu0
    %v3341 = vadd.f32 0.0, %v3340
    %v3342 = vpop.f32.mrb[0].mxu0
    %v3343 = vpop.f32.mrb[0].mxu0
    %v3344 = vadd.f32 0.0, %v3343
    %v3345 = vpop.f32.mrb[0].mxu0
    %3346 = vdwg.mxu0
    %v3350 = vunpack.c.l.b16 %v3236
    %v3351 = vunpack.c.l.b16 %v3237
    %v3352 = vunpack.c.l.b16 %v3238
    %v3353 = vpack.c.b16 %v3351, %v3350
    %v3354 = vpack.c.b16 %v3352, %v3352
    %v3357 = vsel %vm1570, %v3232, 0
    %v3360 = vsel %vm1570, %v3233, 0
    %v3363 = vsel %vm1570, %v3234, 0
    %v3366 = vsel %vm1570, %v3235, 0
    %v3369 = vsel %vm1583, %v3354, 0
    %3371 = vmatprep.subr.bf16.mxu0 0
    %3372 = vmatpush1.bf16.msra.mxu0 %v3353
    %3373 = vmatprep.subr.bf16.mxu0 0
    %3374 = vmatpush1.bf16.msra.mxu0 %v3369
    %3375 = vmatprep.subr.bf16.mxu0 0
    %3376 = vmatpush1.bf16.msra.mxu0 0
    %3377 = vmatprep.subr.bf16.mxu0 0
    %3378 = vmatpush1.bf16.msra.mxu0 0
    %3379 = vmatprep.subr.bf16.mxu0 0
    %3380 = vmatpush1.bf16.msra.mxu0 0
    %3381 = vmatprep.subr.bf16.mxu0 0
    %3382 = vmatpush1.bf16.msra.mxu0 0
    %3383 = vmatprep.subr.bf16.mxu0 0
    %3384 = vmatpush1.bf16.msra.mxu0 0
    %3385 = vmatprep.subr.bf16.mxu0 0
    %3386 = vmatpush1.bf16.msra.mxu0 0
    %3387 = vmatprep.subr.bf16.mxu0 0
    %3388 = vmatpush1.bf16.msra.mxu0 0
    %3389 = vmatprep.subr.bf16.mxu0 0
    %3390 = vmatpush1.bf16.msra.mxu0 0
    %3391 = vmatprep.subr.bf16.mxu0 0
    %3392 = vmatpush1.bf16.msra.mxu0 0
    %3393 = vmatprep.subr.bf16.mxu0 0
    %3394 = vmatpush1.bf16.msra.mxu0 0
    %3395 = vmatprep.subr.bf16.mxu0 0
    %3396 = vmatpush1.bf16.msra.mxu0 0
    %3397 = vmatprep.subr.bf16.mxu0 0
    %3398 = vmatpush1.bf16.msra.mxu0 0
    %3399 = vmatprep.subr.bf16.mxu0 0
    %3400 = vmatpush1.bf16.msra.mxu0 0
    %3401 = vmatprep.subr.bf16.mxu0 0
    %3402 = vmatpush1.bf16.msra.mxu0 0
    %3403 = vmatprep.mubr.bf16.mxu0 0
    %3404 = vmatmul.mubr.bf16.gmra.mrb[0].mxu0 %v3357
    %v3405 = vpop.f32.mrb[0].mxu0
    %v3406 = vadd.f32 %v3317, %v3405
    %v3407 = vpop.f32.mrb[0].mxu0
    %v3408 = vpop.f32.mrb[0].mxu0
    %v3409 = vadd.f32 %v3320, %v3408
    %v3410 = vpop.f32.mrb[0].mxu0
    %3411 = vmatprep.mubr.bf16.mxu0 0
    %3412 = vmatmul.mubr.bf16.gmra.mrb[0].mxu0 %v3360
    %v3413 = vpop.f32.mrb[0].mxu0
    %v3414 = vadd.f32 %v3325, %v3413
    %v3415 = vpop.f32.mrb[0].mxu0
    %v3416 = vpop.f32.mrb[0].mxu0
    %v3417 = vadd.f32 %v3328, %v3416
    %v3418 = vpop.f32.mrb[0].mxu0
    %3419 = vmatprep.mubr.bf16.mxu0 0
    %3420 = vmatmul.mubr.bf16.gmra.mrb[0].mxu0 %v3363
    %v3421 = vpop.f32.mrb[0].mxu0
    %v3422 = vadd.f32 %v3333, %v3421
    %v3423 = vpop.f32.mrb[0].mxu0
    %v3424 = vpop.f32.mrb[0].mxu0
    %v3425 = vadd.f32 %v3336, %v3424
    %v3426 = vpop.f32.mrb[0].mxu0
    %3427 = vmatprep.mubr.bf16.mxu0 0
    %3428 = vmatmul.mubr.bf16.gmra.mrb[0].mxu0 %v3366
    %v3429 = vpop.f32.mrb[0].mxu0
    %v3430 = vadd.f32 %v3341, %v3429
    %v3431 = vpop.f32.mrb[0].mxu0
    %v3432 = vpop.f32.mrb[0].mxu0
    %v3433 = vadd.f32 %v3344, %v3432
    %v3434 = vpop.f32.mrb[0].mxu0
    %3435 = vdwg.mxu0
    %v3436 = vld [vmem:[#allocation5 + $0x20] sm:$0xff]
    %v3437 = vld [vmem:[%s1742] sm:$0xf]
    %v3438 = vld [vmem:[%s1742 + $0x4] sm:$0xf]
    %v3439 = vld [vmem:[%s1742 + $0x8] sm:$0xf]
    %v3443 = vunpack.c.l.b16 %v3437
    %v3444 = vunpack.c.l.b16 %v3438
    %v3445 = vunpack.c.l.b16 %v3439
    %v3446 = vpack.c.b16 %v3444, %v3443
    %v3447 = vpack.c.b16 %v3445, %v3445
    %v3450 = vsel %vm1570, %v3436, 0
    %v3453 = vsel %vm1583, %v3447, 0
    %3455 = vmatprep.subr.bf16.mxu0 0
    %3456 = vmatpush1.bf16.msra.mxu0 %v3446
    %3457 = vmatprep.subr.bf16.mxu0 0
    %3458 = vmatpush1.bf16.msra.mxu0 %v3453
    %3459 = vmatprep.subr.bf16.mxu0 0
    %3460 = vmatpush1.bf16.msra.mxu0 0
    %3461 = vmatprep.subr.bf16.mxu0 0
    %3462 = vmatpush1.bf16.msra.mxu0 0
    %3463 = vmatprep.subr.bf16.mxu0 0
    %3464 = vmatpush1.bf16.msra.mxu0 0
    %3465 = vmatprep.subr.bf16.mxu0 0
    %3466 = vmatpush1.bf16.msra.mxu0 0
    %3467 = vmatprep.subr.bf16.mxu0 0
    %3468 = vmatpush1.bf16.msra.mxu0 0
    %3469 = vmatprep.subr.bf16.mxu0 0
    %3470 = vmatpush1.bf16.msra.mxu0 0
    %3471 = vmatprep.subr.bf16.mxu0 0
    %3472 = vmatpush1.bf16.msra.mxu0 0
    %3473 = vmatprep.subr.bf16.mxu0 0
    %3474 = vmatpush1.bf16.msra.mxu0 0
    %3475 = vmatprep.subr.bf16.mxu0 0
    %3476 = vmatpush1.bf16.msra.mxu0 0
    %3477 = vmatprep.subr.bf16.mxu0 0
    %3478 = vmatpush1.bf16.msra.mxu0 0
    %3479 = vmatprep.subr.bf16.mxu0 0
    %3480 = vmatpush1.bf16.msra.mxu0 0
    %3481 = vmatprep.subr.bf16.mxu0 0
    %3482 = vmatpush1.bf16.msra.mxu0 0
    %3483 = vmatprep.subr.bf16.mxu0 0
    %3484 = vmatpush1.bf16.msra.mxu0 0
    %3485 = vmatprep.subr.bf16.mxu0 0
    %3486 = vmatpush1.bf16.msra.mxu0 0
    %3487 = vmatprep.mubr.bf16.mxu0 0
    %3488 = vmatmul.mubr.bf16.gmra.mrb[0].mxu0 %v3360
    %v3489 = vpop.f32.mrb[0].mxu0
    %v3490 = vadd.f32 0.0, %v3489
    %v3491 = vpop.f32.mrb[0].mxu0
    %v3492 = vpop.f32.mrb[0].mxu0
    %v3493 = vadd.f32 0.0, %v3492
    %v3494 = vpop.f32.mrb[0].mxu0
    %3495 = vmatprep.mubr.bf16.mxu0 0
    %3496 = vmatmul.mubr.bf16.gmra.mrb[0].mxu0 %v3363
    %v3497 = vpop.f32.mrb[0].mxu0
    %v3498 = vadd.f32 0.0, %v3497
    %v3499 = vpop.f32.mrb[0].mxu0
    %v3500 = vpop.f32.mrb[0].mxu0
    %v3501 = vadd.f32 0.0, %v3500
    %v3502 = vpop.f32.mrb[0].mxu0
    %3503 = vmatprep.mubr.bf16.mxu0 0
    %3504 = vmatmul.mubr.bf16.gmra.mrb[0].mxu0 %v3366
    %v3505 = vpop.f32.mrb[0].mxu0
    %v3506 = vadd.f32 0.0, %v3505
    %v3507 = vpop.f32.mrb[0].mxu0
    %v3508 = vpop.f32.mrb[0].mxu0
    %v3509 = vadd.f32 0.0, %v3508
    %v3510 = vpop.f32.mrb[0].mxu0
    %3511 = vmatprep.mubr.bf16.mxu0 0
    %3512 = vmatmul.mubr.bf16.gmra.mrb[0].mxu0 %v3450
    %v3513 = vpop.f32.mrb[0].mxu0
    %v3514 = vadd.f32 0.0, %v3513
    %v3515 = vpop.f32.mrb[0].mxu0
    %v3516 = vpop.f32.mrb[0].mxu0
    %v3517 = vadd.f32 0.0, %v3516
    %v3518 = vpop.f32.mrb[0].mxu0
    %3519 = vdwg.mxu0
    %v3520 = vadd.f32 %v3406, %v3490
    %v3521 = vadd.f32 %v3409, %v3493
    %v3522 = vadd.f32 %v3414, %v3498
    %v3523 = vadd.f32 %v3417, %v3501
    %v3524 = vadd.f32 %v3422, %v3506
    %v3525 = vadd.f32 %v3425, %v3509
    %v3526 = vadd.f32 %v3430, %v3514
    %v3527 = vadd.f32 %v3433, %v3517
    %v3528 = vld [vmem:[%s4] sm:$0x1]
    %v3530 = vlaneseq
    %v3531 = vshrl.u32 %v3530, 7
    %v3532 = vsub.s32 0, %v3531
    %v3533 = vrot.slane %v3528, %v3532
    %v3535 = vadd.f32 %v3520, %v3533
    %v3536 = vadd.f32 %v3521, %v3533
    %v3537 = vadd.f32 %v3522, %v3533
    %v3538 = vadd.f32 %v3523, %v3533
    %v3539 = vadd.f32 %v3524, %v3533
    %v3540 = vadd.f32 %v3525, %v3533
    %v3541 = vadd.f32 %v3526, %v3533
    %v3542 = vadd.f32 %v3527, %v3533
    %v3543 = vmax.f32 %v3535, 0.0
    %v3544 = vmax.f32 %v3536, 0.0
    %v3545 = vmax.f32 %v3537, 0.0
    %v3546 = vmax.f32 %v3538, 0.0
    %v3547 = vmax.f32 %v3539, 0.0
    %v3548 = vmax.f32 %v3540, 0.0
    %v3549 = vmax.f32 %v3541, 0.0
    %v3550 = vmax.f32 %v3542, 0.0
    %v3551 = vpack.c.bf16 %v3544, %v3543
    %v3552 = vpack.c.bf16 %v3546, %v3545
    %v3553 = vpack.c.bf16 %v3548, %v3547
    %v3554 = vpack.c.bf16 %v3550, %v3549
    %v3559 = vunpack.c.l.b16 %v3551
    %v3560 = vunpack.c.h.b16 %v3551
    %v3561 = vunpack.c.l.b16 %v3552
    %v3562 = vunpack.c.h.b16 %v3552
    %v3563 = vunpack.c.l.b16 %v3553
    %v3564 = vunpack.c.h.b16 %v3553
    %v3565 = vunpack.c.l.b16 %v3554
    %v3566 = vunpack.c.h.b16 %v3554
    %v3567 = vpack.c.b16 %v3559, %v3559
    %v3568 = vpack.c.b16 %v3560, %v3560
    %v3569 = vpack.c.b16 %v3561, %v3561
    %v3570 = vpack.c.b16 %v3562, %v3562
    %v3571 = vpack.c.b16 %v3563, %v3563
    %v3572 = vpack.c.b16 %v3564, %v3564
    %v3573 = vpack.c.b16 %v3565, %v3565
    %v3574 = vpack.c.b16 %v3566, %v3566
    %s3583 = scalar_lea.vmem %s5, 32
    %3584 = vst.msk [vmem:[%s3583] sm:$0xf] %vm107, %v3567
    %3585 = vst.msk [vmem:[%s3583 + $0x4] sm:$0xf] %vm107, %v3568
    %3586 = vst.msk [vmem:[%s3583 + $0x8] sm:$0xf] %vm107, %v3569
    %3587 = vst.msk [vmem:[%s3583 + $0xc] sm:$0xf] %vm107, %v3570
    %3588 = vst.msk [vmem:[%s3583 + $0x10] sm:$0xf] %vm107, %v3571
    %3589 = vst.msk [vmem:[%s3583 + $0x14] sm:$0xf] %vm107, %v3572
    %3590 = vst.msk [vmem:[%s3583 + $0x18] sm:$0xf] %vm107, %v3573
    %3591 = vst.msk [vmem:[%s3583 + $0x1c] sm:$0xf] %vm107, %v3574
    // Predicated region
    $region26: #{tpu_custom_call.1} parent=1 // pred_check
      _
    $region27: #{tpu_custom_call.1} parent=1 // pred_check_branch
      %3593 = sbr.rel (0) target = $region29
    $region28: #{tpu_custom_call.1} parent=1 // pred_region
      _
    $region29: #{tpu_custom_call.1} parent=1 // pred_fallthru
      _
    // Predicated region
    $region30: #{tpu_custom_call.1} parent=1 // pred_check
      _
    $region31: #{tpu_custom_call.1} parent=1 // pred_check_branch
      %3595 = sbr.rel (0) target = $region33
    $region32: #{tpu_custom_call.1} parent=1 // pred_region
      _
    $region33: #{tpu_custom_call.1} parent=1 // pred_fallthru
      _
    %3596 = vsyncpa [#allocation7], 1

</llo_original>
